<compile_context>
chip_gen: v6e
topology: v6e:2x2x1
jax: 0.10.0
libtpu: 0.0.40
codegen_flags: <defaults>
</compile_context>

<pallas_src>
import functools
import jax
import jax.numpy as jnp
from jax import lax
from jax.experimental import pallas as pl
from jax.experimental.pallas import tpu as pltpu


LANE = 128                                  # per-head q/k/v lane padding
_NT_DIMS = (((1,), (1,)), ((), ()))         # contract last dims: A @ B^T w/o transpose


def _round_up(x, m):
    return ((x + m - 1) // m) * m


def _erf(x):
    # Abramowitz & Stegun 7.1.26 (max abs err ~1.5e-7) — matches nn.GELU's erf form
    # at f32 tolerance.
    a1, a2, a3, a4, a5 = (0.254829592, -0.284496736, 1.421413741,
                          -1.453152027, 1.061405429)
    p = 0.3275911
    ax = jnp.abs(x)
    t = 1.0 / (1.0 + p * ax)
    poly = ((((a5 * t + a4) * t + a3) * t + a2) * t + a1) * t
    y = 1.0 - poly * jnp.exp(-ax * ax)
    return jnp.where(x >= 0, y, -y)


def _gelu(x):
    # torch.nn.GELU() default (erf-based).  TODO(synk): on v6e/v7x this chain could run
    # in bf16 to halve VPU traffic; kept f32 so the same kernel stays optimal on v5e.
    return 0.5 * x * (1.0 + _erf(x * 0.7071067811865476))


# ------------------------- fused encoder kernel (grid = (B, depth)) -------------------------

def _encoder_kernel(patches_ref, projw_ref, base_ref,
                    ln1g_ref, ln1b_ref, wqkv_ref, bqkv_ref,
                    wproj_ref, bproj_ref, ln2g_ref, ln2b_ref,
                    w1_ref, b1_ref, w2_ref, b2_ref,
                    fng_ref, fnb_ref,
                    o_ref, *,
                    num_heads, head_dim, d_real, n_real, depth, eps=1e-6):
    d = pl.program_id(1)
    Np, Dp = o_ref.shape
    HL = num_heads * LANE
    inv_d = 1.0 / float(d_real)

    # Padded residual COLUMNS (>= d_real) are kept exactly zero, so sum/d_real is the
    # true mean.  Padded sequence ROWS are merely finite (not zero) after block 1; they
    # are masked as attention keys here and dropped by the [:, :N, :D] slice outside.
    col_mask = (lax.broadcasted_iota(jnp.int32, (1, Dp), 1) < d_real
                ).astype(jnp.float32)                                       # (1, Dp)
    key_bias = jnp.where(
        lax.broadcasted_iota(jnp.int32, (1, Np), 1) < n_real, 0.0, -1e30)   # (1, Np)

    def layer_norm(x, g, b):
        # eps = 1e-6: timm ViT uses partial(nn.LayerNorm, eps=1e-6).
        mu = jnp.sum(x, axis=-1, keepdims=True) * inv_d
        xc = (x - mu) * col_mask
        var = jnp.sum(xc * xc, axis=-1, keepdims=True) * inv_d
        return xc * lax.rsqrt(var + eps) * g + b

    # --- d == 0: patch-embed matmul + slab assembly, written straight into o_ref ---
    @pl.when(d == 0)
    def _():
        tok = jnp.dot(patches_ref[...], projw_ref[...],
                      preferred_element_type=jnp.float32)                   # (Np, Dp)
        # base = pos_embed + cls@row0 + conv bias on rows 1..P (pad rows/cols zero).
        o_ref[...] = tok + base_ref[...]

    x = o_ref[...]                      # residual carried in VMEM across the depth axis

    # --- MHSA: x + sum_h softmax(q_h k_h^T / sqrt(hd)) v_h @ Wproj_h + b_proj ---
    h = layer_norm(x, ln1g_ref[...], ln1b_ref[...]).astype(jnp.bfloat16)
    qkv = jnp.dot(h, wqkv_ref[...], preferred_element_type=jnp.float32) + bqkv_ref[...]
    qkv = qkv.astype(jnp.bfloat16)      # single cast covers q, k, v for every head
    scale = float(head_dim) ** -0.5

    attn = jnp.zeros((Np, Dp), jnp.float32)
    for hh in range(num_heads):
        lo = hh * LANE
        qh = qkv[:, lo:lo + LANE]                    # full-vreg lane blocks; columns
        kh = qkv[:, HL + lo:HL + lo + LANE]          # beyond head_dim are zero and
        vh = qkv[:, 2 * HL + lo:2 * HL + lo + LANE]  # contribute 0 to every product
        s = lax.dot_general(qh, kh, _NT_DIMS,
                            preferred_element_type=jnp.float32) * scale + key_bias
        s = s - jnp.max(s, axis=-1, keepdims=True)
        e = jnp.exp(s)
        p = (e * pl.reciprocal(jnp.sum(e, axis=-1, keepdims=True), approx=True)
             ).astype(jnp.bfloat16)
        oh = jnp.dot(p, vh, preferred_element_type=jnp.float32).astype(jnp.bfloat16)
        # Per-head projection: stacked weight indexed on its leading axis, K = 128.
        attn = attn + jnp.dot(oh, wproj_ref[hh], preferred_element_type=jnp.float32)
    x = x + attn + bproj_ref[...]

    # --- MLP: x + fc2(gelu(fc1(LN(x)))) ---
    h2 = layer_norm(x, ln2g_ref[...], ln2b_ref[...]).astype(jnp.bfloat16)
    m = jnp.dot(h2, w1_ref[...], preferred_element_type=jnp.float32) + b1_ref[...]
    m = _gelu(m).astype(jnp.bfloat16)
    m = jnp.dot(m, w2_ref[...], preferred_element_type=jnp.float32) + b2_ref[...]
    x = x + m

    o_ref[...] = x
    @pl.when(d == depth - 1)
    def _():
        o_ref[...] = layer_norm(x, fng_ref[...], fnb_ref[...])   # fused final LayerNorm


# ----------------------------- parameter prep (pad + bf16 + stack) -----------------------------

def prepare_params(params, *, num_heads):
    """Pad / restack weights for the fused kernel (lane-dense, bf16 MXU operands)."""
    f32, bf16 = jnp.float32, jnp.bfloat16
    D = params['pos_embed'].shape[-1]
    N = params['pos_embed'].shape[1]
    P = N - 1
    Dp = _round_up(D, 128)
    Np = _round_up(N, 8)
    head_dim = D // num_heads
    HL = num_heads * LANE

    blocks = params['blocks']
    depth = len(blocks)
    hidden = blocks[0]['w_fc1'].shape[1]
    Hp = _round_up(hidden, 128)

    def pad2(a, r, c, dtype=f32):
        return (jnp.zeros((r, c), f32).at[:a.shape[0], :a.shape[1]].set(a)).astype(dtype)

    def qkv_w(blk):
        # (D, 3D) [q|k|v] -> (Dp, 3*HL): each head's columns padded to 128 lanes so
        # in-kernel head slices are full vregs and per-head contractions are K = 128.
        w = blk['w_qkv']
        out = jnp.zeros((Dp, 3 * HL), f32)
        for j in range(3):
            for h in range(num_heads):
                src = w[:, j * D + h * head_dim: j * D + (h + 1) * head_dim]
                out = out.at[:D, j * HL + h * LANE:
                             j * HL + h * LANE + head_dim].set(src)
        return out.astype(bf16)

    def qkv_b(blk):
        b = blk['b_qkv']
        out = jnp.zeros((1, 3 * HL), f32)
        for j in range(3):
            for h in range(num_heads):
                out = out.at[:, j * HL + h * LANE:
                             j * HL + h * LANE + head_dim].set(
                    b[:, j * D + h * head_dim: j * D + (h + 1) * head_dim])
        return out

    def proj_w_stacked(blk):
        # (D, D) rows = concat(heads) -> (num_heads, 128, Dp); zero pad rows match the
        # zero pad columns of each head's attention output.
        w = blk['w_proj']
        out = jnp.zeros((num_heads, LANE, Dp), f32)
        for h in range(num_heads):
            out = out.at[h, :head_dim, :D].set(w[h * head_dim:(h + 1) * head_dim, :])
        return out.astype(bf16)

    def stack(fn):
        return jnp.stack([fn(b) for b in blocks], axis=0)

    stacked = dict(
        ln1_g=stack(lambda b: pad2(b['ln1_g'], 1, Dp)),
        ln1_b=stack(lambda b: pad2(b['ln1_b'], 1, Dp)),
        w_qkv=stack(qkv_w), b_qkv=stack(qkv_b),
        w_proj=stack(proj_w_stacked),
        b_proj=stack(lambda b: pad2(b['b_proj'], 1, Dp)),
        ln2_g=stack(lambda b: pad2(b['ln2_g'], 1, Dp)),
        ln2_b=stack(lambda b: pad2(b['ln2_b'], 1, Dp)),
        w_fc1=stack(lambda b: pad2(b['w_fc1'], Dp, Hp, bf16)),
        b_fc1=stack(lambda b: pad2(b['b_fc1'], 1, Hp)),
        w_fc2=stack(lambda b: pad2(b['w_fc2'], Hp, Dp, bf16)),
        b_fc2=stack(lambda b: pad2(b['b_fc2'], 1, Dp)),
    )
    # TODO(synk): for ViT-Base-scale configs on v7x (64 MiB VMEM / core), stream
    # w_fc1/w_fc2 in K-tiles with pltpu.emit_pipeline instead of whole-weight blocks.

    # Patch-embed projection (Conv3d with kernel == stride, flattened as im2col matmul).
    wflat = params['proj_w'].reshape(D, -1).T                  # (K, D), K = C*T*ph*pw
    K = wflat.shape[0]
    Kp = _round_up(K, 256)                                     # fill 256-wide MXU (v6e/v7x)
    proj_w = jnp.zeros((Kp, Dp), f32).at[:K, :D].set(wflat).astype(bf16)

    # Base slab added to the patch-embed matmul at d == 0:
    #   row 0: cls + pos[0]; rows 1..P: conv bias + pos[i]; pad rows/cols: exactly 0.
    base = jnp.zeros((Np, Dp), f32)
    base = base.at[:N, :D].set(params['pos_embed'][0])
    base = base.at[0, :D].add(params['cls_token'][0, 0])
    base = base.at[1:1 + P, :D].add(jnp.broadcast_to(params['proj_b'][None, :], (P, D)))

    return dict(
        proj_w=proj_w, base=base, stacked=stacked,
        norm_g=pad2(params['norm_g'], 1, Dp), norm_b=pad2(params['norm_b'], 1, Dp),
        meta=dict(D=D, N=N, P=P, Dp=Dp, Np=Np, K=K, Kp=Kp, Hp=Hp, depth=depth,
                  num_heads=num_heads, head_dim=head_dim),
    )


# ------------------------------- forward (glue) -------------------------------

def spatial_encoder_forward(x, kp, *, patch_size):
    # x: (T, B, C, H, W) — same convention as the PyTorch module.
    meta = kp['meta']
    D, N, P = meta['D'], meta['N'], meta['P']
    Dp, Np, K, Kp = meta['Dp'], meta['Np'], meta['K'], meta['Kp']
    depth, num_heads, head_dim = meta['depth'], meta['num_heads'], meta['head_dim']

    T, B, C, H, W = x.shape
    ph = pw = patch_size
    Gh, Gw = H // ph, W // pw
    assert Gh * Gw == P

    # PatchEmbed3d im2col: rows ordered (b, gh, gw), columns ordered (C, T, ph, pw),
    # built directly in bf16 into the row-padded slab (row 0 = cls slot, rows > P =
    # sequence padding -> zero patch rows -> zero tokens before `base` is added).
    xp = jnp.transpose(x, (1, 2, 0, 3, 4)).reshape(B, C, T, Gh, ph, Gw, pw)
    xp = jnp.transpose(xp, (0, 3, 5, 1, 2, 4, 6)).reshape(B, P, C * T * ph * pw)
    patches = (jnp.zeros((B, Np, Kp), jnp.bfloat16)
               .at[:, 1:1 + P, :K].set(xp.astype(jnp.bfloat16)))

    st = kp['stacked']
    args = (patches, kp['proj_w'], kp['base'],
            st['ln1_g'], st['ln1_b'], st['w_qkv'], st['b_qkv'],
            st['w_proj'], st['b_proj'], st['ln2_g'], st['ln2_b'],
            st['w_fc1'], st['b_fc1'], st['w_fc2'], st['b_fc2'],
            kp['norm_g'], kp['norm_b'])

    def const_spec(a):
        # Constant across the whole grid -> single-buffered (no wasted VMEM copy).
        nd = a.ndim
        return pl.BlockSpec(a.shape, lambda b, d, _nd=nd: (0,) * _nd,
                            pipeline_mode=pl.Buffered(buffer_count=1))

    def depth_spec(a):
        # Stacked along a leading depth axis; squeezed out of the kernel view.  Default
        # double buffering lets layer d+1 weights DMA under layer d compute.
        nd = a.ndim
        return pl.BlockSpec((None,) + a.shape[1:],
                            lambda b, d, _nd=nd: (d,) + (0,) * (_nd - 1))

    in_specs = [
        pl.BlockSpec((None, Np, Kp), lambda b, d: (b, 0, 0)),      # patches (per batch)
        const_spec(kp['proj_w']), const_spec(kp['base']),
        depth_spec(st['ln1_g']), depth_spec(st['ln1_b']),
        depth_spec(st['w_qkv']), depth_spec(st['b_qkv']),
        depth_spec(st['w_proj']), depth_spec(st['b_proj']),
        depth_spec(st['ln2_g']), depth_spec(st['ln2_b']),
        depth_spec(st['w_fc1']), depth_spec(st['b_fc1']),
        depth_spec(st['w_fc2']), depth_spec(st['b_fc2']),
        const_spec(kp['norm_g']), const_spec(kp['norm_b']),
    ]

    kernel = functools.partial(
        _encoder_kernel, num_heads=num_heads, head_dim=head_dim,
        d_real=D, n_real=N, depth=depth)

    out = pl.pallas_call(
        kernel,
        out_shape=jax.ShapeDtypeStruct((B, Np, Dp), jnp.float32),
        grid=(B, depth),
        in_specs=in_specs,
        # Same output block across the depth axis -> the residual stays resident in
        # VMEM for all layers of a sequence and is written to HBM once per batch item.
        out_specs=pl.BlockSpec((None, Np, Dp), lambda b, d: (b, 0, 0)),
        compiler_params=pltpu.CompilerParams(
            dimension_semantics=("parallel", "arbitrary"),
            vmem_limit_bytes=32 * 1024 * 1024),
    )(*args)
    # torch.cuda.device_of(x) in forward() has no computational effect.
    return out[:, :N, :D]


# ------------------------------ parameter init --------------------------------

def init_params(key, *, D, N, depth, mlp_ratio, in_chans, T, ph, pw):
    keys = jax.random.split(key, 8 + depth)

    def nrm(k, shape):
        return (0.02 * jax.random.normal(k, shape)).astype(jnp.float32)

    # "pretrained" 2D conv weight, inflated exactly like PatchEmbed3d.__init__:
    # zeros(T, D, C, ph, pw); [2] = pre_w; permute(1,2,0,3,4) -> (D, C, T, ph, pw)
    pre_w = nrm(keys[0], (D, in_chans, ph, pw))
    proj_b = nrm(keys[1], (D,))
    w3d = jnp.zeros((T, D, in_chans, ph, pw), jnp.float32).at[2].set(pre_w)
    proj_w = jnp.transpose(w3d, (1, 2, 0, 3, 4))

    cls_token = nrm(keys[2], (1, 1, D))
    pos_embed = nrm(keys[3], (1, N, D))

    blocks = []
    for d in range(depth):
        bk = jax.random.split(keys[8 + d], 6)
        blocks.append(dict(
            ln1_g=jnp.ones((1, D), jnp.float32), ln1_b=jnp.zeros((1, D), jnp.float32),
            w_qkv=nrm(bk[0], (D, 3 * D)), b_qkv=nrm(bk[1], (1, 3 * D)),
            w_proj=nrm(bk[2], (D, D)), b_proj=nrm(bk[3], (1, D)),
            ln2_g=jnp.ones((1, D), jnp.float32), ln2_b=jnp.zeros((1, D), jnp.float32),
            w_fc1=nrm(bk[4], (D, mlp_ratio * D)),
            b_fc1=jnp.zeros((1, mlp_ratio * D), jnp.float32),
            w_fc2=nrm(bk[5], (mlp_ratio * D, D)),
            b_fc2=jnp.zeros((1, D), jnp.float32),
        ))
    return dict(proj_w=proj_w, proj_b=proj_b, cls_token=cls_token,
                pos_embed=pos_embed, blocks=blocks,
                norm_g=jnp.ones((1, D), jnp.float32),
                norm_b=jnp.zeros((1, D), jnp.float32))


# ------------------------------------ main -------------------------------------

if __name__ == "__main__":
    # Small-shape config consistent with SpatialEncoder:
    #   window=12, temp_size=4 -> temp_embed_size = ptemp_size = 3 (window != temp_size,
    #   so the PatchEmbed3d path is used; temporal index 2 of the inflated kernel valid).
    config = dict(img_size=16, temp_size=4, feature_size=32)
    window = 12
    patch_size = 8
    temp_embed_size = window // config['temp_size']            # 3  (== T of the input)
    D = config['feature_size']
    H = W = config['img_size']
    Gh = Gw = H // patch_size
    num_patches = (temp_embed_size // temp_embed_size) * Gh * Gw   # grid_size = (1, 2, 2)
    N = num_patches + 1                                        # + cls token
    depth, num_heads, mlp_ratio = 2, 4, 4
    B, C = 2, 3

    key = jax.random.PRNGKey(0)
    kx, kprm = jax.random.split(key)
    x = jax.random.normal(kx, (temp_embed_size, B, C, H, W), dtype=jnp.float32)
    params = init_params(kprm, D=D, N=N, depth=depth, mlp_ratio=mlp_ratio,
                         in_chans=C, T=temp_embed_size, ph=patch_size, pw=patch_size)
    kparams = prepare_params(params, num_heads=num_heads)

    out = spatial_encoder_forward(x, kparams, patch_size=patch_size)
    out = jax.block_until_ready(out)
    assert out.shape == (B, N, D) and out.dtype == jnp.float32
    assert bool(jnp.all(jnp.isfinite(out)))
    print("KERNEL_OK")
</pallas_src>

<mosaic_0001>
module attributes {stable_mosaic.version = 11 : i64} {
  func.func @_encoder_kernel(%arg0: i32, %arg1: i32, %arg2: memref<1x8x768xbf16, #tpu.memory_space<vmem>>, %arg3: memref<768x128xbf16, #tpu.memory_space<vmem>>, %arg4: memref<8x128xf32, #tpu.memory_space<vmem>>, %arg5: memref<1x1x128xf32, #tpu.memory_space<vmem>>, %arg6: memref<1x1x128xf32, #tpu.memory_space<vmem>>, %arg7: memref<1x128x1536xbf16, #tpu.memory_space<vmem>>, %arg8: memref<1x1x1536xf32, #tpu.memory_space<vmem>>, %arg9: memref<1x4x128x128xbf16, #tpu.memory_space<vmem>>, %arg10: memref<1x1x128xf32, #tpu.memory_space<vmem>>, %arg11: memref<1x1x128xf32, #tpu.memory_space<vmem>>, %arg12: memref<1x1x128xf32, #tpu.memory_space<vmem>>, %arg13: memref<1x128x128xbf16, #tpu.memory_space<vmem>>, %arg14: memref<1x1x128xf32, #tpu.memory_space<vmem>>, %arg15: memref<1x128x128xbf16, #tpu.memory_space<vmem>>, %arg16: memref<1x1x128xf32, #tpu.memory_space<vmem>>, %arg17: memref<1x128xf32, #tpu.memory_space<vmem>>, %arg18: memref<1x128xf32, #tpu.memory_space<vmem>>, %arg19: memref<1x8x128xf32, #tpu.memory_space<vmem>>) attributes {dimension_semantics = [#tpu.dimension_semantics<parallel>, #tpu.dimension_semantics<arbitrary>], iteration_bounds = array<i64: 2, 2>, scalar_prefetch = 0 : i64, scratch_operands = 0 : i64, tpu.core_type = #tpu.core_type<tc>, window_params = [{transform_indices = @transform_0, window_bounds = array<i64: 1, 8, 768>}, {pipeline_mode = #tpu.pipeline_mode<synchronous>, transform_indices = @transform_1, window_bounds = array<i64: 768, 128>}, {pipeline_mode = #tpu.pipeline_mode<synchronous>, transform_indices = @transform_2, window_bounds = array<i64: 8, 128>}, {transform_indices = @transform_3, window_bounds = array<i64: 1, 1, 128>}, {transform_indices = @transform_4, window_bounds = array<i64: 1, 1, 128>}, {transform_indices = @transform_5, window_bounds = array<i64: 1, 128, 1536>}, {transform_indices = @transform_6, window_bounds = array<i64: 1, 1, 1536>}, {transform_indices = @transform_7, window_bounds = array<i64: 1, 4, 128, 128>}, {transform_indices = @transform_8, window_bounds = array<i64: 1, 1, 128>}, {transform_indices = @transform_9, window_bounds = array<i64: 1, 1, 128>}, {transform_indices = @transform_10, window_bounds = array<i64: 1, 1, 128>}, {transform_indices = @transform_11, window_bounds = array<i64: 1, 128, 128>}, {transform_indices = @transform_12, window_bounds = array<i64: 1, 1, 128>}, {transform_indices = @transform_13, window_bounds = array<i64: 1, 128, 128>}, {transform_indices = @transform_14, window_bounds = array<i64: 1, 1, 128>}, {pipeline_mode = #tpu.pipeline_mode<synchronous>, transform_indices = @transform_15, window_bounds = array<i64: 1, 128>}, {pipeline_mode = #tpu.pipeline_mode<synchronous>, transform_indices = @transform_16, window_bounds = array<i64: 1, 128>}, {transform_indices = @transform_17, window_bounds = array<i64: 1, 8, 128>}]} {
    %0 = tpu.iota {dimensions = array<i32: 1>} : vector<1x128xi32>
    %c32_i32 = arith.constant 32 : i32
    %1 = vector.broadcast %c32_i32 : i32 to vector<1x128xi32>
    %2 = arith.cmpi slt, %0, %1 : vector<1x128xi32>
    %3 = arith.extui %2 : vector<1x128xi1> to vector<1x128xi32>
    %4 = arith.sitofp %3 : vector<1x128xi32> to vector<1x128xf32>
    %5 = tpu.iota {dimensions = array<i32: 1>} : vector<1x8xi32>
    %c5_i32 = arith.constant 5 : i32
    %6 = vector.broadcast %c5_i32 : i32 to vector<1x8xi32>
    %7 = arith.cmpi slt, %5, %6 : vector<1x8xi32>
    %cst = arith.constant 0.000000e+00 : f32
    %cst_0 = arith.constant -1.000000e+30 : f32
    %8 = vector.broadcast %cst : f32 to vector<1x8xf32>
    %9 = vector.broadcast %cst_0 : f32 to vector<1x8xf32>
    %10 = arith.select %7, %8, %9 : vector<1x8xi1>, vector<1x8xf32>
    %c0_i32 = arith.constant 0 : i32
    %11 = arith.cmpi eq, %arg1, %c0_i32 : i32
    %12 = arith.extui %11 : i1 to i32
    %c0_i32_1 = arith.constant 0 : i32
    %13 = arith.cmpi ne, %12, %c0_i32_1 : i32
    scf.if %13 {
      %c0_107 = arith.constant 0 : index
      %c0_108 = arith.constant 0 : index
      %c0_109 = arith.constant 0 : index
      %246 = vector.load %arg2[%c0_107, %c0_108, %c0_109] : memref<1x8x768xbf16, #tpu.memory_space<vmem>>, vector<1x8x768xbf16>
      %247 = vector.shape_cast %246 : vector<1x8x768xbf16> to vector<8x768xbf16>
      %c0_110 = arith.constant 0 : index
      %c0_111 = arith.constant 0 : index
      %248 = vector.load %arg3[%c0_110, %c0_111] : memref<768x128xbf16, #tpu.memory_space<vmem>>, vector<768x128xbf16>
      %cst_112 = arith.constant dense<0.000000e+00> : vector<8x128xf32>
      %249 = tpu.matmul %247, %248, %cst_112 {dimension_numbers = #tpu.dot_dimension_numbers<[1], [0], [0], [1], [0, 0, 1, 1], [], []>} : vector<8x768xbf16>, vector<768x128xbf16>, vector<8x128xf32> -> vector<8x128xf32>
      %c0_113 = arith.constant 0 : index
      %c0_114 = arith.constant 0 : index
      %250 = vector.load %arg4[%c0_113, %c0_114] : memref<8x128xf32, #tpu.memory_space<vmem>>, vector<8x128xf32>
      %251 = arith.addf %249, %250 : vector<8x128xf32>
      %c0_115 = arith.constant 0 : index
      %c0_116 = arith.constant 0 : index
      %c0_117 = arith.constant 0 : index
      %252 = vector.load %arg19[%c0_115, %c0_116, %c0_117] : memref<1x8x128xf32, #tpu.memory_space<vmem>>, vector<1x8x128xf32>
      %253 = vector.shape_cast %252 : vector<1x8x128xf32> to vector<8x128xf32>
      %254 = vector.shape_cast %251 : vector<8x128xf32> to vector<1x8x128xf32>
      tpu.vector_store %arg19[%c0_115, %c0_116, %c0_117], %254 {strides = array<i32>} : memref<1x8x128xf32, #tpu.memory_space<vmem>>, vector<1x8x128xf32>,
    } else {
    }
    %c0 = arith.constant 0 : index
    %c0_2 = arith.constant 0 : index
    %c0_3 = arith.constant 0 : index
    %14 = vector.load %arg19[%c0, %c0_2, %c0_3] : memref<1x8x128xf32, #tpu.memory_space<vmem>>, vector<1x8x128xf32>
    %15 = vector.shape_cast %14 : vector<1x8x128xf32> to vector<8x128xf32>
    %c0_4 = arith.constant 0 : index
    %c0_5 = arith.constant 0 : index
    %c0_6 = arith.constant 0 : index
    %16 = vector.load %arg5[%c0_4, %c0_5, %c0_6] : memref<1x1x128xf32, #tpu.memory_space<vmem>>, vector<1x1x128xf32>
    %17 = vector.shape_cast %16 : vector<1x1x128xf32> to vector<1x128xf32>
    %c0_7 = arith.constant 0 : index
    %c0_8 = arith.constant 0 : index
    %c0_9 = arith.constant 0 : index
    %18 = vector.load %arg6[%c0_7, %c0_8, %c0_9] : memref<1x1x128xf32, #tpu.memory_space<vmem>>, vector<1x1x128xf32>
    %19 = vector.shape_cast %18 : vector<1x1x128xf32> to vector<1x128xf32>
    %cst_10 = arith.constant dense<0.000000e+00> : vector<8xf32>
    %20 = vector.multi_reduction <add>, %15, %cst_10 [1] : vector<8x128xf32> to vector<8xf32>
    %21 = vector.shape_cast %20 : vector<8xf32> to vector<8x1xf32>
    %cst_11 = arith.constant 3.125000e-02 : f32
    %22 = vector.broadcast %cst_11 : f32 to vector<8x1xf32>
    %23 = arith.mulf %21, %22 : vector<8x1xf32>
    %24 = vector.broadcast %23 : vector<8x1xf32> to vector<8x128xf32>
    %25 = arith.subf %15, %24 : vector<8x128xf32>
    %26 = vector.broadcast %4 : vector<1x128xf32> to vector<8x128xf32>
    %27 = arith.mulf %25, %26 : vector<8x128xf32>
    %28 = arith.mulf %27, %27 : vector<8x128xf32>
    %cst_12 = arith.constant dense<0.000000e+00> : vector<8xf32>
    %29 = vector.multi_reduction <add>, %28, %cst_12 [1] : vector<8x128xf32> to vector<8xf32>
    %30 = vector.shape_cast %29 : vector<8xf32> to vector<8x1xf32>
    %cst_13 = arith.constant 3.125000e-02 : f32
    %31 = vector.broadcast %cst_13 : f32 to vector<8x1xf32>
    %32 = arith.mulf %30, %31 : vector<8x1xf32>
    %cst_14 = arith.constant 9.99999997E-7 : f32
    %33 = vector.broadcast %cst_14 : f32 to vector<8x1xf32>
    %34 = arith.addf %32, %33 : vector<8x1xf32>
    %35 = math.rsqrt %34 : vector<8x1xf32>
    %36 = vector.broadcast %35 : vector<8x1xf32> to vector<8x128xf32>
    %37 = arith.mulf %27, %36 : vector<8x128xf32>
    %38 = vector.broadcast %17 : vector<1x128xf32> to vector<8x128xf32>
    %39 = arith.mulf %37, %38 : vector<8x128xf32>
    %40 = vector.broadcast %19 : vector<1x128xf32> to vector<8x128xf32>
    %41 = arith.addf %39, %40 : vector<8x128xf32>
    %42 = arith.truncf %41 : vector<8x128xf32> to vector<8x128xbf16>
    %c0_15 = arith.constant 0 : index
    %c0_16 = arith.constant 0 : index
    %c0_17 = arith.constant 0 : index
    %43 = vector.load %arg7[%c0_15, %c0_16, %c0_17] : memref<1x128x1536xbf16, #tpu.memory_space<vmem>>, vector<1x128x1536xbf16>
    %44 = vector.shape_cast %43 : vector<1x128x1536xbf16> to vector<128x1536xbf16>
    %cst_18 = arith.constant dense<0.000000e+00> : vector<8x1536xf32>
    %45 = tpu.matmul %42, %44, %cst_18 {dimension_numbers = #tpu.dot_dimension_numbers<[1], [0], [0], [1], [0, 0, 1, 1], [], []>} : vector<8x128xbf16>, vector<128x1536xbf16>, vector<8x1536xf32> -> vector<8x1536xf32>
    %c0_19 = arith.constant 0 : index
    %c0_20 = arith.constant 0 : index
    %c0_21 = arith.constant 0 : index
    %46 = vector.load %arg8[%c0_19, %c0_20, %c0_21] : memref<1x1x1536xf32, #tpu.memory_space<vmem>>, vector<1x1x1536xf32>
    %47 = vector.shape_cast %46 : vector<1x1x1536xf32> to vector<1x1536xf32>
    %48 = vector.broadcast %47 : vector<1x1536xf32> to vector<8x1536xf32>
    %49 = arith.addf %45, %48 : vector<8x1536xf32>
    %50 = arith.truncf %49 : vector<8x1536xf32> to vector<8x1536xbf16>
    %cst_22 = arith.constant 0.000000e+00 : f32
    %51 = vector.broadcast %cst_22 : f32 to vector<8x128xf32>
    %52 = vector.extract_strided_slice %50 {offsets = [0, 0], sizes = [8, 128], strides = [1, 1]} : vector<8x1536xbf16> to vector<8x128xbf16>
    %53 = vector.extract_strided_slice %50 {offsets = [0, 512], sizes = [8, 128], strides = [1, 1]} : vector<8x1536xbf16> to vector<8x128xbf16>
    %54 = vector.extract_strided_slice %50 {offsets = [0, 1024], sizes = [8, 128], strides = [1, 1]} : vector<8x1536xbf16> to vector<8x128xbf16>
    %cst_23 = arith.constant dense<0.000000e+00> : vector<8x8xf32>
    %55 = tpu.matmul %52, %53, %cst_23 {dimension_numbers = #tpu.dot_dimension_numbers<[1], [1], [0], [0], [0, 0, 1, 0], [], []>} : vector<8x128xbf16>, vector<8x128xbf16>, vector<8x8xf32> -> vector<8x8xf32>
    %cst_24 = arith.constant 0.353553385 : f32
    %56 = vector.broadcast %cst_24 : f32 to vector<8x8xf32>
    %57 = arith.mulf %55, %56 : vector<8x8xf32>
    %58 = vector.broadcast %10 : vector<1x8xf32> to vector<8x8xf32>
    %59 = arith.addf %57, %58 : vector<8x8xf32>
    %cst_25 = arith.constant dense<0xFF800000> : vector<8xf32>
    %60 = vector.multi_reduction <maximumf>, %59, %cst_25 [1] : vector<8x8xf32> to vector<8xf32>
    %61 = vector.shape_cast %60 : vector<8xf32> to vector<8x1xf32>
    %62 = vector.broadcast %61 : vector<8x1xf32> to vector<8x8xf32>
    %63 = arith.subf %59, %62 : vector<8x8xf32>
    %64 = math.exp %63 : vector<8x8xf32>
    %cst_26 = arith.constant dense<0.000000e+00> : vector<8xf32>
    %65 = vector.multi_reduction <add>, %64, %cst_26 [1] : vector<8x8xf32> to vector<8xf32>
    %66 = vector.shape_cast %65 : vector<8xf32> to vector<8x1xf32>
    %67 = tpu.reciprocal %66 {approx = true} : vector<8x1xf32> -> vector<8x1xf32>
    %68 = vector.broadcast %67 : vector<8x1xf32> to vector<8x8xf32>
    %69 = arith.mulf %64, %68 : vector<8x8xf32>
    %70 = arith.truncf %69 : vector<8x8xf32> to vector<8x8xbf16>
    %cst_27 = arith.constant dense<0.000000e+00> : vector<8x128xf32>
    %71 = tpu.matmul %70, %54, %cst_27 {dimension_numbers = #tpu.dot_dimension_numbers<[1], [0], [0], [1], [0, 0, 1, 1], [], []>} : vector<8x8xbf16>, vector<8x128xbf16>, vector<8x128xf32> -> vector<8x128xf32>
    %72 = arith.truncf %71 : vector<8x128xf32> to vector<8x128xbf16>
    %c0_28 = arith.constant 0 : index
    %c0_29 = arith.constant 0 : index
    %c0_30 = arith.constant 0 : index
    %c0_31 = arith.constant 0 : index
    %73 = vector.load %arg9[%c0_28, %c0_29, %c0_30, %c0_31] : memref<1x4x128x128xbf16, #tpu.memory_space<vmem>>, vector<1x1x128x128xbf16>
    %74 = vector.shape_cast %73 : vector<1x1x128x128xbf16> to vector<128x128xbf16>
    %cst_32 = arith.constant dense<0.000000e+00> : vector<8x128xf32>
    %75 = tpu.matmul %72, %74, %cst_32 {dimension_numbers = #tpu.dot_dimension_numbers<[1], [0], [0], [1], [0, 0, 1, 1], [], []>} : vector<8x128xbf16>, vector<128x128xbf16>, vector<8x128xf32> -> vector<8x128xf32>
    %76 = arith.addf %51, %75 : vector<8x128xf32>
    %77 = vector.extract_strided_slice %50 {offsets = [0, 128], sizes = [8, 128], strides = [1, 1]} : vector<8x1536xbf16> to vector<8x128xbf16>
    %78 = vector.extract_strided_slice %50 {offsets = [0, 640], sizes = [8, 128], strides = [1, 1]} : vector<8x1536xbf16> to vector<8x128xbf16>
    %79 = vector.extract_strided_slice %50 {offsets = [0, 1152], sizes = [8, 128], strides = [1, 1]} : vector<8x1536xbf16> to vector<8x128xbf16>
    %cst_33 = arith.constant dense<0.000000e+00> : vector<8x8xf32>
    %80 = tpu.matmul %77, %78, %cst_33 {dimension_numbers = #tpu.dot_dimension_numbers<[1], [1], [0], [0], [0, 0, 1, 0], [], []>} : vector<8x128xbf16>, vector<8x128xbf16>, vector<8x8xf32> -> vector<8x8xf32>
    %cst_34 = arith.constant 0.353553385 : f32
    %81 = vector.broadcast %cst_34 : f32 to vector<8x8xf32>
    %82 = arith.mulf %80, %81 : vector<8x8xf32>
    %83 = vector.broadcast %10 : vector<1x8xf32> to vector<8x8xf32>
    %84 = arith.addf %82, %83 : vector<8x8xf32>
    %cst_35 = arith.constant dense<0xFF800000> : vector<8xf32>
    %85 = vector.multi_reduction <maximumf>, %84, %cst_35 [1] : vector<8x8xf32> to vector<8xf32>
    %86 = vector.shape_cast %85 : vector<8xf32> to vector<8x1xf32>
    %87 = vector.broadcast %86 : vector<8x1xf32> to vector<8x8xf32>
    %88 = arith.subf %84, %87 : vector<8x8xf32>
    %89 = math.exp %88 : vector<8x8xf32>
    %cst_36 = arith.constant dense<0.000000e+00> : vector<8xf32>
    %90 = vector.multi_reduction <add>, %89, %cst_36 [1] : vector<8x8xf32> to vector<8xf32>
    %91 = vector.shape_cast %90 : vector<8xf32> to vector<8x1xf32>
    %92 = tpu.reciprocal %91 {approx = true} : vector<8x1xf32> -> vector<8x1xf32>
    %93 = vector.broadcast %92 : vector<8x1xf32> to vector<8x8xf32>
    %94 = arith.mulf %89, %93 : vector<8x8xf32>
    %95 = arith.truncf %94 : vector<8x8xf32> to vector<8x8xbf16>
    %cst_37 = arith.constant dense<0.000000e+00> : vector<8x128xf32>
    %96 = tpu.matmul %95, %79, %cst_37 {dimension_numbers = #tpu.dot_dimension_numbers<[1], [0], [0], [1], [0, 0, 1, 1], [], []>} : vector<8x8xbf16>, vector<8x128xbf16>, vector<8x128xf32> -> vector<8x128xf32>
    %97 = arith.truncf %96 : vector<8x128xf32> to vector<8x128xbf16>
    %c0_38 = arith.constant 0 : index
    %c1 = arith.constant 1 : index
    %c0_39 = arith.constant 0 : index
    %c0_40 = arith.constant 0 : index
    %98 = vector.load %arg9[%c0_38, %c1, %c0_39, %c0_40] : memref<1x4x128x128xbf16, #tpu.memory_space<vmem>>, vector<1x1x128x128xbf16>
    %99 = vector.shape_cast %98 : vector<1x1x128x128xbf16> to vector<128x128xbf16>
    %cst_41 = arith.constant dense<0.000000e+00> : vector<8x128xf32>
    %100 = tpu.matmul %97, %99, %cst_41 {dimension_numbers = #tpu.dot_dimension_numbers<[1], [0], [0], [1], [0, 0, 1, 1], [], []>} : vector<8x128xbf16>, vector<128x128xbf16>, vector<8x128xf32> -> vector<8x128xf32>
    %101 = arith.addf %76, %100 : vector<8x128xf32>
    %102 = vector.extract_strided_slice %50 {offsets = [0, 256], sizes = [8, 128], strides = [1, 1]} : vector<8x1536xbf16> to vector<8x128xbf16>
    %103 = vector.extract_strided_slice %50 {offsets = [0, 768], sizes = [8, 128], strides = [1, 1]} : vector<8x1536xbf16> to vector<8x128xbf16>
    %104 = vector.extract_strided_slice %50 {offsets = [0, 1280], sizes = [8, 128], strides = [1, 1]} : vector<8x1536xbf16> to vector<8x128xbf16>
    %cst_42 = arith.constant dense<0.000000e+00> : vector<8x8xf32>
    %105 = tpu.matmul %102, %103, %cst_42 {dimension_numbers = #tpu.dot_dimension_numbers<[1], [1], [0], [0], [0, 0, 1, 0], [], []>} : vector<8x128xbf16>, vector<8x128xbf16>, vector<8x8xf32> -> vector<8x8xf32>
    %cst_43 = arith.constant 0.353553385 : f32
    %106 = vector.broadcast %cst_43 : f32 to vector<8x8xf32>
    %107 = arith.mulf %105, %106 : vector<8x8xf32>
    %108 = vector.broadcast %10 : vector<1x8xf32> to vector<8x8xf32>
    %109 = arith.addf %107, %108 : vector<8x8xf32>
    %cst_44 = arith.constant dense<0xFF800000> : vector<8xf32>
    %110 = vector.multi_reduction <maximumf>, %109, %cst_44 [1] : vector<8x8xf32> to vector<8xf32>
    %111 = vector.shape_cast %110 : vector<8xf32> to vector<8x1xf32>
    %112 = vector.broadcast %111 : vector<8x1xf32> to vector<8x8xf32>
    %113 = arith.subf %109, %112 : vector<8x8xf32>
    %114 = math.exp %113 : vector<8x8xf32>
    %cst_45 = arith.constant dense<0.000000e+00> : vector<8xf32>
    %115 = vector.multi_reduction <add>, %114, %cst_45 [1] : vector<8x8xf32> to vector<8xf32>
    %116 = vector.shape_cast %115 : vector<8xf32> to vector<8x1xf32>
    %117 = tpu.reciprocal %116 {approx = true} : vector<8x1xf32> -> vector<8x1xf32>
    %118 = vector.broadcast %117 : vector<8x1xf32> to vector<8x8xf32>
    %119 = arith.mulf %114, %118 : vector<8x8xf32>
    %120 = arith.truncf %119 : vector<8x8xf32> to vector<8x8xbf16>
    %cst_46 = arith.constant dense<0.000000e+00> : vector<8x128xf32>
    %121 = tpu.matmul %120, %104, %cst_46 {dimension_numbers = #tpu.dot_dimension_numbers<[1], [0], [0], [1], [0, 0, 1, 1], [], []>} : vector<8x8xbf16>, vector<8x128xbf16>, vector<8x128xf32> -> vector<8x128xf32>
    %122 = arith.truncf %121 : vector<8x128xf32> to vector<8x128xbf16>
    %c0_47 = arith.constant 0 : index
    %c2 = arith.constant 2 : index
    %c0_48 = arith.constant 0 : index
    %c0_49 = arith.constant 0 : index
    %123 = vector.load %arg9[%c0_47, %c2, %c0_48, %c0_49] : memref<1x4x128x128xbf16, #tpu.memory_space<vmem>>, vector<1x1x128x128xbf16>
    %124 = vector.shape_cast %123 : vector<1x1x128x128xbf16> to vector<128x128xbf16>
    %cst_50 = arith.constant dense<0.000000e+00> : vector<8x128xf32>
    %125 = tpu.matmul %122, %124, %cst_50 {dimension_numbers = #tpu.dot_dimension_numbers<[1], [0], [0], [1], [0, 0, 1, 1], [], []>} : vector<8x128xbf16>, vector<128x128xbf16>, vector<8x128xf32> -> vector<8x128xf32>
    %126 = arith.addf %101, %125 : vector<8x128xf32>
    %127 = vector.extract_strided_slice %50 {offsets = [0, 384], sizes = [8, 128], strides = [1, 1]} : vector<8x1536xbf16> to vector<8x128xbf16>
    %128 = vector.extract_strided_slice %50 {offsets = [0, 896], sizes = [8, 128], strides = [1, 1]} : vector<8x1536xbf16> to vector<8x128xbf16>
    %129 = vector.extract_strided_slice %50 {offsets = [0, 1408], sizes = [8, 128], strides = [1, 1]} : vector<8x1536xbf16> to vector<8x128xbf16>
    %cst_51 = arith.constant dense<0.000000e+00> : vector<8x8xf32>
    %130 = tpu.matmul %127, %128, %cst_51 {dimension_numbers = #tpu.dot_dimension_numbers<[1], [1], [0], [0], [0, 0, 1, 0], [], []>} : vector<8x128xbf16>, vector<8x128xbf16>, vector<8x8xf32> -> vector<8x8xf32>
    %cst_52 = arith.constant 0.353553385 : f32
    %131 = vector.broadcast %cst_52 : f32 to vector<8x8xf32>
    %132 = arith.mulf %130, %131 : vector<8x8xf32>
    %133 = vector.broadcast %10 : vector<1x8xf32> to vector<8x8xf32>
    %134 = arith.addf %132, %133 : vector<8x8xf32>
    %cst_53 = arith.constant dense<0xFF800000> : vector<8xf32>
    %135 = vector.multi_reduction <maximumf>, %134, %cst_53 [1] : vector<8x8xf32> to vector<8xf32>
    %136 = vector.shape_cast %135 : vector<8xf32> to vector<8x1xf32>
    %137 = vector.broadcast %136 : vector<8x1xf32> to vector<8x8xf32>
    %138 = arith.subf %134, %137 : vector<8x8xf32>
    %139 = math.exp %138 : vector<8x8xf32>
    %cst_54 = arith.constant dense<0.000000e+00> : vector<8xf32>
    %140 = vector.multi_reduction <add>, %139, %cst_54 [1] : vector<8x8xf32> to vector<8xf32>
    %141 = vector.shape_cast %140 : vector<8xf32> to vector<8x1xf32>
    %142 = tpu.reciprocal %141 {approx = true} : vector<8x1xf32> -> vector<8x1xf32>
    %143 = vector.broadcast %142 : vector<8x1xf32> to vector<8x8xf32>
    %144 = arith.mulf %139, %143 : vector<8x8xf32>
    %145 = arith.truncf %144 : vector<8x8xf32> to vector<8x8xbf16>
    %cst_55 = arith.constant dense<0.000000e+00> : vector<8x128xf32>
    %146 = tpu.matmul %145, %129, %cst_55 {dimension_numbers = #tpu.dot_dimension_numbers<[1], [0], [0], [1], [0, 0, 1, 1], [], []>} : vector<8x8xbf16>, vector<8x128xbf16>, vector<8x128xf32> -> vector<8x128xf32>
    %147 = arith.truncf %146 : vector<8x128xf32> to vector<8x128xbf16>
    %c0_56 = arith.constant 0 : index
    %c3 = arith.constant 3 : index
    %c0_57 = arith.constant 0 : index
    %c0_58 = arith.constant 0 : index
    %148 = vector.load %arg9[%c0_56, %c3, %c0_57, %c0_58] : memref<1x4x128x128xbf16, #tpu.memory_space<vmem>>, vector<1x1x128x128xbf16>
    %149 = vector.shape_cast %148 : vector<1x1x128x128xbf16> to vector<128x128xbf16>
    %cst_59 = arith.constant dense<0.000000e+00> : vector<8x128xf32>
    %150 = tpu.matmul %147, %149, %cst_59 {dimension_numbers = #tpu.dot_dimension_numbers<[1], [0], [0], [1], [0, 0, 1, 1], [], []>} : vector<8x128xbf16>, vector<128x128xbf16>, vector<8x128xf32> -> vector<8x128xf32>
    %151 = arith.addf %126, %150 : vector<8x128xf32>
    %152 = arith.addf %15, %151 : vector<8x128xf32>
    %c0_60 = arith.constant 0 : index
    %c0_61 = arith.constant 0 : index
    %c0_62 = arith.constant 0 : index
    %153 = vector.load %arg10[%c0_60, %c0_61, %c0_62] : memref<1x1x128xf32, #tpu.memory_space<vmem>>, vector<1x1x128xf32>
    %154 = vector.shape_cast %153 : vector<1x1x128xf32> to vector<1x128xf32>
    %155 = vector.broadcast %154 : vector<1x128xf32> to vector<8x128xf32>
    %156 = arith.addf %152, %155 : vector<8x128xf32>
    %c0_63 = arith.constant 0 : index
    %c0_64 = arith.constant 0 : index
    %c0_65 = arith.constant 0 : index
    %157 = vector.load %arg11[%c0_63, %c0_64, %c0_65] : memref<1x1x128xf32, #tpu.memory_space<vmem>>, vector<1x1x128xf32>
    %158 = vector.shape_cast %157 : vector<1x1x128xf32> to vector<1x128xf32>
    %c0_66 = arith.constant 0 : index
    %c0_67 = arith.constant 0 : index
    %c0_68 = arith.constant 0 : index
    %159 = vector.load %arg12[%c0_66, %c0_67, %c0_68] : memref<1x1x128xf32, #tpu.memory_space<vmem>>, vector<1x1x128xf32>
    %160 = vector.shape_cast %159 : vector<1x1x128xf32> to vector<1x128xf32>
    %cst_69 = arith.constant dense<0.000000e+00> : vector<8xf32>
    %161 = vector.multi_reduction <add>, %156, %cst_69 [1] : vector<8x128xf32> to vector<8xf32>
    %162 = vector.shape_cast %161 : vector<8xf32> to vector<8x1xf32>
    %cst_70 = arith.constant 3.125000e-02 : f32
    %163 = vector.broadcast %cst_70 : f32 to vector<8x1xf32>
    %164 = arith.mulf %162, %163 : vector<8x1xf32>
    %165 = vector.broadcast %164 : vector<8x1xf32> to vector<8x128xf32>
    %166 = arith.subf %156, %165 : vector<8x128xf32>
    %167 = vector.broadcast %4 : vector<1x128xf32> to vector<8x128xf32>
    %168 = arith.mulf %166, %167 : vector<8x128xf32>
    %169 = arith.mulf %168, %168 : vector<8x128xf32>
    %cst_71 = arith.constant dense<0.000000e+00> : vector<8xf32>
    %170 = vector.multi_reduction <add>, %169, %cst_71 [1] : vector<8x128xf32> to vector<8xf32>
    %171 = vector.shape_cast %170 : vector<8xf32> to vector<8x1xf32>
    %cst_72 = arith.constant 3.125000e-02 : f32
    %172 = vector.broadcast %cst_72 : f32 to vector<8x1xf32>
    %173 = arith.mulf %171, %172 : vector<8x1xf32>
    %cst_73 = arith.constant 9.99999997E-7 : f32
    %174 = vector.broadcast %cst_73 : f32 to vector<8x1xf32>
    %175 = arith.addf %173, %174 : vector<8x1xf32>
    %176 = math.rsqrt %175 : vector<8x1xf32>
    %177 = vector.broadcast %176 : vector<8x1xf32> to vector<8x128xf32>
    %178 = arith.mulf %168, %177 : vector<8x128xf32>
    %179 = vector.broadcast %158 : vector<1x128xf32> to vector<8x128xf32>
    %180 = arith.mulf %178, %179 : vector<8x128xf32>
    %181 = vector.broadcast %160 : vector<1x128xf32> to vector<8x128xf32>
    %182 = arith.addf %180, %181 : vector<8x128xf32>
    %183 = arith.truncf %182 : vector<8x128xf32> to vector<8x128xbf16>
    %c0_74 = arith.constant 0 : index
    %c0_75 = arith.constant 0 : index
    %c0_76 = arith.constant 0 : index
    %184 = vector.load %arg13[%c0_74, %c0_75, %c0_76] : memref<1x128x128xbf16, #tpu.memory_space<vmem>>, vector<1x128x128xbf16>
    %185 = vector.shape_cast %184 : vector<1x128x128xbf16> to vector<128x128xbf16>
    %cst_77 = arith.constant dense<0.000000e+00> : vector<8x128xf32>
    %186 = tpu.matmul %183, %185, %cst_77 {dimension_numbers = #tpu.dot_dimension_numbers<[1], [0], [0], [1], [0, 0, 1, 1], [], []>} : vector<8x128xbf16>, vector<128x128xbf16>, vector<8x128xf32> -> vector<8x128xf32>
    %c0_78 = arith.constant 0 : index
    %c0_79 = arith.constant 0 : index
    %c0_80 = arith.constant 0 : index
    %187 = vector.load %arg14[%c0_78, %c0_79, %c0_80] : memref<1x1x128xf32, #tpu.memory_space<vmem>>, vector<1x1x128xf32>
    %188 = vector.shape_cast %187 : vector<1x1x128xf32> to vector<1x128xf32>
    %189 = vector.broadcast %188 : vector<1x128xf32> to vector<8x128xf32>
    %190 = arith.addf %186, %189 : vector<8x128xf32>
    %cst_81 = arith.constant 5.000000e-01 : f32
    %191 = vector.broadcast %cst_81 : f32 to vector<8x128xf32>
    %192 = arith.mulf %191, %190 : vector<8x128xf32>
    %cst_82 = arith.constant 0.707106769 : f32
    %193 = vector.broadcast %cst_82 : f32 to vector<8x128xf32>
    %194 = arith.mulf %190, %193 : vector<8x128xf32>
    %195 = math.absf %194 : vector<8x128xf32>
    %cst_83 = arith.constant 0.327591091 : f32
    %196 = vector.broadcast %cst_83 : f32 to vector<8x128xf32>
    %197 = arith.mulf %196, %195 : vector<8x128xf32>
    %cst_84 = arith.constant 1.000000e+00 : f32
    %198 = vector.broadcast %cst_84 : f32 to vector<8x128xf32>
    %199 = arith.addf %198, %197 : vector<8x128xf32>
    %cst_85 = arith.constant 1.000000e+00 : f32
    %200 = vector.broadcast %cst_85 : f32 to vector<8x128xf32>
    %201 = arith.divf %200, %199 : vector<8x128xf32>
    %cst_86 = arith.constant 1.06140542 : f32
    %202 = vector.broadcast %cst_86 : f32 to vector<8x128xf32>
    %203 = arith.mulf %202, %201 : vector<8x128xf32>
    %cst_87 = arith.constant -1.45315206 : f32
    %204 = vector.broadcast %cst_87 : f32 to vector<8x128xf32>
    %205 = arith.addf %203, %204 : vector<8x128xf32>
    %206 = arith.mulf %205, %201 : vector<8x128xf32>
    %cst_88 = arith.constant 1.42141378 : f32
    %207 = vector.broadcast %cst_88 : f32 to vector<8x128xf32>
    %208 = arith.addf %206, %207 : vector<8x128xf32>
    %209 = arith.mulf %208, %201 : vector<8x128xf32>
    %cst_89 = arith.constant -0.284496725 : f32
    %210 = vector.broadcast %cst_89 : f32 to vector<8x128xf32>
    %211 = arith.addf %209, %210 : vector<8x128xf32>
    %212 = arith.mulf %211, %201 : vector<8x128xf32>
    %cst_90 = arith.constant 0.254829586 : f32
    %213 = vector.broadcast %cst_90 : f32 to vector<8x128xf32>
    %214 = arith.addf %212, %213 : vector<8x128xf32>
    %215 = arith.mulf %214, %201 : vector<8x128xf32>
    %cst_91 = arith.constant 0.000000e+00 : f32
    %216 = vector.broadcast %cst_91 : f32 to vector<8x128xf32>
    %217 = arith.subf %216, %195 : vector<8x128xf32>
    %218 = arith.mulf %217, %195 : vector<8x128xf32>
    %219 = math.exp %218 : vector<8x128xf32>
    %220 = arith.mulf %215, %219 : vector<8x128xf32>
    %cst_92 = arith.constant 1.000000e+00 : f32
    %221 = vector.broadcast %cst_92 : f32 to vector<8x128xf32>
    %222 = arith.subf %221, %220 : vector<8x128xf32>
    %cst_93 = arith.constant 0.000000e+00 : f32
    %223 = vector.broadcast %cst_93 : f32 to vector<8x128xf32>
    %224 = arith.cmpf oge, %194, %223 : vector<8x128xf32>
    %cst_94 = arith.constant 0.000000e+00 : f32
    %225 = vector.broadcast %cst_94 : f32 to vector<8x128xf32>
    %226 = arith.subf %225, %222 : vector<8x128xf32>
    %227 = arith.select %224, %222, %226 : vector<8x128xi1>, vector<8x128xf32>
    %cst_95 = arith.constant 1.000000e+00 : f32
    %228 = vector.broadcast %cst_95 : f32 to vector<8x128xf32>
    %229 = arith.addf %228, %227 : vector<8x128xf32>
    %230 = arith.mulf %192, %229 : vector<8x128xf32>
    %231 = arith.truncf %230 : vector<8x128xf32> to vector<8x128xbf16>
    %c0_96 = arith.constant 0 : index
    %c0_97 = arith.constant 0 : index
    %c0_98 = arith.constant 0 : index
    %232 = vector.load %arg15[%c0_96, %c0_97, %c0_98] : memref<1x128x128xbf16, #tpu.memory_space<vmem>>, vector<1x128x128xbf16>
    %233 = vector.shape_cast %232 : vector<1x128x128xbf16> to vector<128x128xbf16>
    %cst_99 = arith.constant dense<0.000000e+00> : vector<8x128xf32>
    %234 = tpu.matmul %231, %233, %cst_99 {dimension_numbers = #tpu.dot_dimension_numbers<[1], [0], [0], [1], [0, 0, 1, 1], [], []>} : vector<8x128xbf16>, vector<128x128xbf16>, vector<8x128xf32> -> vector<8x128xf32>
    %c0_100 = arith.constant 0 : index
    %c0_101 = arith.constant 0 : index
    %c0_102 = arith.constant 0 : index
    %235 = vector.load %arg16[%c0_100, %c0_101, %c0_102] : memref<1x1x128xf32, #tpu.memory_space<vmem>>, vector<1x1x128xf32>
    %236 = vector.shape_cast %235 : vector<1x1x128xf32> to vector<1x128xf32>
    %237 = vector.broadcast %236 : vector<1x128xf32> to vector<8x128xf32>
    %238 = arith.addf %234, %237 : vector<8x128xf32>
    %239 = arith.addf %156, %238 : vector<8x128xf32>
    %c0_103 = arith.constant 0 : index
    %c0_104 = arith.constant 0 : index
    %c0_105 = arith.constant 0 : index
    %240 = vector.load %arg19[%c0_103, %c0_104, %c0_105] : memref<1x8x128xf32, #tpu.memory_space<vmem>>, vector<1x8x128xf32>
    %241 = vector.shape_cast %240 : vector<1x8x128xf32> to vector<8x128xf32>
    %242 = vector.shape_cast %239 : vector<8x128xf32> to vector<1x8x128xf32>
    tpu.vector_store %arg19[%c0_103, %c0_104, %c0_105], %242 {strides = array<i32>} : memref<1x8x128xf32, #tpu.memory_space<vmem>>, vector<1x8x128xf32>,
    %c1_i32 = arith.constant 1 : i32
    %243 = arith.cmpi eq, %arg1, %c1_i32 : i32
    %244 = arith.extui %243 : i1 to i32
    %c0_i32_106 = arith.constant 0 : i32
    %245 = arith.cmpi ne, %244, %c0_i32_106 : i32
    scf.if %245 {
      %c0_107 = arith.constant 0 : index
      %c0_108 = arith.constant 0 : index
      %246 = vector.load %arg17[%c0_107, %c0_108] : memref<1x128xf32, #tpu.memory_space<vmem>>, vector<1x128xf32>
      %c0_109 = arith.constant 0 : index
      %c0_110 = arith.constant 0 : index
      %247 = vector.load %arg18[%c0_109, %c0_110] : memref<1x128xf32, #tpu.memory_space<vmem>>, vector<1x128xf32>
      %cst_111 = arith.constant dense<0.000000e+00> : vector<8xf32>
      %248 = vector.multi_reduction <add>, %239, %cst_111 [1] : vector<8x128xf32> to vector<8xf32>
      %249 = vector.shape_cast %248 : vector<8xf32> to vector<8x1xf32>
      %cst_112 = arith.constant 3.125000e-02 : f32
      %250 = vector.broadcast %cst_112 : f32 to vector<8x1xf32>
      %251 = arith.mulf %249, %250 : vector<8x1xf32>
      %252 = vector.broadcast %251 : vector<8x1xf32> to vector<8x128xf32>
      %253 = arith.subf %239, %252 : vector<8x128xf32>
      %254 = vector.broadcast %4 : vector<1x128xf32> to vector<8x128xf32>
      %255 = arith.mulf %253, %254 : vector<8x128xf32>
      %256 = arith.mulf %255, %255 : vector<8x128xf32>
      %cst_113 = arith.constant dense<0.000000e+00> : vector<8xf32>
      %257 = vector.multi_reduction <add>, %256, %cst_113 [1] : vector<8x128xf32> to vector<8xf32>
      %258 = vector.shape_cast %257 : vector<8xf32> to vector<8x1xf32>
      %cst_114 = arith.constant 3.125000e-02 : f32
      %259 = vector.broadcast %cst_114 : f32 to vector<8x1xf32>
      %260 = arith.mulf %258, %259 : vector<8x1xf32>
      %cst_115 = arith.constant 9.99999997E-7 : f32
      %261 = vector.broadcast %cst_115 : f32 to vector<8x1xf32>
      %262 = arith.addf %260, %261 : vector<8x1xf32>
      %263 = math.rsqrt %262 : vector<8x1xf32>
      %264 = vector.broadcast %263 : vector<8x1xf32> to vector<8x128xf32>
      %265 = arith.mulf %255, %264 : vector<8x128xf32>
      %266 = vector.broadcast %246 : vector<1x128xf32> to vector<8x128xf32>
      %267 = arith.mulf %265, %266 : vector<8x128xf32>
      %268 = vector.broadcast %247 : vector<1x128xf32> to vector<8x128xf32>
      %269 = arith.addf %267, %268 : vector<8x128xf32>
      %c0_116 = arith.constant 0 : index
      %c0_117 = arith.constant 0 : index
      %c0_118 = arith.constant 0 : index
      %270 = vector.load %arg19[%c0_116, %c0_117, %c0_118] : memref<1x8x128xf32, #tpu.memory_space<vmem>>, vector<1x8x128xf32>
      %271 = vector.shape_cast %270 : vector<1x8x128xf32> to vector<8x128xf32>
      %272 = vector.shape_cast %269 : vector<8x128xf32> to vector<1x8x128xf32>
      tpu.vector_store %arg19[%c0_116, %c0_117, %c0_118], %272 {strides = array<i32>} : memref<1x8x128xf32, #tpu.memory_space<vmem>>, vector<1x8x128xf32>,
    } else {
    }
    return
  }
  func.func @transform_0(%arg0: i32, %arg1: i32) -> (i32, i32, i32) {
    %c0_i32 = arith.constant 0 : i32
    %c0_i32_0 = arith.constant 0 : i32
    %c0_i32_1 = arith.constant 0 : i32
    return %arg0, %c0_i32, %c0_i32_0 : i32, i32, i32
  }
  func.func @transform_1(%arg0: i32, %arg1: i32) -> (i32, i32) {
    %c0_i32 = arith.constant 0 : i32
    %c0_i32_0 = arith.constant 0 : i32
    %c0_i32_1 = arith.constant 0 : i32
    return %c0_i32, %c0_i32_0 : i32, i32
  }
  func.func @transform_2(%arg0: i32, %arg1: i32) -> (i32, i32) {
    %c0_i32 = arith.constant 0 : i32
    %c0_i32_0 = arith.constant 0 : i32
    %c0_i32_1 = arith.constant 0 : i32
    return %c0_i32, %c0_i32_0 : i32, i32
  }
  func.func @transform_3(%arg0: i32, %arg1: i32) -> (i32, i32, i32) {
    %c0_i32 = arith.constant 0 : i32
    %c0_i32_0 = arith.constant 0 : i32
    %c0_i32_1 = arith.constant 0 : i32
    return %arg1, %c0_i32, %c0_i32_0 : i32, i32, i32
  }
  func.func @transform_4(%arg0: i32, %arg1: i32) -> (i32, i32, i32) {
    %c0_i32 = arith.constant 0 : i32
    %c0_i32_0 = arith.constant 0 : i32
    %c0_i32_1 = arith.constant 0 : i32
    return %arg1, %c0_i32, %c0_i32_0 : i32, i32, i32
  }
  func.func @transform_5(%arg0: i32, %arg1: i32) -> (i32, i32, i32) {
    %c0_i32 = arith.constant 0 : i32
    %c0_i32_0 = arith.constant 0 : i32
    %c0_i32_1 = arith.constant 0 : i32
    return %arg1, %c0_i32, %c0_i32_0 : i32, i32, i32
  }
  func.func @transform_6(%arg0: i32, %arg1: i32) -> (i32, i32, i32) {
    %c0_i32 = arith.constant 0 : i32
    %c0_i32_0 = arith.constant 0 : i32
    %c0_i32_1 = arith.constant 0 : i32
    return %arg1, %c0_i32, %c0_i32_0 : i32, i32, i32
  }
  func.func @transform_7(%arg0: i32, %arg1: i32) -> (i32, i32, i32, i32) {
    %c0_i32 = arith.constant 0 : i32
    %c0_i32_0 = arith.constant 0 : i32
    %c0_i32_1 = arith.constant 0 : i32
    %c0_i32_2 = arith.constant 0 : i32
    return %arg1, %c0_i32, %c0_i32_0, %c0_i32_1 : i32, i32, i32, i32
  }
  func.func @transform_8(%arg0: i32, %arg1: i32) -> (i32, i32, i32) {
    %c0_i32 = arith.constant 0 : i32
    %c0_i32_0 = arith.constant 0 : i32
    %c0_i32_1 = arith.constant 0 : i32
    return %arg1, %c0_i32, %c0_i32_0 : i32, i32, i32
  }
  func.func @transform_9(%arg0: i32, %arg1: i32) -> (i32, i32, i32) {
    %c0_i32 = arith.constant 0 : i32
    %c0_i32_0 = arith.constant 0 : i32
    %c0_i32_1 = arith.constant 0 : i32
    return %arg1, %c0_i32, %c0_i32_0 : i32, i32, i32
  }
  func.func @transform_10(%arg0: i32, %arg1: i32) -> (i32, i32, i32) {
    %c0_i32 = arith.constant 0 : i32
    %c0_i32_0 = arith.constant 0 : i32
    %c0_i32_1 = arith.constant 0 : i32
    return %arg1, %c0_i32, %c0_i32_0 : i32, i32, i32
  }
  func.func @transform_11(%arg0: i32, %arg1: i32) -> (i32, i32, i32) {
    %c0_i32 = arith.constant 0 : i32
    %c0_i32_0 = arith.constant 0 : i32
    %c0_i32_1 = arith.constant 0 : i32
    return %arg1, %c0_i32, %c0_i32_0 : i32, i32, i32
  }
  func.func @transform_12(%arg0: i32, %arg1: i32) -> (i32, i32, i32) {
    %c0_i32 = arith.constant 0 : i32
    %c0_i32_0 = arith.constant 0 : i32
    %c0_i32_1 = arith.constant 0 : i32
    return %arg1, %c0_i32, %c0_i32_0 : i32, i32, i32
  }
  func.func @transform_13(%arg0: i32, %arg1: i32) -> (i32, i32, i32) {
    %c0_i32 = arith.constant 0 : i32
    %c0_i32_0 = arith.constant 0 : i32
    %c0_i32_1 = arith.constant 0 : i32
    return %arg1, %c0_i32, %c0_i32_0 : i32, i32, i32
  }
  func.func @transform_14(%arg0: i32, %arg1: i32) -> (i32, i32, i32) {
    %c0_i32 = arith.constant 0 : i32
    %c0_i32_0 = arith.constant 0 : i32
    %c0_i32_1 = arith.constant 0 : i32
    return %arg1, %c0_i32, %c0_i32_0 : i32, i32, i32
  }
  func.func @transform_15(%arg0: i32, %arg1: i32) -> (i32, i32) {
    %c0_i32 = arith.constant 0 : i32
    %c0_i32_0 = arith.constant 0 : i32
    %c0_i32_1 = arith.constant 0 : i32
    return %c0_i32, %c0_i32_0 : i32, i32
  }
  func.func @transform_16(%arg0: i32, %arg1: i32) -> (i32, i32) {
    %c0_i32 = arith.constant 0 : i32
    %c0_i32_0 = arith.constant 0 : i32
    %c0_i32_1 = arith.constant 0 : i32
    return %c0_i32, %c0_i32_0 : i32, i32
  }
  func.func @transform_17(%arg0: i32, %arg1: i32) -> (i32, i32, i32) {
    %c0_i32 = arith.constant 0 : i32
    %c0_i32_0 = arith.constant 0 : i32
    %c0_i32_1 = arith.constant 0 : i32
    return %arg0, %c0_i32, %c0_i32_0 : i32, i32, i32
  }
}

</mosaic_0001>

<llo_original>
// kernel: tpu_custom_call.1
$region0: #{tpu_custom_call.1}
  #allocation0 [shape = 'u32[]', space=smem, size = 0x4, offset = 0x4, fixed_abs, tag = 'smem constant byte address 0x4 - core index']
  #allocation1 [shape = 'u32[144,128]{1,0:T(1,128)}', space=vmem, size = 0x12000, scoped, tag = 'internal scratch']
  %s0 = inlined_call_operand.hbm [shape: bf16[2,8,768], index: 0, kind: input, shape index: {}]
  %s1 = inlined_call_operand.hbm [shape: bf16[768,128], index: 1, kind: input, shape index: {}]
  %s2 = inlined_call_operand.hbm [shape: f32[8,128], index: 2, kind: input, shape index: {}]
  %s3 = inlined_call_operand.vmem [shape: f32[2,1,128], index: 3, kind: input, shape index: {}]
  %s4 = inlined_call_operand.vmem [shape: f32[2,1,128], index: 4, kind: input, shape index: {}]
  %s5 = inlined_call_operand.hbm [shape: bf16[2,128,1536], index: 5, kind: input, shape index: {}]
  %s6 = inlined_call_operand.hbm [shape: f32[2,1,1536], index: 6, kind: input, shape index: {}]
  %s7 = inlined_call_operand.hbm [shape: bf16[2,4,128,128], index: 7, kind: input, shape index: {}]
  %s8 = inlined_call_operand.vmem [shape: f32[2,1,128], index: 8, kind: input, shape index: {}]
  %s9 = inlined_call_operand.vmem [shape: f32[2,1,128], index: 9, kind: input, shape index: {}]
  %s10 = inlined_call_operand.vmem [shape: f32[2,1,128], index: 10, kind: input, shape index: {}]
  %s11 = inlined_call_operand.hbm [shape: bf16[2,128,128], index: 11, kind: input, shape index: {}]
  %s12 = inlined_call_operand.vmem [shape: f32[2,1,128], index: 12, kind: input, shape index: {}]
  %s13 = inlined_call_operand.hbm [shape: bf16[2,128,128], index: 13, kind: input, shape index: {}]
  %s14 = inlined_call_operand.vmem [shape: f32[2,1,128], index: 14, kind: input, shape index: {}]
  %s15 = inlined_call_operand.vmem [shape: f32[1,128], index: 15, kind: input, shape index: {}]
  %s16 = inlined_call_operand.vmem [shape: f32[1,128], index: 16, kind: input, shape index: {}]
  %s17 = inlined_call_operand.hbm [shape: f32[2,8,128], index: 17, kind: output, shape index: {}]
  %s18 = sld [smem:[#allocation0]]
  $region141: #{tpu_custom_call.1} parent=0
    _
  %s20 = ssub.s32 1, %s18
  %s21 = scalar_select 0, %s20, %s18
  $region1: #{tpu_custom_call.1} parent=0
    #allocation2 [shape = 'u8[24576]{0}', space=vmem, size = 0x6000, scoped, tag = 'input window, operand 0']
    #allocation3 [shape = 's32[2]{0}', space=sflag, size = 0x8, scoped, tag = 'scoped memory for tpu_custom_call.1']
    #allocation4 [shape = 's32[2]{0}', space=sflag, size = 0x8, scoped, tag = 'scoped memory for tpu_custom_call.1']
    #allocation5 [shape = 'u8[196608]{0}', space=vmem, size = 0x30000, scoped, tag = 'input window, operand 1, single buffered']
    #allocation6 [shape = 's32[1]{0}', space=sflag, size = 0x4, scoped, tag = 'scoped memory for tpu_custom_call.1']
    #allocation7 [shape = 'u8[4096]{0}', space=vmem, size = 0x1000, scoped, tag = 'input window, operand 2, single buffered']
    #allocation8 [shape = 'u8[786432]{0}', space=vmem, size = 0xc0000, scoped, tag = 'input window, operand 5']
    #allocation9 [shape = 's32[2]{0}', space=sflag, size = 0x8, scoped, tag = 'scoped memory for tpu_custom_call.1']
    #allocation10 [shape = 'u8[12288]{0}', space=vmem, size = 0x3000, scoped, tag = 'input window, operand 6']
    #allocation11 [shape = 'u8[262144]{0}', space=vmem, size = 0x40000, scoped, tag = 'input window, operand 7']
    #allocation12 [shape = 's32[2]{0}', space=sflag, size = 0x8, scoped, tag = 'scoped memory for tpu_custom_call.1']
    #allocation13 [shape = 'u8[65536]{0}', space=vmem, size = 0x10000, scoped, tag = 'input window, operand 11']
    #allocation14 [shape = 'u8[65536]{0}', space=vmem, size = 0x10000, scoped, tag = 'input window, operand 13']
    #allocation15 [shape = 's32[2]{0}', space=sflag, size = 0x8, scoped, tag = 'scoped memory for tpu_custom_call.1']
    #allocation16 [shape = 'u8[8192]{0}', space=vmem, size = 0x2000, scoped, tag = 'output window, operand 0']
    %22 = vsyncpa [#allocation3], 0
    %s23 = scalar_lea.sflag [#allocation3], 1
    %24 = vsyncpa %s23, 0
    %25 = vsyncpa [#allocation6], 0
    %26 = vsyncpa [#allocation9], 0
    %s27 = scalar_lea.sflag [#allocation9], 1
    %28 = vsyncpa %s27, 0
    %29 = vsyncpa [#allocation12], 0
    %s30 = scalar_lea.sflag [#allocation12], 1
    %31 = vsyncpa %s30, 0
    %32 = vsyncpa [#allocation15], 0
    %s33 = scalar_lea.sflag [#allocation15], 1
    %34 = vsyncpa %s33, 0
    %35 = vsyncpa [#allocation4], 0
    %s36 = scalar_lea.sflag [#allocation4], 1
    %37 = vsyncpa %s36, 0
    loop: start=0, step=1, limit=6
    $region2: #{tpu_custom_call.1} parent=1 // loop_pre_header
      _
    $region3: #{tpu_custom_call.1} parent=1 // loop_header
      %s39 = sphi 0, %s43
      %p40 = scmp.ge.s32.totalorder %s39, 6
      %s46 = sphi 0, %s58
      %s47 = sphi 0, %s54
      %s48 = sphi 0, %s46
      %s49 = sphi 0, %s47
      %s50 = sphi 0, %s48
      %s51 = sphi 0, %s49
      %s61 = sphi 0, %s63
      %s64 = sphi 0, %s61
      %s65 = sphi 0, %s64
      %s81 = sphi 0, %s65
      %s85 = sphi 0, %s85
      %s87 = sphi 0, %s85
      %s88 = sphi 0, %s87
      %s102 = sphi 0, %s88
      %s106 = sphi 0, %s106
      %s108 = sphi 0, %s106
      %s109 = sphi 0, %s108
      %s123 = sphi 0, %s109
      %s129 = sphi 0, %s131
      %s132 = sphi 0, %s129
      %s133 = sphi 0, %s132
      %s149 = sphi 0, %s133
      %s155 = sphi 0, %s157
      %s158 = sphi 0, %s155
      %s159 = sphi 0, %s158
      %s175 = sphi 0, %s159
      %s181 = sphi 0, %s183
      %s184 = sphi 0, %s181
      %s185 = sphi 0, %s184
      %s201 = sphi 0, %s185
      %s207 = sphi 0, %s209
      %s210 = sphi 0, %s207
      %s211 = sphi 0, %s210
      %s227 = sphi 0, %s211
      %s233 = sphi 0, %s235
      %s236 = sphi 0, %s233
      %s237 = sphi 0, %s236
      %s253 = sphi 0, %s237
      %s259 = sphi 0, %s261
      %s262 = sphi 0, %s259
      %s263 = sphi 0, %s262
      %s279 = sphi 0, %s263
      %s285 = sphi 0, %s287
      %s288 = sphi 0, %s285
      %s289 = sphi 0, %s288
      %s305 = sphi 0, %s289
      %s311 = sphi 0, %s313
      %s314 = sphi 0, %s311
      %s315 = sphi 0, %s314
      %s331 = sphi 0, %s315
      %s337 = sphi 0, %s339
      %s340 = sphi 0, %s337
      %s341 = sphi 0, %s340
      %s357 = sphi 0, %s341
      %s363 = sphi 0, %s365
      %s366 = sphi 0, %s363
      %s367 = sphi 0, %s366
      %s383 = sphi 0, %s367
      %s389 = sphi 0, %s391
      %s392 = sphi 0, %s389
      %s393 = sphi 0, %s392
      %s409 = sphi 0, %s393
      %s415 = sphi 0, %s417
      %s418 = sphi 0, %s415
      %s419 = sphi 0, %s418
      %s435 = sphi 0, %s419
      %s439 = sphi 0, %s439
      %s441 = sphi 0, %s439
      %s442 = sphi 0, %s441
      %s456 = sphi 0, %s442
      %s460 = sphi 0, %s460
      %s462 = sphi 0, %s460
      %s463 = sphi 0, %s462
      %s477 = sphi 0, %s463
      %s483 = sphi 0, %s485
      %s486 = sphi 0, %s483
      %s487 = sphi 0, %s486
      %s503 = sphi 0, %s487
    $region4: #{tpu_custom_call.1} parent=1 // loop_header_branch
      %42 = sbr.rel (%p40) target = $region8
    $region5: #{tpu_custom_call.1} parent=1 // loop_body
      %s44 = ssub.s32 %s39, 1
      %s45 = ssub.s32 %s39, 2
      %s52 = sadd.s32 1, %s47
      %p53 = scmp.ge.s32.totalorder %s52, 2
      %s54 = scalar_select %p53, 0, %s52
      %s55 = sadd.s32 1, %s46
      %s56 = scalar_select %p53, %s55, %s46
      %p57 = scmp.ge.s32.totalorder %s56, 2
      %s58 = scalar_select %p57, 0, %s56
      %s59 = ssub.s32 %s46, %s58
      %p60 = scmp.eq.s32.totalorder %s59, 0
      %s62 = sadd.s32 %s61, 1
      %s63 = scalar_select %p60, %s61, %s62
      %p66 = pneg %p60
      %p67 = scmp.eq.s32.totalorder %s39, 3
      %p68 = por %p66, %p67
      %p69 = scmp.ne.s32.totalorder %s61, %s64
      %p70 = scmp.eq.s32.totalorder %s39, 0
      %p71 = por %p69, %p70
      %p72 = scmp.ne.s32.totalorder %s61, %s64
      %p73 = scmp.eq.s32.totalorder %s44, 3
      %p74 = por %p72, %p73
      %p75 = scmp.ne.s32.totalorder %s64, %s65
      %p76 = scmp.eq.s32.totalorder %s44, 0
      %p77 = por %p75, %p76
      %p78 = scmp.ne.s32.totalorder %s64, %s65
      %p79 = scmp.eq.s32.totalorder %s45, 3
      %p80 = por %p78, %p79
      %p82 = scmp.ne.s32.totalorder %s65, %s81
      %p83 = scmp.eq.s32.totalorder %s45, 0
      %p84 = por %p82, %p83
      %s86 = sadd.s32 %s85, 1
      %p89 = scmp.eq.s32.totalorder %s39, 3
      %p90 = scmp.ne.s32.totalorder %s85, %s87
      %p91 = scmp.eq.s32.totalorder %s39, 0
      %p92 = por %p90, %p91
      %p93 = scmp.ne.s32.totalorder %s85, %s87
      %p94 = scmp.eq.s32.totalorder %s44, 3
      %p95 = por %p93, %p94
      %p96 = scmp.ne.s32.totalorder %s87, %s88
      %p97 = scmp.eq.s32.totalorder %s44, 0
      %p98 = por %p96, %p97
      %p99 = scmp.ne.s32.totalorder %s87, %s88
      %p100 = scmp.eq.s32.totalorder %s45, 3
      %p101 = por %p99, %p100
      %p103 = scmp.ne.s32.totalorder %s88, %s102
      %p104 = scmp.eq.s32.totalorder %s45, 0
      %p105 = por %p103, %p104
      %s107 = sadd.s32 %s106, 1
      %p110 = scmp.eq.s32.totalorder %s39, 3
      %p111 = scmp.ne.s32.totalorder %s106, %s108
      %p112 = scmp.eq.s32.totalorder %s39, 0
      %p113 = por %p111, %p112
      %p114 = scmp.ne.s32.totalorder %s106, %s108
      %p115 = scmp.eq.s32.totalorder %s44, 3
      %p116 = por %p114, %p115
      %p117 = scmp.ne.s32.totalorder %s108, %s109
      %p118 = scmp.eq.s32.totalorder %s44, 0
      %p119 = por %p117, %p118
      %p120 = scmp.ne.s32.totalorder %s108, %s109
      %p121 = scmp.eq.s32.totalorder %s45, 3
      %p122 = por %p120, %p121
      %p124 = scmp.ne.s32.totalorder %s109, %s123
      %p125 = scmp.eq.s32.totalorder %s45, 0
      %p126 = por %p124, %p125
      %s127 = ssub.s32 %s47, %s54
      %p128 = scmp.eq.s32.totalorder %s127, 0
      %s130 = sadd.s32 %s129, 1
      %s131 = scalar_select %p128, %s129, %s130
      %p134 = pneg %p128
      %p135 = scmp.eq.s32.totalorder %s39, 3
      %p136 = por %p134, %p135
      %p137 = scmp.ne.s32.totalorder %s129, %s132
      %p138 = scmp.eq.s32.totalorder %s39, 0
      %p139 = por %p137, %p138
      %p140 = scmp.ne.s32.totalorder %s129, %s132
      %p141 = scmp.eq.s32.totalorder %s44, 3
      %p142 = por %p140, %p141
      %p143 = scmp.ne.s32.totalorder %s132, %s133
      %p144 = scmp.eq.s32.totalorder %s44, 0
      %p145 = por %p143, %p144
      %p146 = scmp.ne.s32.totalorder %s132, %s133
      %p147 = scmp.eq.s32.totalorder %s45, 3
      %p148 = por %p146, %p147
      %p150 = scmp.ne.s32.totalorder %s133, %s149
      %p151 = scmp.eq.s32.totalorder %s45, 0
      %p152 = por %p150, %p151
      %s153 = ssub.s32 %s47, %s54
      %p154 = scmp.eq.s32.totalorder %s153, 0
      %s156 = sadd.s32 %s155, 1
      %s157 = scalar_select %p154, %s155, %s156
      %p160 = pneg %p154
      %p161 = scmp.eq.s32.totalorder %s39, 3
      %p162 = por %p160, %p161
      %p163 = scmp.ne.s32.totalorder %s155, %s158
      %p164 = scmp.eq.s32.totalorder %s39, 0
      %p165 = por %p163, %p164
      %p166 = scmp.ne.s32.totalorder %s155, %s158
      %p167 = scmp.eq.s32.totalorder %s44, 3
      %p168 = por %p166, %p167
      %p169 = scmp.ne.s32.totalorder %s158, %s159
      %p170 = scmp.eq.s32.totalorder %s44, 0
      %p171 = por %p169, %p170
      %p172 = scmp.ne.s32.totalorder %s158, %s159
      %p173 = scmp.eq.s32.totalorder %s45, 3
      %p174 = por %p172, %p173
      %p176 = scmp.ne.s32.totalorder %s159, %s175
      %p177 = scmp.eq.s32.totalorder %s45, 0
      %p178 = por %p176, %p177
      %s179 = ssub.s32 %s47, %s54
      %p180 = scmp.eq.s32.totalorder %s179, 0
      %s182 = sadd.s32 %s181, 1
      %s183 = scalar_select %p180, %s181, %s182
      %p186 = pneg %p180
      %p187 = scmp.eq.s32.totalorder %s39, 3
      %p188 = por %p186, %p187
      %p189 = scmp.ne.s32.totalorder %s181, %s184
      %p190 = scmp.eq.s32.totalorder %s39, 0
      %p191 = por %p189, %p190
      %p192 = scmp.ne.s32.totalorder %s181, %s184
      %p193 = scmp.eq.s32.totalorder %s44, 3
      %p194 = por %p192, %p193
      %p195 = scmp.ne.s32.totalorder %s184, %s185
      %p196 = scmp.eq.s32.totalorder %s44, 0
      %p197 = por %p195, %p196
      %p198 = scmp.ne.s32.totalorder %s184, %s185
      %p199 = scmp.eq.s32.totalorder %s45, 3
      %p200 = por %p198, %p199
      %p202 = scmp.ne.s32.totalorder %s185, %s201
      %p203 = scmp.eq.s32.totalorder %s45, 0
      %p204 = por %p202, %p203
      %s205 = ssub.s32 %s47, %s54
      %p206 = scmp.eq.s32.totalorder %s205, 0
      %s208 = sadd.s32 %s207, 1
      %s209 = scalar_select %p206, %s207, %s208
      %p212 = pneg %p206
      %p213 = scmp.eq.s32.totalorder %s39, 3
      %p214 = por %p212, %p213
      %p215 = scmp.ne.s32.totalorder %s207, %s210
      %p216 = scmp.eq.s32.totalorder %s39, 0
      %p217 = por %p215, %p216
      %p218 = scmp.ne.s32.totalorder %s207, %s210
      %p219 = scmp.eq.s32.totalorder %s44, 3
      %p220 = por %p218, %p219
      %p221 = scmp.ne.s32.totalorder %s210, %s211
      %p222 = scmp.eq.s32.totalorder %s44, 0
      %p223 = por %p221, %p222
      %p224 = scmp.ne.s32.totalorder %s210, %s211
      %p225 = scmp.eq.s32.totalorder %s45, 3
      %p226 = por %p224, %p225
      %p228 = scmp.ne.s32.totalorder %s211, %s227
      %p229 = scmp.eq.s32.totalorder %s45, 0
      %p230 = por %p228, %p229
      %s231 = ssub.s32 %s47, %s54
      %p232 = scmp.eq.s32.totalorder %s231, 0
      %s234 = sadd.s32 %s233, 1
      %s235 = scalar_select %p232, %s233, %s234
      %p238 = pneg %p232
      %p239 = scmp.eq.s32.totalorder %s39, 3
      %p240 = por %p238, %p239
      %p241 = scmp.ne.s32.totalorder %s233, %s236
      %p242 = scmp.eq.s32.totalorder %s39, 0
      %p243 = por %p241, %p242
      %p244 = scmp.ne.s32.totalorder %s233, %s236
      %p245 = scmp.eq.s32.totalorder %s44, 3
      %p246 = por %p244, %p245
      %p247 = scmp.ne.s32.totalorder %s236, %s237
      %p248 = scmp.eq.s32.totalorder %s44, 0
      %p249 = por %p247, %p248
      %p250 = scmp.ne.s32.totalorder %s236, %s237
      %p251 = scmp.eq.s32.totalorder %s45, 3
      %p252 = por %p250, %p251
      %p254 = scmp.ne.s32.totalorder %s237, %s253
      %p255 = scmp.eq.s32.totalorder %s45, 0
      %p256 = por %p254, %p255
      %s257 = ssub.s32 %s47, %s54
      %p258 = scmp.eq.s32.totalorder %s257, 0
      %s260 = sadd.s32 %s259, 1
      %s261 = scalar_select %p258, %s259, %s260
      %p264 = pneg %p258
      %p265 = scmp.eq.s32.totalorder %s39, 3
      %p266 = por %p264, %p265
      %p267 = scmp.ne.s32.totalorder %s259, %s262
      %p268 = scmp.eq.s32.totalorder %s39, 0
      %p269 = por %p267, %p268
      %p270 = scmp.ne.s32.totalorder %s259, %s262
      %p271 = scmp.eq.s32.totalorder %s44, 3
      %p272 = por %p270, %p271
      %p273 = scmp.ne.s32.totalorder %s262, %s263
      %p274 = scmp.eq.s32.totalorder %s44, 0
      %p275 = por %p273, %p274
      %p276 = scmp.ne.s32.totalorder %s262, %s263
      %p277 = scmp.eq.s32.totalorder %s45, 3
      %p278 = por %p276, %p277
      %p280 = scmp.ne.s32.totalorder %s263, %s279
      %p281 = scmp.eq.s32.totalorder %s45, 0
      %p282 = por %p280, %p281
      %s283 = ssub.s32 %s47, %s54
      %p284 = scmp.eq.s32.totalorder %s283, 0
      %s286 = sadd.s32 %s285, 1
      %s287 = scalar_select %p284, %s285, %s286
      %p290 = pneg %p284
      %p291 = scmp.eq.s32.totalorder %s39, 3
      %p292 = por %p290, %p291
      %p293 = scmp.ne.s32.totalorder %s285, %s288
      %p294 = scmp.eq.s32.totalorder %s39, 0
      %p295 = por %p293, %p294
      %p296 = scmp.ne.s32.totalorder %s285, %s288
      %p297 = scmp.eq.s32.totalorder %s44, 3
      %p298 = por %p296, %p297
      %p299 = scmp.ne.s32.totalorder %s288, %s289
      %p300 = scmp.eq.s32.totalorder %s44, 0
      %p301 = por %p299, %p300
      %p302 = scmp.ne.s32.totalorder %s288, %s289
      %p303 = scmp.eq.s32.totalorder %s45, 3
      %p304 = por %p302, %p303
      %p306 = scmp.ne.s32.totalorder %s289, %s305
      %p307 = scmp.eq.s32.totalorder %s45, 0
      %p308 = por %p306, %p307
      %s309 = ssub.s32 %s47, %s54
      %p310 = scmp.eq.s32.totalorder %s309, 0
      %s312 = sadd.s32 %s311, 1
      %s313 = scalar_select %p310, %s311, %s312
      %p316 = pneg %p310
      %p317 = scmp.eq.s32.totalorder %s39, 3
      %p318 = por %p316, %p317
      %p319 = scmp.ne.s32.totalorder %s311, %s314
      %p320 = scmp.eq.s32.totalorder %s39, 0
      %p321 = por %p319, %p320
      %p322 = scmp.ne.s32.totalorder %s311, %s314
      %p323 = scmp.eq.s32.totalorder %s44, 3
      %p324 = por %p322, %p323
      %p325 = scmp.ne.s32.totalorder %s314, %s315
      %p326 = scmp.eq.s32.totalorder %s44, 0
      %p327 = por %p325, %p326
      %p328 = scmp.ne.s32.totalorder %s314, %s315
      %p329 = scmp.eq.s32.totalorder %s45, 3
      %p330 = por %p328, %p329
      %p332 = scmp.ne.s32.totalorder %s315, %s331
      %p333 = scmp.eq.s32.totalorder %s45, 0
      %p334 = por %p332, %p333
      %s335 = ssub.s32 %s47, %s54
      %p336 = scmp.eq.s32.totalorder %s335, 0
      %s338 = sadd.s32 %s337, 1
      %s339 = scalar_select %p336, %s337, %s338
      %p342 = pneg %p336
      %p343 = scmp.eq.s32.totalorder %s39, 3
      %p344 = por %p342, %p343
      %p345 = scmp.ne.s32.totalorder %s337, %s340
      %p346 = scmp.eq.s32.totalorder %s39, 0
      %p347 = por %p345, %p346
      %p348 = scmp.ne.s32.totalorder %s337, %s340
      %p349 = scmp.eq.s32.totalorder %s44, 3
      %p350 = por %p348, %p349
      %p351 = scmp.ne.s32.totalorder %s340, %s341
      %p352 = scmp.eq.s32.totalorder %s44, 0
      %p353 = por %p351, %p352
      %p354 = scmp.ne.s32.totalorder %s340, %s341
      %p355 = scmp.eq.s32.totalorder %s45, 3
      %p356 = por %p354, %p355
      %p358 = scmp.ne.s32.totalorder %s341, %s357
      %p359 = scmp.eq.s32.totalorder %s45, 0
      %p360 = por %p358, %p359
      %s361 = ssub.s32 %s47, %s54
      %p362 = scmp.eq.s32.totalorder %s361, 0
      %s364 = sadd.s32 %s363, 1
      %s365 = scalar_select %p362, %s363, %s364
      %p368 = pneg %p362
      %p369 = scmp.eq.s32.totalorder %s39, 3
      %p370 = por %p368, %p369
      %p371 = scmp.ne.s32.totalorder %s363, %s366
      %p372 = scmp.eq.s32.totalorder %s39, 0
      %p373 = por %p371, %p372
      %p374 = scmp.ne.s32.totalorder %s363, %s366
      %p375 = scmp.eq.s32.totalorder %s44, 3
      %p376 = por %p374, %p375
      %p377 = scmp.ne.s32.totalorder %s366, %s367
      %p378 = scmp.eq.s32.totalorder %s44, 0
      %p379 = por %p377, %p378
      %p380 = scmp.ne.s32.totalorder %s366, %s367
      %p381 = scmp.eq.s32.totalorder %s45, 3
      %p382 = por %p380, %p381
      %p384 = scmp.ne.s32.totalorder %s367, %s383
      %p385 = scmp.eq.s32.totalorder %s45, 0
      %p386 = por %p384, %p385
      %s387 = ssub.s32 %s47, %s54
      %p388 = scmp.eq.s32.totalorder %s387, 0
      %s390 = sadd.s32 %s389, 1
      %s391 = scalar_select %p388, %s389, %s390
      %p394 = pneg %p388
      %p395 = scmp.eq.s32.totalorder %s39, 3
      %p396 = por %p394, %p395
      %p397 = scmp.ne.s32.totalorder %s389, %s392
      %p398 = scmp.eq.s32.totalorder %s39, 0
      %p399 = por %p397, %p398
      %p400 = scmp.ne.s32.totalorder %s389, %s392
      %p401 = scmp.eq.s32.totalorder %s44, 3
      %p402 = por %p400, %p401
      %p403 = scmp.ne.s32.totalorder %s392, %s393
      %p404 = scmp.eq.s32.totalorder %s44, 0
      %p405 = por %p403, %p404
      %p406 = scmp.ne.s32.totalorder %s392, %s393
      %p407 = scmp.eq.s32.totalorder %s45, 3
      %p408 = por %p406, %p407
      %p410 = scmp.ne.s32.totalorder %s393, %s409
      %p411 = scmp.eq.s32.totalorder %s45, 0
      %p412 = por %p410, %p411
      %s413 = ssub.s32 %s47, %s54
      %p414 = scmp.eq.s32.totalorder %s413, 0
      %s416 = sadd.s32 %s415, 1
      %s417 = scalar_select %p414, %s415, %s416
      %p420 = pneg %p414
      %p421 = scmp.eq.s32.totalorder %s39, 3
      %p422 = por %p420, %p421
      %p423 = scmp.ne.s32.totalorder %s415, %s418
      %p424 = scmp.eq.s32.totalorder %s39, 0
      %p425 = por %p423, %p424
      %p426 = scmp.ne.s32.totalorder %s415, %s418
      %p427 = scmp.eq.s32.totalorder %s44, 3
      %p428 = por %p426, %p427
      %p429 = scmp.ne.s32.totalorder %s418, %s419
      %p430 = scmp.eq.s32.totalorder %s44, 0
      %p431 = por %p429, %p430
      %p432 = scmp.ne.s32.totalorder %s418, %s419
      %p433 = scmp.eq.s32.totalorder %s45, 3
      %p434 = por %p432, %p433
      %p436 = scmp.ne.s32.totalorder %s419, %s435
      %p437 = scmp.eq.s32.totalorder %s45, 0
      %p438 = por %p436, %p437
      %s440 = sadd.s32 %s439, 1
      %p443 = scmp.eq.s32.totalorder %s39, 3
      %p444 = scmp.ne.s32.totalorder %s439, %s441
      %p445 = scmp.eq.s32.totalorder %s39, 0
      %p446 = por %p444, %p445
      %p447 = scmp.ne.s32.totalorder %s439, %s441
      %p448 = scmp.eq.s32.totalorder %s44, 3
      %p449 = por %p447, %p448
      %p450 = scmp.ne.s32.totalorder %s441, %s442
      %p451 = scmp.eq.s32.totalorder %s44, 0
      %p452 = por %p450, %p451
      %p453 = scmp.ne.s32.totalorder %s441, %s442
      %p454 = scmp.eq.s32.totalorder %s45, 3
      %p455 = por %p453, %p454
      %p457 = scmp.ne.s32.totalorder %s442, %s456
      %p458 = scmp.eq.s32.totalorder %s45, 0
      %p459 = por %p457, %p458
      %s461 = sadd.s32 %s460, 1
      %p464 = scmp.eq.s32.totalorder %s39, 3
      %p465 = scmp.ne.s32.totalorder %s460, %s462
      %p466 = scmp.eq.s32.totalorder %s39, 0
      %p467 = por %p465, %p466
      %p468 = scmp.ne.s32.totalorder %s460, %s462
      %p469 = scmp.eq.s32.totalorder %s44, 3
      %p470 = por %p468, %p469
      %p471 = scmp.ne.s32.totalorder %s462, %s463
      %p472 = scmp.eq.s32.totalorder %s44, 0
      %p473 = por %p471, %p472
      %p474 = scmp.ne.s32.totalorder %s462, %s463
      %p475 = scmp.eq.s32.totalorder %s45, 3
      %p476 = por %p474, %p475
      %p478 = scmp.ne.s32.totalorder %s463, %s477
      %p479 = scmp.eq.s32.totalorder %s45, 0
      %p480 = por %p478, %p479
      %s481 = ssub.s32 %s46, %s58
      %p482 = scmp.eq.s32.totalorder %s481, 0
      %s484 = sadd.s32 %s483, 1
      %s485 = scalar_select %p482, %s483, %s484
      %p488 = pneg %p482
      %p489 = scmp.eq.s32.totalorder %s39, 3
      %p490 = por %p488, %p489
      %p491 = scmp.ne.s32.totalorder %s483, %s486
      %p492 = scmp.eq.s32.totalorder %s39, 0
      %p493 = por %p491, %p492
      %p494 = scmp.ne.s32.totalorder %s483, %s486
      %p495 = scmp.eq.s32.totalorder %s44, 3
      %p496 = por %p494, %p495
      %p497 = scmp.ne.s32.totalorder %s486, %s487
      %p498 = scmp.eq.s32.totalorder %s44, 0
      %p499 = por %p497, %p498
      %p500 = scmp.ne.s32.totalorder %s486, %s487
      %p501 = scmp.eq.s32.totalorder %s45, 3
      %p502 = por %p500, %p501
      %p504 = scmp.ne.s32.totalorder %s487, %s503
      %p505 = scmp.eq.s32.totalorder %s45, 0
      %p506 = por %p504, %p505
      %p507 = scmp.le.s32.totalorder 1, %s39
      %p508 = scmp.lt.s32.totalorder %s39, 5
      %p509 = pnand %p507, %p508
      %p510 = pneg %p509
      // Predicated region
      $region9: #{tpu_custom_call.1} parent=5 // pred_check
        _
      $region10: #{tpu_custom_call.1} parent=5 // pred_check_branch
        %512 = sbr.rel (%p509) target = $region12
      $region11: #{tpu_custom_call.1} parent=5 // pred_region
        %s513 = ssub.s32 %s39, 1
        // Predicated region
        $region13: #{tpu_custom_call.1} parent=11 // pred_check
          %p514 = pneg %p98
        $region14: #{tpu_custom_call.1} parent=11 // pred_check_branch
          %516 = sbr.rel (%p514) target = $region16
        $region15: #{tpu_custom_call.1} parent=11 // pred_region
          %s518 = ssub.s32 6144, 6144
          %519 = vsyncadd [#allocation6], %s518
          %s520 = sshll.u32 [#allocation5], 4
          %s521 = int_to_ptr.vmem [resolvable:$true] %s520
          %526 = dma.hbm_to_vmem [thread:$0]  %s1, 6144, %s521, [#allocation6], 64, 64, 4
        $region16: #{tpu_custom_call.1} parent=11 // pred_fallthru
          _
        // Predicated region
        $region17: #{tpu_custom_call.1} parent=11 // pred_check
          %p527 = pneg %p119
        $region18: #{tpu_custom_call.1} parent=11 // pred_check_branch
          %529 = sbr.rel (%p527) target = $region20
        $region19: #{tpu_custom_call.1} parent=11 // pred_region
          %s531 = ssub.s32 128, 128
          %532 = vsyncadd [#allocation6], %s531
          %s534 = sshll.u32 [#allocation7], 4
          %s535 = int_to_ptr.vmem [resolvable:$true] %s534
          %537 = dma.hbm_to_vmem [thread:$0]  %s2, 128, %s535, [#allocation6]
        $region20: #{tpu_custom_call.1} parent=11 // pred_fallthru
          _
        // Predicated region
        $region21: #{tpu_custom_call.1} parent=11 // pred_check
          %p538 = pneg %p452
        $region22: #{tpu_custom_call.1} parent=11 // pred_check_branch
          %540 = sbr.rel (%p538) target = $region24
        $region23: #{tpu_custom_call.1} parent=11 // pred_region
          _
        $region24: #{tpu_custom_call.1} parent=11 // pred_fallthru
          _
        // Predicated region
        $region25: #{tpu_custom_call.1} parent=11 // pred_check
          %p541 = pneg %p473
        $region26: #{tpu_custom_call.1} parent=11 // pred_check_branch
          %543 = sbr.rel (%p541) target = $region28
        $region27: #{tpu_custom_call.1} parent=11 // pred_region
          _
        $region28: #{tpu_custom_call.1} parent=11 // pred_fallthru
          _
      $region12: #{tpu_custom_call.1} parent=5 // pred_fallthru
        _
      %p544 = scmp.lt.s32.totalorder %s39, 4
      // Predicated region
      $region29: #{tpu_custom_call.1} parent=5 // pred_check
        %p545 = pneg %p544
      $region30: #{tpu_custom_call.1} parent=5 // pred_check_branch
        %547 = sbr.rel (%p545) target = $region32
      $region31: #{tpu_custom_call.1} parent=5 // pred_region
        // Predicated region
        $region33: #{tpu_custom_call.1} parent=31 // pred_check
          %p548 = pneg %p71
        $region34: #{tpu_custom_call.1} parent=31 // pred_check_branch
          %550 = sbr.rel (%p548) target = $region36
        $region35: #{tpu_custom_call.1} parent=31 // pred_region
          %s551 = sand.u32 %s61, 1
          %s552 = scalar_lea.sflag [#allocation3], %s551
          %s553 = sand.u32 %s61, 1
          %s554 = smul.addr %s553, 24
          %s555 = scalar_lea.vmem [#allocation2], %s554
          %s557 = ssub.s32 384, 384
          %558 = vsyncadd %s552, %s557
          %s559 = smul.addr %s46, 6
          %s560 = smul.addr %s559, 64
          %s561 = scalar_lea.hbm %s0, %s560
          %s563 = sshll.u32 %s555, 4
          %s564 = int_to_ptr.vmem [resolvable:$true] %s563
          %566 = dma.hbm_to_vmem [thread:$0]  %s561, 384, %s564, %s552
        $region36: #{tpu_custom_call.1} parent=31 // pred_fallthru
          _
        // Predicated region
        $region37: #{tpu_custom_call.1} parent=31 // pred_check
          %p567 = pneg %p139
        $region38: #{tpu_custom_call.1} parent=31 // pred_check_branch
          %569 = sbr.rel (%p567) target = $region40
        $region39: #{tpu_custom_call.1} parent=31 // pred_region
          %p570 = scmp.lt.s32.totalorder %s47, 1
          %s571 = scalar_select %p570, %s47, 1
          %s572 = scalar_lea.vmem %s3, %s571
        $region40: #{tpu_custom_call.1} parent=31 // pred_fallthru
          _
        // Predicated region
        $region41: #{tpu_custom_call.1} parent=31 // pred_check
          %p573 = pneg %p165
        $region42: #{tpu_custom_call.1} parent=31 // pred_check_branch
          %575 = sbr.rel (%p573) target = $region44
        $region43: #{tpu_custom_call.1} parent=31 // pred_region
          %p576 = scmp.lt.s32.totalorder %s47, 1
          %s577 = scalar_select %p576, %s47, 1
          %s578 = scalar_lea.vmem %s4, %s577
        $region44: #{tpu_custom_call.1} parent=31 // pred_fallthru
          _
        // Predicated region
        $region45: #{tpu_custom_call.1} parent=31 // pred_check
          %p579 = pneg %p191
        $region46: #{tpu_custom_call.1} parent=31 // pred_check_branch
          %581 = sbr.rel (%p579) target = $region48
        $region47: #{tpu_custom_call.1} parent=31 // pred_region
          %s582 = sand.u32 %s39, 1
          %s583 = scalar_lea.sflag [#allocation9], %s582
          %s584 = sand.u32 %s181, 1
          %s585 = smul.addr %s584, 768
          %s586 = scalar_lea.vmem [#allocation8], %s585
          %s588 = ssub.s32 12288, 12288
          %589 = vsyncadd %s583, %s588
          %s590 = smul.addr %s47, 192
          %s591 = smul.addr %s590, 64
          %s592 = scalar_lea.hbm %s5, %s591
          %s593 = sshll.u32 %s586, 4
          %s594 = int_to_ptr.vmem [resolvable:$true] %s593
          %599 = dma.hbm_to_vmem [thread:$0]  %s592, 12288, %s594, %s583, 768, 768, 48
        $region48: #{tpu_custom_call.1} parent=31 // pred_fallthru
          _
        // Predicated region
        $region49: #{tpu_custom_call.1} parent=31 // pred_check
          %p600 = pneg %p217
        $region50: #{tpu_custom_call.1} parent=31 // pred_check_branch
          %602 = sbr.rel (%p600) target = $region52
        $region51: #{tpu_custom_call.1} parent=31 // pred_region
          %s603 = sand.u32 %s39, 1
          %s604 = scalar_lea.sflag [#allocation9], %s603
          %s605 = sand.u32 %s207, 1
          %s606 = smul.addr %s605, 12
          %s607 = scalar_lea.vmem [#allocation10], %s606
          %s609 = ssub.s32 192, 192
          %610 = vsyncadd %s604, %s609
          %s611 = smul.addr %s47, 12
          %s612 = smul.addr %s611, 16
          %s613 = scalar_lea.hbm %s6, %s612
          %s615 = sshll.u32 %s607, 4
          %s616 = int_to_ptr.vmem [resolvable:$true] %s615
          %618 = dma.hbm_to_vmem [thread:$0]  %s613, 192, %s616, %s604
        $region52: #{tpu_custom_call.1} parent=31 // pred_fallthru
          _
        // Predicated region
        $region53: #{tpu_custom_call.1} parent=31 // pred_check
          %p619 = pneg %p243
        $region54: #{tpu_custom_call.1} parent=31 // pred_check_branch
          %621 = sbr.rel (%p619) target = $region56
        $region55: #{tpu_custom_call.1} parent=31 // pred_region
          %s622 = sand.u32 %s39, 1
          %s623 = scalar_lea.sflag [#allocation12], %s622
          %s624 = sand.u32 %s233, 1
          %s625 = smul.addr %s624, 256
          %s626 = scalar_lea.vmem [#allocation11], %s625
          %s628 = ssub.s32 4096, 4096
          %629 = vsyncadd %s623, %s628
          %s630 = smul.addr %s47, 64
          %s631 = smul.addr %s630, 64
          %s632 = scalar_lea.hbm %s7, %s631
          %s633 = sshll.u32 %s626, 4
          %s634 = int_to_ptr.vmem [resolvable:$true] %s633
          %639 = dma.hbm_to_vmem [thread:$0]  %s632, 4096, %s634, %s623, 64, 64, 4
        $region56: #{tpu_custom_call.1} parent=31 // pred_fallthru
          _
        // Predicated region
        $region57: #{tpu_custom_call.1} parent=31 // pred_check
          %p640 = pneg %p269
        $region58: #{tpu_custom_call.1} parent=31 // pred_check_branch
          %642 = sbr.rel (%p640) target = $region60
        $region59: #{tpu_custom_call.1} parent=31 // pred_region
          %p643 = scmp.lt.s32.totalorder %s47, 1
          %s644 = scalar_select %p643, %s47, 1
          %s645 = scalar_lea.vmem %s8, %s644
        $region60: #{tpu_custom_call.1} parent=31 // pred_fallthru
          _
        // Predicated region
        $region61: #{tpu_custom_call.1} parent=31 // pred_check
          %p646 = pneg %p295
        $region62: #{tpu_custom_call.1} parent=31 // pred_check_branch
          %648 = sbr.rel (%p646) target = $region64
        $region63: #{tpu_custom_call.1} parent=31 // pred_region
          %p649 = scmp.lt.s32.totalorder %s47, 1
          %s650 = scalar_select %p649, %s47, 1
          %s651 = scalar_lea.vmem %s9, %s650
        $region64: #{tpu_custom_call.1} parent=31 // pred_fallthru
          _
        // Predicated region
        $region65: #{tpu_custom_call.1} parent=31 // pred_check
          %p652 = pneg %p321
        $region66: #{tpu_custom_call.1} parent=31 // pred_check_branch
          %654 = sbr.rel (%p652) target = $region68
        $region67: #{tpu_custom_call.1} parent=31 // pred_region
          %p655 = scmp.lt.s32.totalorder %s47, 1
          %s656 = scalar_select %p655, %s47, 1
          %s657 = scalar_lea.vmem %s10, %s656
        $region68: #{tpu_custom_call.1} parent=31 // pred_fallthru
          _
        // Predicated region
        $region69: #{tpu_custom_call.1} parent=31 // pred_check
          %p658 = pneg %p347
        $region70: #{tpu_custom_call.1} parent=31 // pred_check_branch
          %660 = sbr.rel (%p658) target = $region72
        $region71: #{tpu_custom_call.1} parent=31 // pred_region
          %s661 = sand.u32 %s39, 1
          %s662 = scalar_lea.sflag [#allocation12], %s661
          %s663 = sand.u32 %s337, 1
          %s664 = smul.addr %s663, 64
          %s665 = scalar_lea.vmem [#allocation13], %s664
          %s667 = ssub.s32 1024, 1024
          %668 = vsyncadd %s662, %s667
          %s669 = smul.addr %s47, 16
          %s670 = smul.addr %s669, 64
          %s671 = scalar_lea.hbm %s11, %s670
          %s672 = sshll.u32 %s665, 4
          %s673 = int_to_ptr.vmem [resolvable:$true] %s672
          %678 = dma.hbm_to_vmem [thread:$0]  %s671, 1024, %s673, %s662, 64, 64, 4
        $region72: #{tpu_custom_call.1} parent=31 // pred_fallthru
          _
        // Predicated region
        $region73: #{tpu_custom_call.1} parent=31 // pred_check
          %p679 = pneg %p373
        $region74: #{tpu_custom_call.1} parent=31 // pred_check_branch
          %681 = sbr.rel (%p679) target = $region76
        $region75: #{tpu_custom_call.1} parent=31 // pred_region
          %p682 = scmp.lt.s32.totalorder %s47, 1
          %s683 = scalar_select %p682, %s47, 1
          %s684 = scalar_lea.vmem %s12, %s683
        $region76: #{tpu_custom_call.1} parent=31 // pred_fallthru
          _
        // Predicated region
        $region77: #{tpu_custom_call.1} parent=31 // pred_check
          %p685 = pneg %p399
        $region78: #{tpu_custom_call.1} parent=31 // pred_check_branch
          %687 = sbr.rel (%p685) target = $region80
        $region79: #{tpu_custom_call.1} parent=31 // pred_region
          %s688 = sand.u32 %s389, 1
          %s689 = scalar_lea.sflag [#allocation15], %s688
          %s690 = sand.u32 %s389, 1
          %s691 = smul.addr %s690, 64
          %s692 = scalar_lea.vmem [#allocation14], %s691
          %s694 = ssub.s32 1024, 1024
          %695 = vsyncadd %s689, %s694
          %s696 = smul.addr %s47, 16
          %s697 = smul.addr %s696, 64
          %s698 = scalar_lea.hbm %s13, %s697
          %s699 = sshll.u32 %s692, 4
          %s700 = int_to_ptr.vmem [resolvable:$true] %s699
          %705 = dma.hbm_to_vmem [thread:$0]  %s698, 1024, %s700, %s689, 64, 64, 4
        $region80: #{tpu_custom_call.1} parent=31 // pred_fallthru
          _
        // Predicated region
        $region81: #{tpu_custom_call.1} parent=31 // pred_check
          %p706 = pneg %p425
        $region82: #{tpu_custom_call.1} parent=31 // pred_check_branch
          %708 = sbr.rel (%p706) target = $region84
        $region83: #{tpu_custom_call.1} parent=31 // pred_region
          %p709 = scmp.lt.s32.totalorder %s47, 1
          %s710 = scalar_select %p709, %s47, 1
          %s711 = scalar_lea.vmem %s14, %s710
        $region84: #{tpu_custom_call.1} parent=31 // pred_fallthru
          _
      $region32: #{tpu_custom_call.1} parent=5 // pred_fallthru
        _
      %p712 = scmp.le.s32.totalorder 1, %s39
      %p713 = scmp.lt.s32.totalorder %s39, 5
      %p714 = pnand %p712, %p713
      %p715 = pneg %p714
      // Predicated region
      $region85: #{tpu_custom_call.1} parent=5 // pred_check
        _
      $region86: #{tpu_custom_call.1} parent=5 // pred_check_branch
        %717 = sbr.rel (%p714) target = $region88
      $region87: #{tpu_custom_call.1} parent=5 // pred_region
        %s718 = ssub.s32 %s39, 1
        %s719 = sand.u32 %s64, 1
        %s720 = scalar_lea.sflag [#allocation3], %s719
        %s721 = sand.u32 %s64, 1
        %s722 = smul.addr %s721, 24
        %s723 = scalar_lea.vmem [#allocation2], %s722
        // Predicated region
        $region89: #{tpu_custom_call.1} parent=87 // pred_check
          %p724 = pneg %p77
        $region90: #{tpu_custom_call.1} parent=87 // pred_check_branch
          %726 = sbr.rel (%p724) target = $region92
        $region91: #{tpu_custom_call.1} parent=87 // pred_region
          %727 = dma.done %s720, 384
        $region92: #{tpu_custom_call.1} parent=87 // pred_fallthru
          _
        // Predicated region
        $region93: #{tpu_custom_call.1} parent=87 // pred_check
          %p728 = pneg %p98
        $region94: #{tpu_custom_call.1} parent=87 // pred_check_branch
          %730 = sbr.rel (%p728) target = $region96
        $region95: #{tpu_custom_call.1} parent=87 // pred_region
          %731 = dma.done [#allocation6], 6144
        $region96: #{tpu_custom_call.1} parent=87 // pred_fallthru
          _
        // Predicated region
        $region97: #{tpu_custom_call.1} parent=87 // pred_check
          %p732 = pneg %p119
        $region98: #{tpu_custom_call.1} parent=87 // pred_check_branch
          %734 = sbr.rel (%p732) target = $region100
        $region99: #{tpu_custom_call.1} parent=87 // pred_region
          %735 = dma.done [#allocation6], 128
        $region100: #{tpu_custom_call.1} parent=87 // pred_fallthru
          _
        %s736 = sand.u32 %s44, 1
        %s737 = scalar_lea.sflag [#allocation9], %s736
        %s738 = sand.u32 %s184, 1
        %s739 = smul.addr %s738, 768
        %s740 = scalar_lea.vmem [#allocation8], %s739
        // Predicated region
        $region101: #{tpu_custom_call.1} parent=87 // pred_check
          %p741 = pneg %p197
        $region102: #{tpu_custom_call.1} parent=87 // pred_check_branch
          %743 = sbr.rel (%p741) target = $region104
        $region103: #{tpu_custom_call.1} parent=87 // pred_region
          %744 = dma.done %s737, 12288
        $region104: #{tpu_custom_call.1} parent=87 // pred_fallthru
          _
        %s745 = sand.u32 %s44, 1
        %s746 = scalar_lea.sflag [#allocation9], %s745
        %s747 = sand.u32 %s210, 1
        %s748 = smul.addr %s747, 12
        %s749 = scalar_lea.vmem [#allocation10], %s748
        // Predicated region
        $region105: #{tpu_custom_call.1} parent=87 // pred_check
          %p750 = pneg %p223
        $region106: #{tpu_custom_call.1} parent=87 // pred_check_branch
          %752 = sbr.rel (%p750) target = $region108
        $region107: #{tpu_custom_call.1} parent=87 // pred_region
          %753 = dma.done %s746, 192
        $region108: #{tpu_custom_call.1} parent=87 // pred_fallthru
          _
        %s754 = sand.u32 %s44, 1
        %s755 = scalar_lea.sflag [#allocation12], %s754
        %s756 = sand.u32 %s236, 1
        %s757 = smul.addr %s756, 256
        %s758 = scalar_lea.vmem [#allocation11], %s757
        // Predicated region
        $region109: #{tpu_custom_call.1} parent=87 // pred_check
          %p759 = pneg %p249
        $region110: #{tpu_custom_call.1} parent=87 // pred_check_branch
          %761 = sbr.rel (%p759) target = $region112
        $region111: #{tpu_custom_call.1} parent=87 // pred_region
          %762 = dma.done %s755, 4096
        $region112: #{tpu_custom_call.1} parent=87 // pred_fallthru
          _
        %s763 = sand.u32 %s44, 1
        %s764 = scalar_lea.sflag [#allocation12], %s763
        %s765 = sand.u32 %s340, 1
        %s766 = smul.addr %s765, 64
        %s767 = scalar_lea.vmem [#allocation13], %s766
        // Predicated region
        $region113: #{tpu_custom_call.1} parent=87 // pred_check
          %p768 = pneg %p353
        $region114: #{tpu_custom_call.1} parent=87 // pred_check_branch
          %770 = sbr.rel (%p768) target = $region116
        $region115: #{tpu_custom_call.1} parent=87 // pred_region
          %771 = dma.done %s764, 1024
        $region116: #{tpu_custom_call.1} parent=87 // pred_fallthru
          _
        %s772 = sand.u32 %s392, 1
        %s773 = scalar_lea.sflag [#allocation15], %s772
        %s774 = sand.u32 %s392, 1
        %s775 = smul.addr %s774, 64
        %s776 = scalar_lea.vmem [#allocation14], %s775
        // Predicated region
        $region117: #{tpu_custom_call.1} parent=87 // pred_check
          %p777 = pneg %p405
        $region118: #{tpu_custom_call.1} parent=87 // pred_check_branch
          %779 = sbr.rel (%p777) target = $region120
        $region119: #{tpu_custom_call.1} parent=87 // pred_region
          %780 = dma.done %s773, 1024
        $region120: #{tpu_custom_call.1} parent=87 // pred_fallthru
          _
        %s781 = sand.u32 %s64, 1
        %s782 = scalar_lea.sflag [#allocation3], %s781
        %s783 = sand.u32 %s64, 1
        %s784 = smul.addr %s783, 24
        %s785 = scalar_lea.vmem [#allocation2], %s784
        %p786 = pneg %p77
        %p787 = pneg %p74
        %p788 = pneg %p98
        %p789 = pneg %p95
        %p790 = pneg %p119
        %p791 = pneg %p116
        %p792 = scmp.lt.s32.totalorder %s49, 1
        %s793 = scalar_select %p792, %s49, 1
        %s794 = scalar_lea.vmem %s3, %s793
        %p795 = pneg %p145
        %p796 = pneg %p142
        %p797 = scmp.lt.s32.totalorder %s49, 1
        %s798 = scalar_select %p797, %s49, 1
        %s799 = scalar_lea.vmem %s4, %s798
        %p800 = pneg %p171
        %p801 = pneg %p168
        %s802 = sand.u32 %s44, 1
        %s803 = scalar_lea.sflag [#allocation9], %s802
        %s804 = sand.u32 %s184, 1
        %s805 = smul.addr %s804, 768
        %s806 = scalar_lea.vmem [#allocation8], %s805
        %p807 = pneg %p197
        %p808 = pneg %p194
        %s809 = sand.u32 %s44, 1
        %s810 = scalar_lea.sflag [#allocation9], %s809
        %s811 = sand.u32 %s210, 1
        %s812 = smul.addr %s811, 12
        %s813 = scalar_lea.vmem [#allocation10], %s812
        %p814 = pneg %p223
        %p815 = pneg %p220
        %s816 = sand.u32 %s44, 1
        %s817 = scalar_lea.sflag [#allocation12], %s816
        %s818 = sand.u32 %s236, 1
        %s819 = smul.addr %s818, 256
        %s820 = scalar_lea.vmem [#allocation11], %s819
        %p821 = pneg %p249
        %p822 = pneg %p246
        %p823 = scmp.lt.s32.totalorder %s49, 1
        %s824 = scalar_select %p823, %s49, 1
        %s825 = scalar_lea.vmem %s8, %s824
        %p826 = pneg %p275
        %p827 = pneg %p272
        %p828 = scmp.lt.s32.totalorder %s49, 1
        %s829 = scalar_select %p828, %s49, 1
        %s830 = scalar_lea.vmem %s9, %s829
        %p831 = pneg %p301
        %p832 = pneg %p298
        %p833 = scmp.lt.s32.totalorder %s49, 1
        %s834 = scalar_select %p833, %s49, 1
        %s835 = scalar_lea.vmem %s10, %s834
        %p836 = pneg %p327
        %p837 = pneg %p324
        %s838 = sand.u32 %s44, 1
        %s839 = scalar_lea.sflag [#allocation12], %s838
        %s840 = sand.u32 %s340, 1
        %s841 = smul.addr %s840, 64
        %s842 = scalar_lea.vmem [#allocation13], %s841
        %p843 = pneg %p353
        %p844 = pneg %p350
        %p845 = scmp.lt.s32.totalorder %s49, 1
        %s846 = scalar_select %p845, %s49, 1
        %s847 = scalar_lea.vmem %s12, %s846
        %p848 = pneg %p379
        %p849 = pneg %p376
        %s850 = sand.u32 %s392, 1
        %s851 = scalar_lea.sflag [#allocation15], %s850
        %s852 = sand.u32 %s392, 1
        %s853 = smul.addr %s852, 64
        %s854 = scalar_lea.vmem [#allocation14], %s853
        %p855 = pneg %p405
        %p856 = pneg %p402
        %p857 = scmp.lt.s32.totalorder %s49, 1
        %s858 = scalar_select %p857, %s49, 1
        %s859 = scalar_lea.vmem %s14, %s858
        %p860 = pneg %p431
        %p861 = pneg %p428
        %p862 = pneg %p452
        %p863 = pneg %p449
        %p864 = pneg %p473
        %p865 = pneg %p470
        %p866 = pneg %p499
        %p867 = pneg %p496
        %s868 = sand.u32 %s486, 1
        %s869 = scalar_lea.sflag [#allocation4], %s868
        %s870 = sand.u32 %s486, 1
        %s871 = smul.addr %s870, 8
        %s872 = scalar_lea.vmem [#allocation16], %s871
        %p873 = scmp.lt.s32.totalorder %s49, 1
        %s874 = scalar_select %p873, %s49, 1
        %s875 = scalar_lea.vmem %s3, %s874
        %p876 = scmp.lt.s32.totalorder %s49, 1
        %s877 = scalar_select %p876, %s49, 1
        %s878 = scalar_lea.vmem %s4, %s877
        %p879 = scmp.lt.s32.totalorder %s49, 1
        %s880 = scalar_select %p879, %s49, 1
        %s881 = scalar_lea.vmem %s8, %s880
        %p882 = scmp.lt.s32.totalorder %s49, 1
        %s883 = scalar_select %p882, %s49, 1
        %s884 = scalar_lea.vmem %s9, %s883
        %p885 = scmp.lt.s32.totalorder %s49, 1
        %s886 = scalar_select %p885, %s49, 1
        %s887 = scalar_lea.vmem %s10, %s886
        %p888 = scmp.lt.s32.totalorder %s49, 1
        %s889 = scalar_select %p888, %s49, 1
        %s890 = scalar_lea.vmem %s12, %s889
        %p891 = scmp.lt.s32.totalorder %s49, 1
        %s892 = scalar_select %p891, %s49, 1
        %s893 = scalar_lea.vmem %s14, %s892
        %v895 = vlaneseq
        %v896 = vand.u32 %v895, 127
        %vm897 = vcmp.lt.s32.totalorder %v896, 32
        %v898 = vsel %vm897, 1, 0
        %v899 = vcvt.s32.f32 %v898
        %vm900 = vcmp.lt.s32.totalorder %v896, 5
        %v901 = vsel %vm900, 0.0, -1e+30
        %p902 = scmp.eq.s32.totalorder %s49, 0
        // Predicated region
        $region121: #{tpu_custom_call.1} parent=87 // pred_check
          %p903 = pneg %p902
        $region122: #{tpu_custom_call.1} parent=87 // pred_check_branch
          %905 = sbr.rel (%p903) target = $region124
        $region123: #{tpu_custom_call.1} parent=87 // pred_region
          %v906 = vld [vmem:[%s723] sm:$0xff]
          %v907 = vld [vmem:[%s723 + $0x8] sm:$0xff]
          %v908 = vld [vmem:[%s723 + $0x10] sm:$0xff]
          %v909 = vld [vmem:[#allocation5] sm:$0xf]
          %v910 = vld [vmem:[#allocation5 + $0x4] sm:$0xf]
          %v911 = vld [vmem:[#allocation5 + $0x8] sm:$0xf]
          %v912 = vld [vmem:[#allocation5 + $0xc] sm:$0xf]
          %v913 = vld [vmem:[#allocation5 + $0x10] sm:$0xf]
          %v914 = vld [vmem:[#allocation5 + $0x14] sm:$0xf]
          %v915 = vld [vmem:[#allocation5 + $0x18] sm:$0xf]
          %v916 = vld [vmem:[#allocation5 + $0x1c] sm:$0xf]
          %v917 = vld [vmem:[#allocation5 + $0x20] sm:$0xf]
          %v918 = vld [vmem:[#allocation5 + $0x24] sm:$0xf]
          %v919 = vld [vmem:[#allocation5 + $0x28] sm:$0xf]
          %v920 = vld [vmem:[#allocation5 + $0x2c] sm:$0xf]
          %v921 = vld [vmem:[#allocation5 + $0x30] sm:$0xf]
          %v922 = vld [vmem:[#allocation5 + $0x34] sm:$0xf]
          %v923 = vld [vmem:[#allocation5 + $0x38] sm:$0xf]
          %v924 = vld [vmem:[#allocation5 + $0x3c] sm:$0xf]
          %v925 = vld [vmem:[#allocation5 + $0x40] sm:$0xf]
          %v926 = vld [vmem:[#allocation5 + $0x44] sm:$0xf]
          %v927 = vld [vmem:[#allocation5 + $0x48] sm:$0xf]
          %v928 = vld [vmem:[#allocation5 + $0x4c] sm:$0xf]
          %v929 = vld [vmem:[#allocation5 + $0x50] sm:$0xf]
          %v930 = vld [vmem:[#allocation5 + $0x54] sm:$0xf]
          %v931 = vld [vmem:[#allocation5 + $0x58] sm:$0xf]
          %v932 = vld [vmem:[#allocation5 + $0x5c] sm:$0xf]
          %v933 = vld [vmem:[#allocation5 + $0x60] sm:$0xf]
          %v934 = vld [vmem:[#allocation5 + $0x64] sm:$0xf]
          %v935 = vld [vmem:[#allocation5 + $0x68] sm:$0xf]
          %v936 = vld [vmem:[#allocation5 + $0x6c] sm:$0xf]
          %v937 = vld [vmem:[#allocation5 + $0x70] sm:$0xf]
          %v938 = vld [vmem:[#allocation5 + $0x74] sm:$0xf]
          %v939 = vld [vmem:[#allocation5 + $0x78] sm:$0xf]
          %v940 = vld [vmem:[#allocation5 + $0x7c] sm:$0xf]
          %v941 = vld [vmem:[#allocation5 + $0x80] sm:$0xf]
          %v942 = vld [vmem:[#allocation5 + $0x84] sm:$0xf]
          %v943 = vld [vmem:[#allocation5 + $0x88] sm:$0xf]
          %v944 = vld [vmem:[#allocation5 + $0x8c] sm:$0xf]
          %v945 = vld [vmem:[#allocation5 + $0x90] sm:$0xf]
          %v946 = vld [vmem:[#allocation5 + $0x94] sm:$0xf]
          %v947 = vld [vmem:[#allocation5 + $0x98] sm:$0xf]
          %v948 = vld [vmem:[#allocation5 + $0x9c] sm:$0xf]
          %v949 = vld [vmem:[#allocation5 + $0xa0] sm:$0xf]
          %v950 = vld [vmem:[#allocation5 + $0xa4] sm:$0xf]
          %v951 = vld [vmem:[#allocation5 + $0xa8] sm:$0xf]
          %v952 = vld [vmem:[#allocation5 + $0xac] sm:$0xf]
          %v953 = vld [vmem:[#allocation5 + $0xb0] sm:$0xf]
          %v954 = vld [vmem:[#allocation5 + $0xb4] sm:$0xf]
          %v955 = vld [vmem:[#allocation5 + $0xb8] sm:$0xf]
          %v956 = vld [vmem:[#allocation5 + $0xbc] sm:$0xf]
          %v957 = vld [vmem:[#allocation5 + $0xc0] sm:$0xf]
          %v958 = vld [vmem:[#allocation5 + $0xc4] sm:$0xf]
          %v959 = vld [vmem:[#allocation5 + $0xc8] sm:$0xf]
          %v960 = vld [vmem:[#allocation5 + $0xcc] sm:$0xf]
          %v961 = vld [vmem:[#allocation5 + $0xd0] sm:$0xf]
          %v962 = vld [vmem:[#allocation5 + $0xd4] sm:$0xf]
          %v963 = vld [vmem:[#allocation5 + $0xd8] sm:$0xf]
          %v964 = vld [vmem:[#allocation5 + $0xdc] sm:$0xf]
          %v965 = vld [vmem:[#allocation5 + $0xe0] sm:$0xf]
          %v966 = vld [vmem:[#allocation5 + $0xe4] sm:$0xf]
          %v967 = vld [vmem:[#allocation5 + $0xe8] sm:$0xf]
          %v968 = vld [vmem:[#allocation5 + $0xec] sm:$0xf]
          %v969 = vld [vmem:[#allocation5 + $0xf0] sm:$0xf]
          %v970 = vld [vmem:[#allocation5 + $0xf4] sm:$0xf]
          %v971 = vld [vmem:[#allocation5 + $0xf8] sm:$0xf]
          %v972 = vld [vmem:[#allocation5 + $0xfc] sm:$0xf]
          %v973 = vld [vmem:[#allocation5 + $0x100] sm:$0xf]
          %v974 = vld [vmem:[#allocation5 + $0x104] sm:$0xf]
          %v975 = vld [vmem:[#allocation5 + $0x108] sm:$0xf]
          %v976 = vld [vmem:[#allocation5 + $0x10c] sm:$0xf]
          %v977 = vld [vmem:[#allocation5 + $0x110] sm:$0xf]
          %v978 = vld [vmem:[#allocation5 + $0x114] sm:$0xf]
          %v979 = vld [vmem:[#allocation5 + $0x118] sm:$0xf]
          %v980 = vld [vmem:[#allocation5 + $0x11c] sm:$0xf]
          %v981 = vld [vmem:[#allocation5 + $0x120] sm:$0xf]
          %v982 = vld [vmem:[#allocation5 + $0x124] sm:$0xf]
          %v983 = vld [vmem:[#allocation5 + $0x128] sm:$0xf]
          %v984 = vld [vmem:[#allocation5 + $0x12c] sm:$0xf]
          %v985 = vld [vmem:[#allocation5 + $0x130] sm:$0xf]
          %v986 = vld [vmem:[#allocation5 + $0x134] sm:$0xf]
          %v987 = vld [vmem:[#allocation5 + $0x138] sm:$0xf]
          %v988 = vld [vmem:[#allocation5 + $0x13c] sm:$0xf]
          %v989 = vld [vmem:[#allocation5 + $0x140] sm:$0xf]
          %v990 = vld [vmem:[#allocation5 + $0x144] sm:$0xf]
          %v991 = vld [vmem:[#allocation5 + $0x148] sm:$0xf]
          %v992 = vld [vmem:[#allocation5 + $0x14c] sm:$0xf]
          %v993 = vld [vmem:[#allocation5 + $0x150] sm:$0xf]
          %v994 = vld [vmem:[#allocation5 + $0x154] sm:$0xf]
          %v995 = vld [vmem:[#allocation5 + $0x158] sm:$0xf]
          %v996 = vld [vmem:[#allocation5 + $0x15c] sm:$0xf]
          %v997 = vld [vmem:[#allocation5 + $0x160] sm:$0xf]
          %v998 = vld [vmem:[#allocation5 + $0x164] sm:$0xf]
          %v999 = vld [vmem:[#allocation5 + $0x168] sm:$0xf]
          %v1000 = vld [vmem:[#allocation5 + $0x16c] sm:$0xf]
          %v1001 = vld [vmem:[#allocation5 + $0x170] sm:$0xf]
          %v1002 = vld [vmem:[#allocation5 + $0x174] sm:$0xf]
          %v1003 = vld [vmem:[#allocation5 + $0x178] sm:$0xf]
          %v1004 = vld [vmem:[#allocation5 + $0x17c] sm:$0xf]
          %v1005 = vld [vmem:[#allocation7] sm:$0xff]
          %v1009 = vunpack.c.l.b16 %v906
          %v1010 = vunpack.c.h.b16 %v906
          %v1011 = vunpack.c.l.b16 %v907
          %v1012 = vunpack.c.h.b16 %v907
          %v1013 = vunpack.c.l.b16 %v908
          %v1014 = vunpack.c.h.b16 %v908
          %v1015 = vpack.c.b16 %v1009, %v1009
          %v1016 = vpack.c.b16 %v1010, %v1010
          %v1017 = vpack.c.b16 %v1011, %v1011
          %v1018 = vpack.c.b16 %v1012, %v1012
          %v1019 = vpack.c.b16 %v1013, %v1013
          %v1020 = vpack.c.b16 %v1014, %v1014
          %v1123 = vunpack.c.l.b16 %v909
          %v1124 = vunpack.c.l.b16 %v910
          %v1125 = vunpack.c.l.b16 %v911
          %v1126 = vunpack.c.l.b16 %v912
          %v1127 = vunpack.c.l.b16 %v913
          %v1128 = vunpack.c.l.b16 %v914
          %v1129 = vunpack.c.l.b16 %v915
          %v1130 = vunpack.c.l.b16 %v916
          %v1131 = vunpack.c.l.b16 %v917
          %v1132 = vunpack.c.l.b16 %v918
          %v1133 = vunpack.c.l.b16 %v919
          %v1134 = vunpack.c.l.b16 %v920
          %v1135 = vunpack.c.l.b16 %v921
          %v1136 = vunpack.c.l.b16 %v922
          %v1137 = vunpack.c.l.b16 %v923
          %v1138 = vunpack.c.l.b16 %v924
          %v1139 = vunpack.c.l.b16 %v925
          %v1140 = vunpack.c.l.b16 %v926
          %v1141 = vunpack.c.l.b16 %v927
          %v1142 = vunpack.c.l.b16 %v928
          %v1143 = vunpack.c.l.b16 %v929
          %v1144 = vunpack.c.l.b16 %v930
          %v1145 = vunpack.c.l.b16 %v931
          %v1146 = vunpack.c.l.b16 %v932
          %v1147 = vunpack.c.l.b16 %v933
          %v1148 = vunpack.c.l.b16 %v934
          %v1149 = vunpack.c.l.b16 %v935
          %v1150 = vunpack.c.l.b16 %v936
          %v1151 = vunpack.c.l.b16 %v937
          %v1152 = vunpack.c.l.b16 %v938
          %v1153 = vunpack.c.l.b16 %v939
          %v1154 = vunpack.c.l.b16 %v940
          %v1155 = vunpack.c.l.b16 %v941
          %v1156 = vunpack.c.l.b16 %v942
          %v1157 = vunpack.c.l.b16 %v943
          %v1158 = vunpack.c.l.b16 %v944
          %v1159 = vunpack.c.l.b16 %v945
          %v1160 = vunpack.c.l.b16 %v946
          %v1161 = vunpack.c.l.b16 %v947
          %v1162 = vunpack.c.l.b16 %v948
          %v1163 = vunpack.c.l.b16 %v949
          %v1164 = vunpack.c.l.b16 %v950
          %v1165 = vunpack.c.l.b16 %v951
          %v1166 = vunpack.c.l.b16 %v952
          %v1167 = vunpack.c.l.b16 %v953
          %v1168 = vunpack.c.l.b16 %v954
          %v1169 = vunpack.c.l.b16 %v955
          %v1170 = vunpack.c.l.b16 %v956
          %v1171 = vunpack.c.l.b16 %v957
          %v1172 = vunpack.c.l.b16 %v958
          %v1173 = vunpack.c.l.b16 %v959
          %v1174 = vunpack.c.l.b16 %v960
          %v1175 = vunpack.c.l.b16 %v961
          %v1176 = vunpack.c.l.b16 %v962
          %v1177 = vunpack.c.l.b16 %v963
          %v1178 = vunpack.c.l.b16 %v964
          %v1179 = vunpack.c.l.b16 %v965
          %v1180 = vunpack.c.l.b16 %v966
          %v1181 = vunpack.c.l.b16 %v967
          %v1182 = vunpack.c.l.b16 %v968
          %v1183 = vunpack.c.l.b16 %v969
          %v1184 = vunpack.c.l.b16 %v970
          %v1185 = vunpack.c.l.b16 %v971
          %v1186 = vunpack.c.l.b16 %v972
          %v1187 = vunpack.c.l.b16 %v973
          %v1188 = vunpack.c.l.b16 %v974
          %v1189 = vunpack.c.l.b16 %v975
          %v1190 = vunpack.c.l.b16 %v976
          %v1191 = vunpack.c.l.b16 %v977
          %v1192 = vunpack.c.l.b16 %v978
          %v1193 = vunpack.c.l.b16 %v979
          %v1194 = vunpack.c.l.b16 %v980
          %v1195 = vunpack.c.l.b16 %v981
          %v1196 = vunpack.c.l.b16 %v982
          %v1197 = vunpack.c.l.b16 %v983
          %v1198 = vunpack.c.l.b16 %v984
          %v1199 = vunpack.c.l.b16 %v985
          %v1200 = vunpack.c.l.b16 %v986
          %v1201 = vunpack.c.l.b16 %v987
          %v1202 = vunpack.c.l.b16 %v988
          %v1203 = vunpack.c.l.b16 %v989
          %v1204 = vunpack.c.l.b16 %v990
          %v1205 = vunpack.c.l.b16 %v991
          %v1206 = vunpack.c.l.b16 %v992
          %v1207 = vunpack.c.l.b16 %v993
          %v1208 = vunpack.c.l.b16 %v994
          %v1209 = vunpack.c.l.b16 %v995
          %v1210 = vunpack.c.l.b16 %v996
          %v1211 = vunpack.c.l.b16 %v997
          %v1212 = vunpack.c.l.b16 %v998
          %v1213 = vunpack.c.l.b16 %v999
          %v1214 = vunpack.c.l.b16 %v1000
          %v1215 = vunpack.c.l.b16 %v1001
          %v1216 = vunpack.c.l.b16 %v1002
          %v1217 = vunpack.c.l.b16 %v1003
          %v1218 = vunpack.c.l.b16 %v1004
          %v1219 = vpack.c.b16 %v1124, %v1123
          %v1220 = vpack.c.b16 %v1126, %v1125
          %v1221 = vpack.c.b16 %v1128, %v1127
          %v1222 = vpack.c.b16 %v1130, %v1129
          %v1223 = vpack.c.b16 %v1132, %v1131
          %v1224 = vpack.c.b16 %v1134, %v1133
          %v1225 = vpack.c.b16 %v1136, %v1135
          %v1226 = vpack.c.b16 %v1138, %v1137
          %v1227 = vpack.c.b16 %v1140, %v1139
          %v1228 = vpack.c.b16 %v1142, %v1141
          %v1229 = vpack.c.b16 %v1144, %v1143
          %v1230 = vpack.c.b16 %v1146, %v1145
          %v1231 = vpack.c.b16 %v1148, %v1147
          %v1232 = vpack.c.b16 %v1150, %v1149
          %v1233 = vpack.c.b16 %v1152, %v1151
          %v1234 = vpack.c.b16 %v1154, %v1153
          %v1235 = vpack.c.b16 %v1156, %v1155
          %v1236 = vpack.c.b16 %v1158, %v1157
          %v1237 = vpack.c.b16 %v1160, %v1159
          %v1238 = vpack.c.b16 %v1162, %v1161
          %v1239 = vpack.c.b16 %v1164, %v1163
          %v1240 = vpack.c.b16 %v1166, %v1165
          %v1241 = vpack.c.b16 %v1168, %v1167
          %v1242 = vpack.c.b16 %v1170, %v1169
          %v1243 = vpack.c.b16 %v1172, %v1171
          %v1244 = vpack.c.b16 %v1174, %v1173
          %v1245 = vpack.c.b16 %v1176, %v1175
          %v1246 = vpack.c.b16 %v1178, %v1177
          %v1247 = vpack.c.b16 %v1180, %v1179
          %v1248 = vpack.c.b16 %v1182, %v1181
          %v1249 = vpack.c.b16 %v1184, %v1183
          %v1250 = vpack.c.b16 %v1186, %v1185
          %v1251 = vpack.c.b16 %v1188, %v1187
          %v1252 = vpack.c.b16 %v1190, %v1189
          %v1253 = vpack.c.b16 %v1192, %v1191
          %v1254 = vpack.c.b16 %v1194, %v1193
          %v1255 = vpack.c.b16 %v1196, %v1195
          %v1256 = vpack.c.b16 %v1198, %v1197
          %v1257 = vpack.c.b16 %v1200, %v1199
          %v1258 = vpack.c.b16 %v1202, %v1201
          %v1259 = vpack.c.b16 %v1204, %v1203
          %v1260 = vpack.c.b16 %v1206, %v1205
          %v1261 = vpack.c.b16 %v1208, %v1207
          %v1262 = vpack.c.b16 %v1210, %v1209
          %v1263 = vpack.c.b16 %v1212, %v1211
          %v1264 = vpack.c.b16 %v1214, %v1213
          %v1265 = vpack.c.b16 %v1216, %v1215
          %v1266 = vpack.c.b16 %v1218, %v1217
          %1315 = vmatprep.subr.bf16.mxu0 0
          %1316 = vmatpush1.bf16.msra.mxu0 %v1226
          %1317 = vmatprep.subr.bf16.mxu0 0
          %1318 = vmatpush1.bf16.msra.mxu0 %v1225
          %1319 = vmatprep.subr.bf16.mxu0 0
          %1320 = vmatpush1.bf16.msra.mxu0 %v1224
          %1321 = vmatprep.subr.bf16.mxu0 0
          %1322 = vmatpush1.bf16.msra.mxu0 %v1223
          %1323 = vmatprep.subr.bf16.mxu0 0
          %1324 = vmatpush1.bf16.msra.mxu0 %v1222
          %1325 = vmatprep.subr.bf16.mxu0 0
          %1326 = vmatpush1.bf16.msra.mxu0 %v1221
          %1327 = vmatprep.subr.bf16.mxu0 0
          %1328 = vmatpush1.bf16.msra.mxu0 %v1220
          %1329 = vmatprep.subr.bf16.mxu0 0
          %1330 = vmatpush1.bf16.msra.mxu0 %v1219
          %1331 = vmatprep.subr.bf16.mxu0 0
          %1332 = vmatpush2.bf16.msra.mxu0 %v1234
          %1333 = vmatprep.subr.bf16.mxu0 0
          %1334 = vmatpush2.bf16.msra.mxu0 %v1233
          %1335 = vmatprep.subr.bf16.mxu0 0
          %1336 = vmatpush2.bf16.msra.mxu0 %v1232
          %1337 = vmatprep.subr.bf16.mxu0 0
          %1338 = vmatpush2.bf16.msra.mxu0 %v1231
          %1339 = vmatprep.subr.bf16.mxu0 0
          %1340 = vmatpush2.bf16.msra.mxu0 %v1230
          %1341 = vmatprep.subr.bf16.mxu0 0
          %1342 = vmatpush2.bf16.msra.mxu0 %v1229
          %1343 = vmatprep.subr.bf16.mxu0 0
          %1344 = vmatpush2.bf16.msra.mxu0 %v1228
          %1345 = vmatprep.subr.bf16.mxu0 0
          %1346 = vmatpush2.bf16.msra.mxu0 %v1227
          %1347 = vmatprep.mubr.bf16.mxu0 %v1016
          %1348 = vmatmul.mubr.bf16.gmra.mxu0 %v1015
          %v1349 = vpop.f32.mrf.mxu0
          %v1350 = vadd.f32 %v1005, %v1349
          %v1351 = vpop.f32.mrf.mxu0
          %v1352 = vpop.f32.mrf.mxu0
          %v1353 = vpop.f32.mrf.mxu0
          %1354 = vdwg.mxu0
          %1355 = vmatprep.subr.bf16.mxu0 0
          %1356 = vmatpush1.bf16.msra.mxu0 %v1242
          %1357 = vmatprep.subr.bf16.mxu0 0
          %1358 = vmatpush1.bf16.msra.mxu0 %v1241
          %1359 = vmatprep.subr.bf16.mxu0 0
          %1360 = vmatpush1.bf16.msra.mxu0 %v1240
          %1361 = vmatprep.subr.bf16.mxu0 0
          %1362 = vmatpush1.bf16.msra.mxu0 %v1239
          %1363 = vmatprep.subr.bf16.mxu0 0
          %1364 = vmatpush1.bf16.msra.mxu0 %v1238
          %1365 = vmatprep.subr.bf16.mxu0 0
          %1366 = vmatpush1.bf16.msra.mxu0 %v1237
          %1367 = vmatprep.subr.bf16.mxu0 0
          %1368 = vmatpush1.bf16.msra.mxu0 %v1236
          %1369 = vmatprep.subr.bf16.mxu0 0
          %1370 = vmatpush1.bf16.msra.mxu0 %v1235
          %1371 = vmatprep.subr.bf16.mxu0 0
          %1372 = vmatpush2.bf16.msra.mxu0 %v1250
          %1373 = vmatprep.subr.bf16.mxu0 0
          %1374 = vmatpush2.bf16.msra.mxu0 %v1249
          %1375 = vmatprep.subr.bf16.mxu0 0
          %1376 = vmatpush2.bf16.msra.mxu0 %v1248
          %1377 = vmatprep.subr.bf16.mxu0 0
          %1378 = vmatpush2.bf16.msra.mxu0 %v1247
          %1379 = vmatprep.subr.bf16.mxu0 0
          %1380 = vmatpush2.bf16.msra.mxu0 %v1246
          %1381 = vmatprep.subr.bf16.mxu0 0
          %1382 = vmatpush2.bf16.msra.mxu0 %v1245
          %1383 = vmatprep.subr.bf16.mxu0 0
          %1384 = vmatpush2.bf16.msra.mxu0 %v1244
          %1385 = vmatprep.subr.bf16.mxu0 0
          %1386 = vmatpush2.bf16.msra.mxu0 %v1243
          %1387 = vmatprep.mubr.bf16.mxu0 %v1018
          %1388 = vmatmul.mubr.bf16.gmra.mxu0 %v1017
          %v1389 = vpop.f32.mrf.mxu0
          %v1390 = vadd.f32 %v1350, %v1389
          %v1391 = vpop.f32.mrf.mxu0
          %v1392 = vpop.f32.mrf.mxu0
          %v1393 = vpop.f32.mrf.mxu0
          %1394 = vdwg.mxu0
          %1395 = vmatprep.subr.bf16.mxu0 0
          %1396 = vmatpush1.bf16.msra.mxu0 %v1258
          %1397 = vmatprep.subr.bf16.mxu0 0
          %1398 = vmatpush1.bf16.msra.mxu0 %v1257
          %1399 = vmatprep.subr.bf16.mxu0 0
          %1400 = vmatpush1.bf16.msra.mxu0 %v1256
          %1401 = vmatprep.subr.bf16.mxu0 0
          %1402 = vmatpush1.bf16.msra.mxu0 %v1255
          %1403 = vmatprep.subr.bf16.mxu0 0
          %1404 = vmatpush1.bf16.msra.mxu0 %v1254
          %1405 = vmatprep.subr.bf16.mxu0 0
          %1406 = vmatpush1.bf16.msra.mxu0 %v1253
          %1407 = vmatprep.subr.bf16.mxu0 0
          %1408 = vmatpush1.bf16.msra.mxu0 %v1252
          %1409 = vmatprep.subr.bf16.mxu0 0
          %1410 = vmatpush1.bf16.msra.mxu0 %v1251
          %1411 = vmatprep.subr.bf16.mxu0 0
          %1412 = vmatpush2.bf16.msra.mxu0 %v1266
          %1413 = vmatprep.subr.bf16.mxu0 0
          %1414 = vmatpush2.bf16.msra.mxu0 %v1265
          %1415 = vmatprep.subr.bf16.mxu0 0
          %1416 = vmatpush2.bf16.msra.mxu0 %v1264
          %1417 = vmatprep.subr.bf16.mxu0 0
          %1418 = vmatpush2.bf16.msra.mxu0 %v1263
          %1419 = vmatprep.subr.bf16.mxu0 0
          %1420 = vmatpush2.bf16.msra.mxu0 %v1262
          %1421 = vmatprep.subr.bf16.mxu0 0
          %1422 = vmatpush2.bf16.msra.mxu0 %v1261
          %1423 = vmatprep.subr.bf16.mxu0 0
          %1424 = vmatpush2.bf16.msra.mxu0 %v1260
          %1425 = vmatprep.subr.bf16.mxu0 0
          %1426 = vmatpush2.bf16.msra.mxu0 %v1259
          %1427 = vmatprep.mubr.bf16.mxu0 %v1020
          %1428 = vmatmul.mubr.bf16.gmra.mxu0 %v1019
          %v1429 = vpop.f32.mrf.mxu0
          %v1430 = vadd.f32 %v1390, %v1429
          %v1431 = vpop.f32.mrf.mxu0
          %v1432 = vpop.f32.mrf.mxu0
          %v1433 = vpop.f32.mrf.mxu0
          %1434 = vdwg.mxu0
          %1435 = vst [vmem:[%s872] sm:$0xff] %v1430
        $region124: #{tpu_custom_call.1} parent=87 // pred_fallthru
          _
        %v1436 = vld [vmem:[%s872] sm:$0xff]
        %v1437 = vld [vmem:[%s875] sm:$0x1]
        %v1438 = vld [vmem:[%s878] sm:$0x1]
        %1439 = vadd.xlane.f32.xlu0 %v1436
        %v1440 = vpop.xlane.xlu0 %1439
        %v1441 = vmul.f32 %v1440, 0.03125
        %v1442 = vsub.f32 %v1436, %v1441
        %v1443 = vmul.f32 %v1442, %v899
        %v1444 = vmul.f32 %v1443, %v1443
        %1445 = vadd.xlane.f32.xlu0 %v1444
        %v1446 = vpop.xlane.xlu0 %1445
        %v1447 = vmul.f32 %v1446, 0.03125
        %v1448 = vadd.f32 %v1447, 1e-06
        %v1449 = vrsqrt.pop %v1448
        %v1450 = vmul.f32 %v1443, %v1449
        %v1452 = vlaneseq
        %v1453 = vshrl.u32 %v1452, 7
        %v1454 = vsub.s32 0, %v1453
        %v1455 = vrot.slane %v1437, %v1454
        %v1457 = vmul.f32 %v1450, %v1455
        %v1459 = vlaneseq
        %v1460 = vshrl.u32 %v1459, 7
        %v1461 = vsub.s32 0, %v1460
        %v1462 = vrot.slane %v1438, %v1461
        %v1464 = vadd.f32 %v1457, %v1462
        %v1465 = vpack.c.bf16 %v1464, %v1464
        %v1466 = vld [vmem:[%s740] sm:$0xff]
        %v1467 = vld [vmem:[%s740 + $0x8] sm:$0xff]
        %v1468 = vld [vmem:[%s740 + $0x10] sm:$0xff]
        %v1469 = vld [vmem:[%s740 + $0x18] sm:$0xff]
        %v1470 = vld [vmem:[%s740 + $0x20] sm:$0xff]
        %v1471 = vld [vmem:[%s740 + $0x28] sm:$0xff]
        %v1472 = vld [vmem:[%s740 + $0x30] sm:$0xff]
        %v1473 = vld [vmem:[%s740 + $0x38] sm:$0xff]
        %v1474 = vld [vmem:[%s740 + $0x40] sm:$0xff]
        %v1475 = vld [vmem:[%s740 + $0x48] sm:$0xff]
        %v1476 = vld [vmem:[%s740 + $0x50] sm:$0xff]
        %v1477 = vld [vmem:[%s740 + $0x58] sm:$0xff]
        %v1478 = vld [vmem:[%s740 + $0x60] sm:$0xff]
        %v1479 = vld [vmem:[%s740 + $0x68] sm:$0xff]
        %v1480 = vld [vmem:[%s740 + $0x70] sm:$0xff]
        %v1481 = vld [vmem:[%s740 + $0x78] sm:$0xff]
        %v1482 = vld [vmem:[%s740 + $0x80] sm:$0xff]
        %v1483 = vld [vmem:[%s740 + $0x88] sm:$0xff]
        %v1484 = vld [vmem:[%s740 + $0x90] sm:$0xff]
        %v1485 = vld [vmem:[%s740 + $0x98] sm:$0xff]
        %v1486 = vld [vmem:[%s740 + $0xa0] sm:$0xff]
        %v1487 = vld [vmem:[%s740 + $0xa8] sm:$0xff]
        %v1488 = vld [vmem:[%s740 + $0xb0] sm:$0xff]
        %v1489 = vld [vmem:[%s740 + $0xb8] sm:$0xff]
        %v1490 = vld [vmem:[%s740 + $0xc0] sm:$0xff]
        %v1491 = vld [vmem:[%s740 + $0xc8] sm:$0xff]
        %v1492 = vld [vmem:[%s740 + $0xd0] sm:$0xff]
        %v1493 = vld [vmem:[%s740 + $0xd8] sm:$0xff]
        %v1494 = vld [vmem:[%s740 + $0xe0] sm:$0xff]
        %v1495 = vld [vmem:[%s740 + $0xe8] sm:$0xff]
        %v1496 = vld [vmem:[%s740 + $0xf0] sm:$0xff]
        %v1497 = vld [vmem:[%s740 + $0xf8] sm:$0xff]
        %v1498 = vld [vmem:[%s740 + $0x100] sm:$0xff]
        %v1499 = vld [vmem:[%s740 + $0x108] sm:$0xff]
        %v1500 = vld [vmem:[%s740 + $0x110] sm:$0xff]
        %v1501 = vld [vmem:[%s740 + $0x118] sm:$0xff]
        %v1502 = vld [vmem:[%s740 + $0x120] sm:$0xff]
        %v1503 = vld [vmem:[%s740 + $0x128] sm:$0xff]
        %v1504 = vld [vmem:[%s740 + $0x130] sm:$0xff]
        %v1505 = vld [vmem:[%s740 + $0x138] sm:$0xff]
        %v1506 = vld [vmem:[%s740 + $0x140] sm:$0xff]
        %v1507 = vld [vmem:[%s740 + $0x148] sm:$0xff]
        %v1508 = vld [vmem:[%s740 + $0x150] sm:$0xff]
        %v1509 = vld [vmem:[%s740 + $0x158] sm:$0xff]
        %v1510 = vld [vmem:[%s740 + $0x160] sm:$0xff]
        %v1511 = vld [vmem:[%s740 + $0x168] sm:$0xff]
        %v1512 = vld [vmem:[%s740 + $0x170] sm:$0xff]
        %v1513 = vld [vmem:[%s740 + $0x178] sm:$0xff]
        %v1514 = vld [vmem:[%s740 + $0x180] sm:$0xff]
        %v1515 = vld [vmem:[%s740 + $0x188] sm:$0xff]
        %v1516 = vld [vmem:[%s740 + $0x190] sm:$0xff]
        %v1517 = vld [vmem:[%s740 + $0x198] sm:$0xff]
        %v1518 = vld [vmem:[%s740 + $0x1a0] sm:$0xff]
        %v1519 = vld [vmem:[%s740 + $0x1a8] sm:$0xff]
        %v1520 = vld [vmem:[%s740 + $0x1b0] sm:$0xff]
        %v1521 = vld [vmem:[%s740 + $0x1b8] sm:$0xff]
        %v1522 = vld [vmem:[%s740 + $0x1c0] sm:$0xff]
        %v1523 = vld [vmem:[%s740 + $0x1c8] sm:$0xff]
        %v1524 = vld [vmem:[%s740 + $0x1d0] sm:$0xff]
        %v1525 = vld [vmem:[%s740 + $0x1d8] sm:$0xff]
        %v1526 = vld [vmem:[%s740 + $0x1e0] sm:$0xff]
        %v1527 = vld [vmem:[%s740 + $0x1e8] sm:$0xff]
        %v1528 = vld [vmem:[%s740 + $0x1f0] sm:$0xff]
        %v1529 = vld [vmem:[%s740 + $0x1f8] sm:$0xff]
        %v1530 = vld [vmem:[%s740 + $0x200] sm:$0xff]
        %v1531 = vld [vmem:[%s740 + $0x208] sm:$0xff]
        %v1532 = vld [vmem:[%s740 + $0x210] sm:$0xff]
        %v1533 = vld [vmem:[%s740 + $0x218] sm:$0xff]
        %v1534 = vld [vmem:[%s740 + $0x220] sm:$0xff]
        %v1535 = vld [vmem:[%s740 + $0x228] sm:$0xff]
        %v1536 = vld [vmem:[%s740 + $0x230] sm:$0xff]
        %v1537 = vld [vmem:[%s740 + $0x238] sm:$0xff]
        %v1538 = vld [vmem:[%s740 + $0x240] sm:$0xff]
        %v1539 = vld [vmem:[%s740 + $0x248] sm:$0xff]
        %v1540 = vld [vmem:[%s740 + $0x250] sm:$0xff]
        %v1541 = vld [vmem:[%s740 + $0x258] sm:$0xff]
        %v1542 = vld [vmem:[%s740 + $0x260] sm:$0xff]
        %v1543 = vld [vmem:[%s740 + $0x268] sm:$0xff]
        %v1544 = vld [vmem:[%s740 + $0x270] sm:$0xff]
        %v1545 = vld [vmem:[%s740 + $0x278] sm:$0xff]
        %v1546 = vld [vmem:[%s740 + $0x280] sm:$0xff]
        %v1547 = vld [vmem:[%s740 + $0x288] sm:$0xff]
        %v1548 = vld [vmem:[%s740 + $0x290] sm:$0xff]
        %v1549 = vld [vmem:[%s740 + $0x298] sm:$0xff]
        %v1550 = vld [vmem:[%s740 + $0x2a0] sm:$0xff]
        %v1551 = vld [vmem:[%s740 + $0x2a8] sm:$0xff]
        %v1552 = vld [vmem:[%s740 + $0x2b0] sm:$0xff]
        %v1553 = vld [vmem:[%s740 + $0x2b8] sm:$0xff]
        %v1554 = vld [vmem:[%s740 + $0x2c0] sm:$0xff]
        %v1555 = vld [vmem:[%s740 + $0x2c8] sm:$0xff]
        %v1556 = vld [vmem:[%s740 + $0x2d0] sm:$0xff]
        %v1557 = vld [vmem:[%s740 + $0x2d8] sm:$0xff]
        %v1558 = vld [vmem:[%s740 + $0x2e0] sm:$0xff]
        %v1559 = vld [vmem:[%s740 + $0x2e8] sm:$0xff]
        %v1560 = vld [vmem:[%s740 + $0x2f0] sm:$0xff]
        %v1561 = vld [vmem:[%s740 + $0x2f8] sm:$0xff]
        %v1562 = vld [vmem:[%s749] sm:$0xff]
        %v1563 = vld [vmem:[%s749 + $0x8] sm:$0xf]
        %v1566 = vlaneseq
        %v1567 = vshrl.u32 %v1566, 7
        %v1568 = vsub.s32 0, %v1567
        %v1569 = vrot.slane %v1562, %v1568
        %v1570 = vlaneseq
        %v1571 = vshrl.u32 %v1570, 7
        %v1572 = vsub.s32 1, %v1571
        %v1573 = vrot.slane %v1562, %v1572
        %v1574 = vlaneseq
        %v1575 = vshrl.u32 %v1574, 7
        %v1576 = vsub.s32 2, %v1575
        %v1577 = vrot.slane %v1562, %v1576
        %v1578 = vlaneseq
        %v1579 = vshrl.u32 %v1578, 7
        %v1580 = vsub.s32 3, %v1579
        %v1581 = vrot.slane %v1562, %v1580
        %v1582 = vlaneseq
        %v1583 = vshrl.u32 %v1582, 7
        %v1584 = vsub.s32 4, %v1583
        %v1585 = vrot.slane %v1562, %v1584
        %v1586 = vlaneseq
        %v1587 = vshrl.u32 %v1586, 7
        %v1588 = vsub.s32 5, %v1587
        %v1589 = vrot.slane %v1562, %v1588
        %v1590 = vlaneseq
        %v1591 = vshrl.u32 %v1590, 7
        %v1592 = vsub.s32 6, %v1591
        %v1593 = vrot.slane %v1562, %v1592
        %v1594 = vlaneseq
        %v1595 = vshrl.u32 %v1594, 7
        %v1596 = vsub.s32 7, %v1595
        %v1597 = vrot.slane %v1562, %v1596
        %v1598 = vlaneseq
        %v1599 = vshrl.u32 %v1598, 7
        %v1600 = vsub.s32 0, %v1599
        %v1601 = vrot.slane %v1563, %v1600
        %v1602 = vlaneseq
        %v1603 = vshrl.u32 %v1602, 7
        %v1604 = vsub.s32 1, %v1603
        %v1605 = vrot.slane %v1563, %v1604
        %v1606 = vlaneseq
        %v1607 = vshrl.u32 %v1606, 7
        %v1608 = vsub.s32 2, %v1607
        %v1609 = vrot.slane %v1563, %v1608
        %v1610 = vlaneseq
        %v1611 = vshrl.u32 %v1610, 7
        %v1612 = vsub.s32 3, %v1611
        %v1613 = vrot.slane %v1563, %v1612
        %v1722 = vunpack.c.l.b16 %v1466
        %v1723 = vunpack.c.h.b16 %v1466
        %v1724 = vunpack.c.l.b16 %v1467
        %v1725 = vunpack.c.h.b16 %v1467
        %v1726 = vunpack.c.l.b16 %v1468
        %v1727 = vunpack.c.h.b16 %v1468
        %v1728 = vunpack.c.l.b16 %v1469
        %v1729 = vunpack.c.h.b16 %v1469
        %v1730 = vunpack.c.l.b16 %v1470
        %v1731 = vunpack.c.h.b16 %v1470
        %v1732 = vunpack.c.l.b16 %v1471
        %v1733 = vunpack.c.h.b16 %v1471
        %v1734 = vunpack.c.l.b16 %v1472
        %v1735 = vunpack.c.h.b16 %v1472
        %v1736 = vunpack.c.l.b16 %v1473
        %v1737 = vunpack.c.h.b16 %v1473
        %v1738 = vunpack.c.l.b16 %v1474
        %v1739 = vunpack.c.h.b16 %v1474
        %v1740 = vunpack.c.l.b16 %v1475
        %v1741 = vunpack.c.h.b16 %v1475
        %v1742 = vunpack.c.l.b16 %v1476
        %v1743 = vunpack.c.h.b16 %v1476
        %v1744 = vunpack.c.l.b16 %v1477
        %v1745 = vunpack.c.h.b16 %v1477
        %v1746 = vunpack.c.l.b16 %v1478
        %v1747 = vunpack.c.h.b16 %v1478
        %v1748 = vunpack.c.l.b16 %v1479
        %v1749 = vunpack.c.h.b16 %v1479
        %v1750 = vunpack.c.l.b16 %v1480
        %v1751 = vunpack.c.h.b16 %v1480
        %v1752 = vunpack.c.l.b16 %v1481
        %v1753 = vunpack.c.h.b16 %v1481
        %v1754 = vunpack.c.l.b16 %v1482
        %v1755 = vunpack.c.h.b16 %v1482
        %v1756 = vunpack.c.l.b16 %v1483
        %v1757 = vunpack.c.h.b16 %v1483
        %v1758 = vunpack.c.l.b16 %v1484
        %v1759 = vunpack.c.h.b16 %v1484
        %v1760 = vunpack.c.l.b16 %v1485
        %v1761 = vunpack.c.h.b16 %v1485
        %v1762 = vunpack.c.l.b16 %v1486
        %v1763 = vunpack.c.h.b16 %v1486
        %v1764 = vunpack.c.l.b16 %v1487
        %v1765 = vunpack.c.h.b16 %v1487
        %v1766 = vunpack.c.l.b16 %v1488
        %v1767 = vunpack.c.h.b16 %v1488
        %v1768 = vunpack.c.l.b16 %v1489
        %v1769 = vunpack.c.h.b16 %v1489
        %v1770 = vunpack.c.l.b16 %v1490
        %v1771 = vunpack.c.h.b16 %v1490
        %v1772 = vunpack.c.l.b16 %v1491
        %v1773 = vunpack.c.h.b16 %v1491
        %v1774 = vunpack.c.l.b16 %v1492
        %v1775 = vunpack.c.h.b16 %v1492
        %v1776 = vunpack.c.l.b16 %v1493
        %v1777 = vunpack.c.h.b16 %v1493
        %v1778 = vunpack.c.l.b16 %v1494
        %v1779 = vunpack.c.h.b16 %v1494
        %v1780 = vunpack.c.l.b16 %v1495
        %v1781 = vunpack.c.h.b16 %v1495
        %v1782 = vunpack.c.l.b16 %v1496
        %v1783 = vunpack.c.h.b16 %v1496
        %v1784 = vunpack.c.l.b16 %v1497
        %v1785 = vunpack.c.h.b16 %v1497
        %v1786 = vunpack.c.l.b16 %v1498
        %v1787 = vunpack.c.h.b16 %v1498
        %v1788 = vunpack.c.l.b16 %v1499
        %v1789 = vunpack.c.h.b16 %v1499
        %v1790 = vunpack.c.l.b16 %v1500
        %v1791 = vunpack.c.h.b16 %v1500
        %v1792 = vunpack.c.l.b16 %v1501
        %v1793 = vunpack.c.h.b16 %v1501
        %v1794 = vunpack.c.l.b16 %v1502
        %v1795 = vunpack.c.h.b16 %v1502
        %v1796 = vunpack.c.l.b16 %v1503
        %v1797 = vunpack.c.h.b16 %v1503
        %v1798 = vunpack.c.l.b16 %v1504
        %v1799 = vunpack.c.h.b16 %v1504
        %v1800 = vunpack.c.l.b16 %v1505
        %v1801 = vunpack.c.h.b16 %v1505
        %v1802 = vunpack.c.l.b16 %v1506
        %v1803 = vunpack.c.h.b16 %v1506
        %v1804 = vunpack.c.l.b16 %v1507
        %v1805 = vunpack.c.h.b16 %v1507
        %v1806 = vunpack.c.l.b16 %v1508
        %v1807 = vunpack.c.h.b16 %v1508
        %v1808 = vunpack.c.l.b16 %v1509
        %v1809 = vunpack.c.h.b16 %v1509
        %v1810 = vunpack.c.l.b16 %v1510
        %v1811 = vunpack.c.h.b16 %v1510
        %v1812 = vunpack.c.l.b16 %v1511
        %v1813 = vunpack.c.h.b16 %v1511
        %v1814 = vunpack.c.l.b16 %v1512
        %v1815 = vunpack.c.h.b16 %v1512
        %v1816 = vunpack.c.l.b16 %v1513
        %v1817 = vunpack.c.h.b16 %v1513
        %v1818 = vunpack.c.l.b16 %v1514
        %v1819 = vunpack.c.h.b16 %v1514
        %v1820 = vunpack.c.l.b16 %v1515
        %v1821 = vunpack.c.h.b16 %v1515
        %v1822 = vunpack.c.l.b16 %v1516
        %v1823 = vunpack.c.h.b16 %v1516
        %v1824 = vunpack.c.l.b16 %v1517
        %v1825 = vunpack.c.h.b16 %v1517
        %v1826 = vunpack.c.l.b16 %v1518
        %v1827 = vunpack.c.h.b16 %v1518
        %v1828 = vunpack.c.l.b16 %v1519
        %v1829 = vunpack.c.h.b16 %v1519
        %v1830 = vunpack.c.l.b16 %v1520
        %v1831 = vunpack.c.h.b16 %v1520
        %v1832 = vunpack.c.l.b16 %v1521
        %v1833 = vunpack.c.h.b16 %v1521
        %v1834 = vunpack.c.l.b16 %v1522
        %v1835 = vunpack.c.h.b16 %v1522
        %v1836 = vunpack.c.l.b16 %v1523
        %v1837 = vunpack.c.h.b16 %v1523
        %v1838 = vunpack.c.l.b16 %v1524
        %v1839 = vunpack.c.h.b16 %v1524
        %v1840 = vunpack.c.l.b16 %v1525
        %v1841 = vunpack.c.h.b16 %v1525
        %v1842 = vunpack.c.l.b16 %v1526
        %v1843 = vunpack.c.h.b16 %v1526
        %v1844 = vunpack.c.l.b16 %v1527
        %v1845 = vunpack.c.h.b16 %v1527
        %v1846 = vunpack.c.l.b16 %v1528
        %v1847 = vunpack.c.h.b16 %v1528
        %v1848 = vunpack.c.l.b16 %v1529
        %v1849 = vunpack.c.h.b16 %v1529
        %v1850 = vunpack.c.l.b16 %v1530
        %v1851 = vunpack.c.h.b16 %v1530
        %v1852 = vunpack.c.l.b16 %v1531
        %v1853 = vunpack.c.h.b16 %v1531
        %v1854 = vunpack.c.l.b16 %v1532
        %v1855 = vunpack.c.h.b16 %v1532
        %v1856 = vunpack.c.l.b16 %v1533
        %v1857 = vunpack.c.h.b16 %v1533
        %v1858 = vunpack.c.l.b16 %v1534
        %v1859 = vunpack.c.h.b16 %v1534
        %v1860 = vunpack.c.l.b16 %v1535
        %v1861 = vunpack.c.h.b16 %v1535
        %v1862 = vunpack.c.l.b16 %v1536
        %v1863 = vunpack.c.h.b16 %v1536
        %v1864 = vunpack.c.l.b16 %v1537
        %v1865 = vunpack.c.h.b16 %v1537
        %v1866 = vunpack.c.l.b16 %v1538
        %v1867 = vunpack.c.h.b16 %v1538
        %v1868 = vunpack.c.l.b16 %v1539
        %v1869 = vunpack.c.h.b16 %v1539
        %v1870 = vunpack.c.l.b16 %v1540
        %v1871 = vunpack.c.h.b16 %v1540
        %v1872 = vunpack.c.l.b16 %v1541
        %v1873 = vunpack.c.h.b16 %v1541
        %v1874 = vunpack.c.l.b16 %v1542
        %v1875 = vunpack.c.h.b16 %v1542
        %v1876 = vunpack.c.l.b16 %v1543
        %v1877 = vunpack.c.h.b16 %v1543
        %v1878 = vunpack.c.l.b16 %v1544
        %v1879 = vunpack.c.h.b16 %v1544
        %v1880 = vunpack.c.l.b16 %v1545
        %v1881 = vunpack.c.h.b16 %v1545
        %v1882 = vunpack.c.l.b16 %v1546
        %v1883 = vunpack.c.h.b16 %v1546
        %v1884 = vunpack.c.l.b16 %v1547
        %v1885 = vunpack.c.h.b16 %v1547
        %v1886 = vunpack.c.l.b16 %v1548
        %v1887 = vunpack.c.h.b16 %v1548
        %v1888 = vunpack.c.l.b16 %v1549
        %v1889 = vunpack.c.h.b16 %v1549
        %v1890 = vunpack.c.l.b16 %v1550
        %v1891 = vunpack.c.h.b16 %v1550
        %v1892 = vunpack.c.l.b16 %v1551
        %v1893 = vunpack.c.h.b16 %v1551
        %v1894 = vunpack.c.l.b16 %v1552
        %v1895 = vunpack.c.h.b16 %v1552
        %v1896 = vunpack.c.l.b16 %v1553
        %v1897 = vunpack.c.h.b16 %v1553
        %v1898 = vunpack.c.l.b16 %v1554
        %v1899 = vunpack.c.h.b16 %v1554
        %v1900 = vunpack.c.l.b16 %v1555
        %v1901 = vunpack.c.h.b16 %v1555
        %v1902 = vunpack.c.l.b16 %v1556
        %v1903 = vunpack.c.h.b16 %v1556
        %v1904 = vunpack.c.l.b16 %v1557
        %v1905 = vunpack.c.h.b16 %v1557
        %v1906 = vunpack.c.l.b16 %v1558
        %v1907 = vunpack.c.h.b16 %v1558
        %v1908 = vunpack.c.l.b16 %v1559
        %v1909 = vunpack.c.h.b16 %v1559
        %v1910 = vunpack.c.l.b16 %v1560
        %v1911 = vunpack.c.h.b16 %v1560
        %v1912 = vunpack.c.l.b16 %v1561
        %v1913 = vunpack.c.h.b16 %v1561
        %v1914 = vpack.c.b16 %v1734, %v1722
        %v1915 = vpack.c.b16 %v1735, %v1723
        %v1916 = vpack.c.b16 %v1736, %v1724
        %v1917 = vpack.c.b16 %v1737, %v1725
        %v1918 = vpack.c.b16 %v1738, %v1726
        %v1919 = vpack.c.b16 %v1739, %v1727
        %v1920 = vpack.c.b16 %v1740, %v1728
        %v1921 = vpack.c.b16 %v1741, %v1729
        %v1922 = vpack.c.b16 %v1742, %v1730
        %v1923 = vpack.c.b16 %v1743, %v1731
        %v1924 = vpack.c.b16 %v1744, %v1732
        %v1925 = vpack.c.b16 %v1745, %v1733
        %v1926 = vpack.c.b16 %v1758, %v1746
        %v1927 = vpack.c.b16 %v1759, %v1747
        %v1928 = vpack.c.b16 %v1760, %v1748
        %v1929 = vpack.c.b16 %v1761, %v1749
        %v1930 = vpack.c.b16 %v1762, %v1750
        %v1931 = vpack.c.b16 %v1763, %v1751
        %v1932 = vpack.c.b16 %v1764, %v1752
        %v1933 = vpack.c.b16 %v1765, %v1753
        %v1934 = vpack.c.b16 %v1766, %v1754
        %v1935 = vpack.c.b16 %v1767, %v1755
        %v1936 = vpack.c.b16 %v1768, %v1756
        %v1937 = vpack.c.b16 %v1769, %v1757
        %v1938 = vpack.c.b16 %v1782, %v1770
        %v1939 = vpack.c.b16 %v1783, %v1771
        %v1940 = vpack.c.b16 %v1784, %v1772
        %v1941 = vpack.c.b16 %v1785, %v1773
        %v1942 = vpack.c.b16 %v1786, %v1774
        %v1943 = vpack.c.b16 %v1787, %v1775
        %v1944 = vpack.c.b16 %v1788, %v1776
        %v1945 = vpack.c.b16 %v1789, %v1777
        %v1946 = vpack.c.b16 %v1790, %v1778
        %v1947 = vpack.c.b16 %v1791, %v1779
        %v1948 = vpack.c.b16 %v1792, %v1780
        %v1949 = vpack.c.b16 %v1793, %v1781
        %v1950 = vpack.c.b16 %v1806, %v1794
        %v1951 = vpack.c.b16 %v1807, %v1795
        %v1952 = vpack.c.b16 %v1808, %v1796
        %v1953 = vpack.c.b16 %v1809, %v1797
        %v1954 = vpack.c.b16 %v1810, %v1798
        %v1955 = vpack.c.b16 %v1811, %v1799
        %v1956 = vpack.c.b16 %v1812, %v1800
        %v1957 = vpack.c.b16 %v1813, %v1801
        %v1958 = vpack.c.b16 %v1814, %v1802
        %v1959 = vpack.c.b16 %v1815, %v1803
        %v1960 = vpack.c.b16 %v1816, %v1804
        %v1961 = vpack.c.b16 %v1817, %v1805
        %v1962 = vpack.c.b16 %v1830, %v1818
        %v1963 = vpack.c.b16 %v1831, %v1819
        %v1964 = vpack.c.b16 %v1832, %v1820
        %v1965 = vpack.c.b16 %v1833, %v1821
        %v1966 = vpack.c.b16 %v1834, %v1822
        %v1967 = vpack.c.b16 %v1835, %v1823
        %v1968 = vpack.c.b16 %v1836, %v1824
        %v1969 = vpack.c.b16 %v1837, %v1825
        %v1970 = vpack.c.b16 %v1838, %v1826
        %v1971 = vpack.c.b16 %v1839, %v1827
        %v1972 = vpack.c.b16 %v1840, %v1828
        %v1973 = vpack.c.b16 %v1841, %v1829
        %v1974 = vpack.c.b16 %v1854, %v1842
        %v1975 = vpack.c.b16 %v1855, %v1843
        %v1976 = vpack.c.b16 %v1856, %v1844
        %v1977 = vpack.c.b16 %v1857, %v1845
        %v1978 = vpack.c.b16 %v1858, %v1846
        %v1979 = vpack.c.b16 %v1859, %v1847
        %v1980 = vpack.c.b16 %v1860, %v1848
        %v1981 = vpack.c.b16 %v1861, %v1849
        %v1982 = vpack.c.b16 %v1862, %v1850
        %v1983 = vpack.c.b16 %v1863, %v1851
        %v1984 = vpack.c.b16 %v1864, %v1852
        %v1985 = vpack.c.b16 %v1865, %v1853
        %v1986 = vpack.c.b16 %v1878, %v1866
        %v1987 = vpack.c.b16 %v1879, %v1867
        %v1988 = vpack.c.b16 %v1880, %v1868
        %v1989 = vpack.c.b16 %v1881, %v1869
        %v1990 = vpack.c.b16 %v1882, %v1870
        %v1991 = vpack.c.b16 %v1883, %v1871
        %v1992 = vpack.c.b16 %v1884, %v1872
        %v1993 = vpack.c.b16 %v1885, %v1873
        %v1994 = vpack.c.b16 %v1886, %v1874
        %v1995 = vpack.c.b16 %v1887, %v1875
        %v1996 = vpack.c.b16 %v1888, %v1876
        %v1997 = vpack.c.b16 %v1889, %v1877
        %v1998 = vpack.c.b16 %v1902, %v1890
        %v1999 = vpack.c.b16 %v1903, %v1891
        %v2000 = vpack.c.b16 %v1904, %v1892
        %v2001 = vpack.c.b16 %v1905, %v1893
        %v2002 = vpack.c.b16 %v1906, %v1894
        %v2003 = vpack.c.b16 %v1907, %v1895
        %v2004 = vpack.c.b16 %v1908, %v1896
        %v2005 = vpack.c.b16 %v1909, %v1897
        %v2006 = vpack.c.b16 %v1910, %v1898
        %v2007 = vpack.c.b16 %v1911, %v1899
        %v2008 = vpack.c.b16 %v1912, %v1900
        %v2009 = vpack.c.b16 %v1913, %v1901
        %2106 = vmatprep.subr.bf16.mxu0 %v1999
        %2107 = vmatpush1.bf16.msra.mxu0 %v1998
        %2108 = vmatprep.subr.bf16.mxu0 %v1987
        %2109 = vmatpush1.bf16.msra.mxu0 %v1986
        %2110 = vmatprep.subr.bf16.mxu0 %v1975
        %2111 = vmatpush1.bf16.msra.mxu0 %v1974
        %2112 = vmatprep.subr.bf16.mxu0 %v1963
        %2113 = vmatpush1.bf16.msra.mxu0 %v1962
        %2114 = vmatprep.subr.bf16.mxu0 %v1951
        %2115 = vmatpush1.bf16.msra.mxu0 %v1950
        %2116 = vmatprep.subr.bf16.mxu0 %v1939
        %2117 = vmatpush1.bf16.msra.mxu0 %v1938
        %2118 = vmatprep.subr.bf16.mxu0 %v1927
        %2119 = vmatpush1.bf16.msra.mxu0 %v1926
        %2120 = vmatprep.subr.bf16.mxu0 %v1915
        %2121 = vmatpush1.bf16.msra.mxu0 %v1914
        %2122 = vmatprep.subr.bf16.mxu0 0
        %2123 = vmatpush2.bf16.msra.mxu0 0
        %2124 = vmatprep.subr.bf16.mxu0 0
        %2125 = vmatpush2.bf16.msra.mxu0 0
        %2126 = vmatprep.subr.bf16.mxu0 0
        %2127 = vmatpush2.bf16.msra.mxu0 0
        %2128 = vmatprep.subr.bf16.mxu0 0
        %2129 = vmatpush2.bf16.msra.mxu0 0
        %2130 = vmatprep.subr.bf16.mxu0 0
        %2131 = vmatpush2.bf16.msra.mxu0 0
        %2132 = vmatprep.subr.bf16.mxu0 0
        %2133 = vmatpush2.bf16.msra.mxu0 0
        %2134 = vmatprep.subr.bf16.mxu0 0
        %2135 = vmatpush2.bf16.msra.mxu0 0
        %2136 = vmatprep.subr.bf16.mxu0 0
        %2137 = vmatpush2.bf16.msra.mxu0 0
        %2138 = vmatprep.mubr.bf16.mxu0 0
        %2139 = vmatmul.mubr.bf16.gmra.mxu0 %v1465
        %v2140 = vpop.f32.mrf.mxu0
        %v2141 = vadd.f32 %v1569, %v2140
        %v2142 = vpop.f32.mrf.mxu0
        %v2143 = vadd.f32 %v1573, %v2142
        %v2144 = vpop.f32.mrf.mxu0
        %v2145 = vpop.f32.mrf.mxu0
        %2146 = vdwg.mxu0
        %2147 = vmatprep.subr.bf16.mxu0 %v2001
        %2148 = vmatpush1.bf16.msra.mxu0 %v2000
        %2149 = vmatprep.subr.bf16.mxu0 %v1989
        %2150 = vmatpush1.bf16.msra.mxu0 %v1988
        %2151 = vmatprep.subr.bf16.mxu0 %v1977
        %2152 = vmatpush1.bf16.msra.mxu0 %v1976
        %2153 = vmatprep.subr.bf16.mxu0 %v1965
        %2154 = vmatpush1.bf16.msra.mxu0 %v1964
        %2155 = vmatprep.subr.bf16.mxu0 %v1953
        %2156 = vmatpush1.bf16.msra.mxu0 %v1952
        %2157 = vmatprep.subr.bf16.mxu0 %v1941
        %2158 = vmatpush1.bf16.msra.mxu0 %v1940
        %2159 = vmatprep.subr.bf16.mxu0 %v1929
        %2160 = vmatpush1.bf16.msra.mxu0 %v1928
        %2161 = vmatprep.subr.bf16.mxu0 %v1917
        %2162 = vmatpush1.bf16.msra.mxu0 %v1916
        %2163 = vmatprep.subr.bf16.mxu0 0
        %2164 = vmatpush2.bf16.msra.mxu0 0
        %2165 = vmatprep.subr.bf16.mxu0 0
        %2166 = vmatpush2.bf16.msra.mxu0 0
        %2167 = vmatprep.subr.bf16.mxu0 0
        %2168 = vmatpush2.bf16.msra.mxu0 0
        %2169 = vmatprep.subr.bf16.mxu0 0
        %2170 = vmatpush2.bf16.msra.mxu0 0
        %2171 = vmatprep.subr.bf16.mxu0 0
        %2172 = vmatpush2.bf16.msra.mxu0 0
        %2173 = vmatprep.subr.bf16.mxu0 0
        %2174 = vmatpush2.bf16.msra.mxu0 0
        %2175 = vmatprep.subr.bf16.mxu0 0
        %2176 = vmatpush2.bf16.msra.mxu0 0
        %2177 = vmatprep.subr.bf16.mxu0 0
        %2178 = vmatpush2.bf16.msra.mxu0 0
        %2179 = vmatprep.mubr.bf16.mxu0 0
        %2180 = vmatmul.mubr.bf16.gmra.mxu0 %v1465
        %v2181 = vpop.f32.mrf.mxu0
        %v2182 = vadd.f32 %v1577, %v2181
        %v2183 = vpop.f32.mrf.mxu0
        %v2184 = vadd.f32 %v1581, %v2183
        %v2185 = vpop.f32.mrf.mxu0
        %v2186 = vpop.f32.mrf.mxu0
        %2187 = vdwg.mxu0
        %2188 = vmatprep.subr.bf16.mxu0 %v2003
        %2189 = vmatpush1.bf16.msra.mxu0 %v2002
        %2190 = vmatprep.subr.bf16.mxu0 %v1991
        %2191 = vmatpush1.bf16.msra.mxu0 %v1990
        %2192 = vmatprep.subr.bf16.mxu0 %v1979
        %2193 = vmatpush1.bf16.msra.mxu0 %v1978
        %2194 = vmatprep.subr.bf16.mxu0 %v1967
        %2195 = vmatpush1.bf16.msra.mxu0 %v1966
        %2196 = vmatprep.subr.bf16.mxu0 %v1955
        %2197 = vmatpush1.bf16.msra.mxu0 %v1954
        %2198 = vmatprep.subr.bf16.mxu0 %v1943
        %2199 = vmatpush1.bf16.msra.mxu0 %v1942
        %2200 = vmatprep.subr.bf16.mxu0 %v1931
        %2201 = vmatpush1.bf16.msra.mxu0 %v1930
        %2202 = vmatprep.subr.bf16.mxu0 %v1919
        %2203 = vmatpush1.bf16.msra.mxu0 %v1918
        %2204 = vmatprep.subr.bf16.mxu0 0
        %2205 = vmatpush2.bf16.msra.mxu0 0
        %2206 = vmatprep.subr.bf16.mxu0 0
        %2207 = vmatpush2.bf16.msra.mxu0 0
        %2208 = vmatprep.subr.bf16.mxu0 0
        %2209 = vmatpush2.bf16.msra.mxu0 0
        %2210 = vmatprep.subr.bf16.mxu0 0
        %2211 = vmatpush2.bf16.msra.mxu0 0
        %2212 = vmatprep.subr.bf16.mxu0 0
        %2213 = vmatpush2.bf16.msra.mxu0 0
        %2214 = vmatprep.subr.bf16.mxu0 0
        %2215 = vmatpush2.bf16.msra.mxu0 0
        %2216 = vmatprep.subr.bf16.mxu0 0
        %2217 = vmatpush2.bf16.msra.mxu0 0
        %2218 = vmatprep.subr.bf16.mxu0 0
        %2219 = vmatpush2.bf16.msra.mxu0 0
        %2220 = vmatprep.mubr.bf16.mxu0 0
        %2221 = vmatmul.mubr.bf16.gmra.mxu0 %v1465
        %v2222 = vpop.f32.mrf.mxu0
        %v2223 = vadd.f32 %v1585, %v2222
        %v2224 = vpop.f32.mrf.mxu0
        %v2225 = vadd.f32 %v1589, %v2224
        %v2226 = vpop.f32.mrf.mxu0
        %v2227 = vpop.f32.mrf.mxu0
        %2228 = vdwg.mxu0
        %2229 = vmatprep.subr.bf16.mxu0 %v2005
        %2230 = vmatpush1.bf16.msra.mxu0 %v2004
        %2231 = vmatprep.subr.bf16.mxu0 %v1993
        %2232 = vmatpush1.bf16.msra.mxu0 %v1992
        %2233 = vmatprep.subr.bf16.mxu0 %v1981
        %2234 = vmatpush1.bf16.msra.mxu0 %v1980
        %2235 = vmatprep.subr.bf16.mxu0 %v1969
        %2236 = vmatpush1.bf16.msra.mxu0 %v1968
        %2237 = vmatprep.subr.bf16.mxu0 %v1957
        %2238 = vmatpush1.bf16.msra.mxu0 %v1956
        %2239 = vmatprep.subr.bf16.mxu0 %v1945
        %2240 = vmatpush1.bf16.msra.mxu0 %v1944
        %2241 = vmatprep.subr.bf16.mxu0 %v1933
        %2242 = vmatpush1.bf16.msra.mxu0 %v1932
        %2243 = vmatprep.subr.bf16.mxu0 %v1921
        %2244 = vmatpush1.bf16.msra.mxu0 %v1920
        %2245 = vmatprep.subr.bf16.mxu0 0
        %2246 = vmatpush2.bf16.msra.mxu0 0
        %2247 = vmatprep.subr.bf16.mxu0 0
        %2248 = vmatpush2.bf16.msra.mxu0 0
        %2249 = vmatprep.subr.bf16.mxu0 0
        %2250 = vmatpush2.bf16.msra.mxu0 0
        %2251 = vmatprep.subr.bf16.mxu0 0
        %2252 = vmatpush2.bf16.msra.mxu0 0
        %2253 = vmatprep.subr.bf16.mxu0 0
        %2254 = vmatpush2.bf16.msra.mxu0 0
        %2255 = vmatprep.subr.bf16.mxu0 0
        %2256 = vmatpush2.bf16.msra.mxu0 0
        %2257 = vmatprep.subr.bf16.mxu0 0
        %2258 = vmatpush2.bf16.msra.mxu0 0
        %2259 = vmatprep.subr.bf16.mxu0 0
        %2260 = vmatpush2.bf16.msra.mxu0 0
        %2261 = vmatprep.mubr.bf16.mxu0 0
        %2262 = vmatmul.mubr.bf16.gmra.mxu0 %v1465
        %v2263 = vpop.f32.mrf.mxu0
        %v2264 = vadd.f32 %v1593, %v2263
        %v2265 = vpop.f32.mrf.mxu0
        %v2266 = vadd.f32 %v1597, %v2265
        %v2267 = vpop.f32.mrf.mxu0
        %v2268 = vpop.f32.mrf.mxu0
        %2269 = vdwg.mxu0
        %2270 = vmatprep.subr.bf16.mxu0 %v2007
        %2271 = vmatpush1.bf16.msra.mxu0 %v2006
        %2272 = vmatprep.subr.bf16.mxu0 %v1995
        %2273 = vmatpush1.bf16.msra.mxu0 %v1994
        %2274 = vmatprep.subr.bf16.mxu0 %v1983
        %2275 = vmatpush1.bf16.msra.mxu0 %v1982
        %2276 = vmatprep.subr.bf16.mxu0 %v1971
        %2277 = vmatpush1.bf16.msra.mxu0 %v1970
        %2278 = vmatprep.subr.bf16.mxu0 %v1959
        %2279 = vmatpush1.bf16.msra.mxu0 %v1958
        %2280 = vmatprep.subr.bf16.mxu0 %v1947
        %2281 = vmatpush1.bf16.msra.mxu0 %v1946
        %2282 = vmatprep.subr.bf16.mxu0 %v1935
        %2283 = vmatpush1.bf16.msra.mxu0 %v1934
        %2284 = vmatprep.subr.bf16.mxu0 %v1923
        %2285 = vmatpush1.bf16.msra.mxu0 %v1922
        %2286 = vmatprep.subr.bf16.mxu0 0
        %2287 = vmatpush2.bf16.msra.mxu0 0
        %2288 = vmatprep.subr.bf16.mxu0 0
        %2289 = vmatpush2.bf16.msra.mxu0 0
        %2290 = vmatprep.subr.bf16.mxu0 0
        %2291 = vmatpush2.bf16.msra.mxu0 0
        %2292 = vmatprep.subr.bf16.mxu0 0
        %2293 = vmatpush2.bf16.msra.mxu0 0
        %2294 = vmatprep.subr.bf16.mxu0 0
        %2295 = vmatpush2.bf16.msra.mxu0 0
        %2296 = vmatprep.subr.bf16.mxu0 0
        %2297 = vmatpush2.bf16.msra.mxu0 0
        %2298 = vmatprep.subr.bf16.mxu0 0
        %2299 = vmatpush2.bf16.msra.mxu0 0
        %2300 = vmatprep.subr.bf16.mxu0 0
        %2301 = vmatpush2.bf16.msra.mxu0 0
        %2302 = vmatprep.mubr.bf16.mxu0 0
        %2303 = vmatmul.mubr.bf16.gmra.mxu0 %v1465
        %v2304 = vpop.f32.mrf.mxu0
        %v2305 = vadd.f32 %v1601, %v2304
        %v2306 = vpop.f32.mrf.mxu0
        %v2307 = vadd.f32 %v1605, %v2306
        %v2308 = vpop.f32.mrf.mxu0
        %v2309 = vpop.f32.mrf.mxu0
        %2310 = vdwg.mxu0
        %2311 = vmatprep.subr.bf16.mxu0 %v2009
        %2312 = vmatpush1.bf16.msra.mxu0 %v2008
        %2313 = vmatprep.subr.bf16.mxu0 %v1997
        %2314 = vmatpush1.bf16.msra.mxu0 %v1996
        %2315 = vmatprep.subr.bf16.mxu0 %v1985
        %2316 = vmatpush1.bf16.msra.mxu0 %v1984
        %2317 = vmatprep.subr.bf16.mxu0 %v1973
        %2318 = vmatpush1.bf16.msra.mxu0 %v1972
        %2319 = vmatprep.subr.bf16.mxu0 %v1961
        %2320 = vmatpush1.bf16.msra.mxu0 %v1960
        %2321 = vmatprep.subr.bf16.mxu0 %v1949
        %2322 = vmatpush1.bf16.msra.mxu0 %v1948
        %2323 = vmatprep.subr.bf16.mxu0 %v1937
        %2324 = vmatpush1.bf16.msra.mxu0 %v1936
        %2325 = vmatprep.subr.bf16.mxu0 %v1925
        %2326 = vmatpush1.bf16.msra.mxu0 %v1924
        %2327 = vmatprep.subr.bf16.mxu0 0
        %2328 = vmatpush2.bf16.msra.mxu0 0
        %2329 = vmatprep.subr.bf16.mxu0 0
        %2330 = vmatpush2.bf16.msra.mxu0 0
        %2331 = vmatprep.subr.bf16.mxu0 0
        %2332 = vmatpush2.bf16.msra.mxu0 0
        %2333 = vmatprep.subr.bf16.mxu0 0
        %2334 = vmatpush2.bf16.msra.mxu0 0
        %2335 = vmatprep.subr.bf16.mxu0 0
        %2336 = vmatpush2.bf16.msra.mxu0 0
        %2337 = vmatprep.subr.bf16.mxu0 0
        %2338 = vmatpush2.bf16.msra.mxu0 0
        %2339 = vmatprep.subr.bf16.mxu0 0
        %2340 = vmatpush2.bf16.msra.mxu0 0
        %2341 = vmatprep.subr.bf16.mxu0 0
        %2342 = vmatpush2.bf16.msra.mxu0 0
        %2343 = vmatprep.mubr.bf16.mxu0 0
        %2344 = vmatmul.mubr.bf16.gmra.mxu0 %v1465
        %v2345 = vpop.f32.mrf.mxu0
        %v2346 = vadd.f32 %v1609, %v2345
        %v2347 = vpop.f32.mrf.mxu0
        %v2348 = vadd.f32 %v1613, %v2347
        %v2349 = vpop.f32.mrf.mxu0
        %v2350 = vpop.f32.mrf.mxu0
        %2351 = vdwg.mxu0
        %v2352 = vpack.c.bf16 %v2141, %v2141
        %v2353 = vpack.c.bf16 %v2143, %v2143
        %v2354 = vpack.c.bf16 %v2182, %v2182
        %v2355 = vpack.c.bf16 %v2184, %v2184
        %v2356 = vpack.c.bf16 %v2223, %v2223
        %v2357 = vpack.c.bf16 %v2225, %v2225
        %v2358 = vpack.c.bf16 %v2264, %v2264
        %v2359 = vpack.c.bf16 %v2266, %v2266
        %v2360 = vpack.c.bf16 %v2305, %v2305
        %v2361 = vpack.c.bf16 %v2307, %v2307
        %v2362 = vpack.c.bf16 %v2346, %v2346
        %v2363 = vpack.c.bf16 %v2348, %v2348
        %2364 = vmatprep.subr.bf16.mxu0 0
        %2365 = vmatpush1.bf16.xpose.msra.mxu0 0
        %2366 = vmatprep.subr.bf16.mxu0 0
        %2367 = vmatpush1.bf16.xpose.msra.mxu0 0
        %2368 = vmatprep.subr.bf16.mxu0 0
        %2369 = vmatpush1.bf16.xpose.msra.mxu0 0
        %2370 = vmatprep.subr.bf16.mxu0 0
        %2371 = vmatpush1.bf16.xpose.msra.mxu0 0
        %2372 = vmatprep.subr.bf16.mxu0 0
        %2373 = vmatpush1.bf16.xpose.msra.mxu0 0
        %2374 = vmatprep.subr.bf16.mxu0 0
        %2375 = vmatpush1.bf16.xpose.msra.mxu0 0
        %2376 = vmatprep.subr.bf16.mxu0 0
        %2377 = vmatpush1.bf16.xpose.msra.mxu0 0
        %2378 = vmatprep.subr.bf16.mxu0 0
        %2379 = vmatpush1.bf16.xpose.msra.mxu0 %v2356
        %2380 = vmatprep.subr.bf16.mxu0 0
        %2381 = vmatpush2.bf16.xpose.msra.mxu0 0
        %2382 = vmatprep.subr.bf16.mxu0 0
        %2383 = vmatpush2.bf16.xpose.msra.mxu0 0
        %2384 = vmatprep.subr.bf16.mxu0 0
        %2385 = vmatpush2.bf16.xpose.msra.mxu0 0
        %2386 = vmatprep.subr.bf16.mxu0 0
        %2387 = vmatpush2.bf16.xpose.msra.mxu0 0
        %2388 = vmatprep.subr.bf16.mxu0 0
        %2389 = vmatpush2.bf16.xpose.msra.mxu0 0
        %2390 = vmatprep.subr.bf16.mxu0 0
        %2391 = vmatpush2.bf16.xpose.msra.mxu0 0
        %2392 = vmatprep.subr.bf16.mxu0 0
        %2393 = vmatpush2.bf16.xpose.msra.mxu0 0
        %2394 = vmatprep.subr.bf16.mxu0 0
        %2395 = vmatpush2.bf16.xpose.msra.mxu0 0
        %2396 = vmatprep.mubr.bf16.mxu0 0
        %2397 = vmatmul.mubr.bf16.gmra.mxu0 %v2352
        %v2398 = vpop.f32.mrf.mxu0
        %v2399 = vadd.f32 0.0, %v2398
        %v2400 = vpop.f32.mrf.mxu0
        %v2401 = vpop.f32.mrf.mxu0
        %v2402 = vpop.f32.mrf.mxu0
        %2403 = vdwg.mxu0
        %v2404 = vmul.f32 %v2399, 0.35355338
        %v2405 = vadd.f32 %v2404, %v901
        %vm2406 = vcmask 64512
        %v2407 = vsel %vm2406, %v2405, -inf
        %2408 = vmax.xlane.f32.xlu0 %v2407
        %v2409 = vpop.xlane.xlu0 %2408
        %v2410 = vsub.f32 %v2405, %v2409
        %v2411 = vmul.f32 %v2410, 1.442695
        %v2412 = vpow.pop %v2411
        %v2413 = vsel %vm2406, %v2412, 0.0
        %2414 = vadd.xlane.f32.xlu0 %v2413
        %v2415 = vpop.xlane.xlu0 %2414
        %v2416 = vrcp.pop %v2415
        %v2417 = vmul.f32 %v2412, %v2416
        %v2418 = vpack.c.bf16 %v2417, %v2417
        %v2420 = vsel %vm2406, %v2418, 0
        %vm2422 = vcmask 1043456
        %v2424 = vsel %vm2422, %v2360, 0
        %2426 = vmatprep.subr.bf16.mxu0 0
        %2427 = vmatpush1.bf16.msra.mxu0 0
        %2428 = vmatprep.subr.bf16.mxu0 0
        %2429 = vmatpush1.bf16.msra.mxu0 0
        %2430 = vmatprep.subr.bf16.mxu0 0
        %2431 = vmatpush1.bf16.msra.mxu0 0
        %2432 = vmatprep.subr.bf16.mxu0 0
        %2433 = vmatpush1.bf16.msra.mxu0 0
        %2434 = vmatprep.subr.bf16.mxu0 0
        %2435 = vmatpush1.bf16.msra.mxu0 0
        %2436 = vmatprep.subr.bf16.mxu0 0
        %2437 = vmatpush1.bf16.msra.mxu0 0
        %2438 = vmatprep.subr.bf16.mxu0 0
        %2439 = vmatpush1.bf16.msra.mxu0 0
        %2440 = vmatprep.subr.bf16.mxu0 0
        %2441 = vmatpush1.bf16.msra.mxu0 %v2424
        %2442 = vmatprep.subr.bf16.mxu0 0
        %2443 = vmatpush2.bf16.msra.mxu0 0
        %2444 = vmatprep.subr.bf16.mxu0 0
        %2445 = vmatpush2.bf16.msra.mxu0 0
        %2446 = vmatprep.subr.bf16.mxu0 0
        %2447 = vmatpush2.bf16.msra.mxu0 0
        %2448 = vmatprep.subr.bf16.mxu0 0
        %2449 = vmatpush2.bf16.msra.mxu0 0
        %2450 = vmatprep.subr.bf16.mxu0 0
        %2451 = vmatpush2.bf16.msra.mxu0 0
        %2452 = vmatprep.subr.bf16.mxu0 0
        %2453 = vmatpush2.bf16.msra.mxu0 0
        %2454 = vmatprep.subr.bf16.mxu0 0
        %2455 = vmatpush2.bf16.msra.mxu0 0
        %2456 = vmatprep.subr.bf16.mxu0 0
        %2457 = vmatpush2.bf16.msra.mxu0 0
        %2458 = vmatprep.mubr.bf16.mxu0 0
        %2459 = vmatmul.mubr.bf16.gmra.mxu0 %v2420
        %v2460 = vpop.f32.mrf.mxu0
        %v2461 = vadd.f32 0.0, %v2460
        %v2462 = vpop.f32.mrf.mxu0
        %v2463 = vpop.f32.mrf.mxu0
        %v2464 = vpop.f32.mrf.mxu0
        %2465 = vdwg.mxu0
        %v2466 = vpack.c.bf16 %v2461, %v2461
        %v2467 = vld [vmem:[%s758] sm:$0xf]
        %v2468 = vld [vmem:[%s758 + $0x4] sm:$0xf]
        %v2469 = vld [vmem:[%s758 + $0x8] sm:$0xf]
        %v2470 = vld [vmem:[%s758 + $0xc] sm:$0xf]
        %v2471 = vld [vmem:[%s758 + $0x10] sm:$0xf]
        %v2472 = vld [vmem:[%s758 + $0x14] sm:$0xf]
        %v2473 = vld [vmem:[%s758 + $0x18] sm:$0xf]
        %v2474 = vld [vmem:[%s758 + $0x1c] sm:$0xf]
        %v2475 = vld [vmem:[%s758 + $0x20] sm:$0xf]
        %v2476 = vld [vmem:[%s758 + $0x24] sm:$0xf]
        %v2477 = vld [vmem:[%s758 + $0x28] sm:$0xf]
        %v2478 = vld [vmem:[%s758 + $0x2c] sm:$0xf]
        %v2479 = vld [vmem:[%s758 + $0x30] sm:$0xf]
        %v2480 = vld [vmem:[%s758 + $0x34] sm:$0xf]
        %v2481 = vld [vmem:[%s758 + $0x38] sm:$0xf]
        %v2482 = vld [vmem:[%s758 + $0x3c] sm:$0xf]
        %2483 = vmatprep.subr.bf16.mxu0 0
        %2484 = vmatpush1.bf16.xpose.msra.mxu0 0
        %2485 = vmatprep.subr.bf16.mxu0 0
        %2486 = vmatpush1.bf16.xpose.msra.mxu0 0
        %2487 = vmatprep.subr.bf16.mxu0 0
        %2488 = vmatpush1.bf16.xpose.msra.mxu0 0
        %2489 = vmatprep.subr.bf16.mxu0 0
        %2490 = vmatpush1.bf16.xpose.msra.mxu0 0
        %2491 = vmatprep.subr.bf16.mxu0 0
        %2492 = vmatpush1.bf16.xpose.msra.mxu0 0
        %2493 = vmatprep.subr.bf16.mxu0 0
        %2494 = vmatpush1.bf16.xpose.msra.mxu0 0
        %2495 = vmatprep.subr.bf16.mxu0 0
        %2496 = vmatpush1.bf16.xpose.msra.mxu0 0
        %2497 = vmatprep.subr.bf16.mxu0 0
        %2498 = vmatpush1.bf16.xpose.msra.mxu0 %v2357
        %2499 = vmatprep.subr.bf16.mxu0 0
        %2500 = vmatpush2.bf16.xpose.msra.mxu0 0
        %2501 = vmatprep.subr.bf16.mxu0 0
        %2502 = vmatpush2.bf16.xpose.msra.mxu0 0
        %2503 = vmatprep.subr.bf16.mxu0 0
        %2504 = vmatpush2.bf16.xpose.msra.mxu0 0
        %2505 = vmatprep.subr.bf16.mxu0 0
        %2506 = vmatpush2.bf16.xpose.msra.mxu0 0
        %2507 = vmatprep.subr.bf16.mxu0 0
        %2508 = vmatpush2.bf16.xpose.msra.mxu0 0
        %2509 = vmatprep.subr.bf16.mxu0 0
        %2510 = vmatpush2.bf16.xpose.msra.mxu0 0
        %2511 = vmatprep.subr.bf16.mxu0 0
        %2512 = vmatpush2.bf16.xpose.msra.mxu0 0
        %2513 = vmatprep.subr.bf16.mxu0 0
        %2514 = vmatpush2.bf16.xpose.msra.mxu0 0
        %2515 = vmatprep.mubr.bf16.mxu0 0
        %2516 = vmatmul.mubr.bf16.gmra.mxu0 %v2353
        %v2517 = vpop.f32.mrf.mxu0
        %v2518 = vadd.f32 0.0, %v2517
        %v2519 = vpop.f32.mrf.mxu0
        %v2520 = vpop.f32.mrf.mxu0
        %v2521 = vpop.f32.mrf.mxu0
        %2522 = vdwg.mxu0
        %v2523 = vmul.f32 %v2518, 0.35355338
        %v2524 = vadd.f32 %v2523, %v901
        %v2525 = vsel %vm2406, %v2524, -inf
        %2526 = vmax.xlane.f32.xlu0 %v2525
        %v2527 = vpop.xlane.xlu0 %2526
        %v2528 = vsub.f32 %v2524, %v2527
        %v2529 = vmul.f32 %v2528, 1.442695
        %v2530 = vpow.pop %v2529
        %v2531 = vsel %vm2406, %v2530, 0.0
        %2532 = vadd.xlane.f32.xlu0 %v2531
        %v2533 = vpop.xlane.xlu0 %2532
        %v2534 = vrcp.pop %v2533
        %v2535 = vmul.f32 %v2530, %v2534
        %v2536 = vpack.c.bf16 %v2535, %v2535
        %v2538 = vsel %vm2406, %v2536, 0
        %v2541 = vsel %vm2422, %v2361, 0
        %2543 = vmatprep.subr.bf16.mxu0 0
        %2544 = vmatpush1.bf16.msra.mxu0 0
        %2545 = vmatprep.subr.bf16.mxu0 0
        %2546 = vmatpush1.bf16.msra.mxu0 0
        %2547 = vmatprep.subr.bf16.mxu0 0
        %2548 = vmatpush1.bf16.msra.mxu0 0
        %2549 = vmatprep.subr.bf16.mxu0 0
        %2550 = vmatpush1.bf16.msra.mxu0 0
        %2551 = vmatprep.subr.bf16.mxu0 0
        %2552 = vmatpush1.bf16.msra.mxu0 0
        %2553 = vmatprep.subr.bf16.mxu0 0
        %2554 = vmatpush1.bf16.msra.mxu0 0
        %2555 = vmatprep.subr.bf16.mxu0 0
        %2556 = vmatpush1.bf16.msra.mxu0 0
        %2557 = vmatprep.subr.bf16.mxu0 0
        %2558 = vmatpush1.bf16.msra.mxu0 %v2541
        %2559 = vmatprep.subr.bf16.mxu0 0
        %2560 = vmatpush2.bf16.msra.mxu0 0
        %2561 = vmatprep.subr.bf16.mxu0 0
        %2562 = vmatpush2.bf16.msra.mxu0 0
        %2563 = vmatprep.subr.bf16.mxu0 0
        %2564 = vmatpush2.bf16.msra.mxu0 0
        %2565 = vmatprep.subr.bf16.mxu0 0
        %2566 = vmatpush2.bf16.msra.mxu0 0
        %2567 = vmatprep.subr.bf16.mxu0 0
        %2568 = vmatpush2.bf16.msra.mxu0 0
        %2569 = vmatprep.subr.bf16.mxu0 0
        %2570 = vmatpush2.bf16.msra.mxu0 0
        %2571 = vmatprep.subr.bf16.mxu0 0
        %2572 = vmatpush2.bf16.msra.mxu0 0
        %2573 = vmatprep.subr.bf16.mxu0 0
        %2574 = vmatpush2.bf16.msra.mxu0 0
        %2575 = vmatprep.mubr.bf16.mxu0 0
        %2576 = vmatmul.mubr.bf16.gmra.mxu0 %v2538
        %v2577 = vpop.f32.mrf.mxu0
        %v2578 = vadd.f32 0.0, %v2577
        %v2579 = vpop.f32.mrf.mxu0
        %v2580 = vpop.f32.mrf.mxu0
        %v2581 = vpop.f32.mrf.mxu0
        %2582 = vdwg.mxu0
        %v2583 = vpack.c.bf16 %v2578, %v2578
        %s2584 = scalar_lea.vmem %s758, 64 [#allocation11]
        %v2585 = vld [vmem:[%s2584] sm:$0xf]
        %v2586 = vld [vmem:[%s2584 + $0x4] sm:$0xf]
        %v2587 = vld [vmem:[%s2584 + $0x8] sm:$0xf]
        %v2588 = vld [vmem:[%s2584 + $0xc] sm:$0xf]
        %v2589 = vld [vmem:[%s2584 + $0x10] sm:$0xf]
        %v2590 = vld [vmem:[%s2584 + $0x14] sm:$0xf]
        %v2591 = vld [vmem:[%s2584 + $0x18] sm:$0xf]
        %v2592 = vld [vmem:[%s2584 + $0x1c] sm:$0xf]
        %v2593 = vld [vmem:[%s2584 + $0x20] sm:$0xf]
        %v2594 = vld [vmem:[%s2584 + $0x24] sm:$0xf]
        %v2595 = vld [vmem:[%s2584 + $0x28] sm:$0xf]
        %v2596 = vld [vmem:[%s2584 + $0x2c] sm:$0xf]
        %v2597 = vld [vmem:[%s2584 + $0x30] sm:$0xf]
        %v2598 = vld [vmem:[%s2584 + $0x34] sm:$0xf]
        %v2599 = vld [vmem:[%s2584 + $0x38] sm:$0xf]
        %v2600 = vld [vmem:[%s2584 + $0x3c] sm:$0xf]
        %v2617 = vunpack.c.l.b16 %v2585
        %v2618 = vunpack.c.l.b16 %v2586
        %v2619 = vunpack.c.l.b16 %v2587
        %v2620 = vunpack.c.l.b16 %v2588
        %v2621 = vunpack.c.l.b16 %v2589
        %v2622 = vunpack.c.l.b16 %v2590
        %v2623 = vunpack.c.l.b16 %v2591
        %v2624 = vunpack.c.l.b16 %v2592
        %v2625 = vunpack.c.l.b16 %v2593
        %v2626 = vunpack.c.l.b16 %v2594
        %v2627 = vunpack.c.l.b16 %v2595
        %v2628 = vunpack.c.l.b16 %v2596
        %v2629 = vunpack.c.l.b16 %v2597
        %v2630 = vunpack.c.l.b16 %v2598
        %v2631 = vunpack.c.l.b16 %v2599
        %v2632 = vunpack.c.l.b16 %v2600
        %v2633 = vpack.c.b16 %v2618, %v2617
        %v2634 = vpack.c.b16 %v2620, %v2619
        %v2635 = vpack.c.b16 %v2622, %v2621
        %v2636 = vpack.c.b16 %v2624, %v2623
        %v2637 = vpack.c.b16 %v2626, %v2625
        %v2638 = vpack.c.b16 %v2628, %v2627
        %v2639 = vpack.c.b16 %v2630, %v2629
        %v2640 = vpack.c.b16 %v2632, %v2631
        %2649 = vmatprep.subr.bf16.mxu0 0
        %2650 = vmatpush1.bf16.msra.mxu0 %v2640
        %2651 = vmatprep.subr.bf16.mxu0 0
        %2652 = vmatpush1.bf16.msra.mxu0 %v2639
        %2653 = vmatprep.subr.bf16.mxu0 0
        %2654 = vmatpush1.bf16.msra.mxu0 %v2638
        %2655 = vmatprep.subr.bf16.mxu0 0
        %2656 = vmatpush1.bf16.msra.mxu0 %v2637
        %2657 = vmatprep.subr.bf16.mxu0 0
        %2658 = vmatpush1.bf16.msra.mxu0 %v2636
        %2659 = vmatprep.subr.bf16.mxu0 0
        %2660 = vmatpush1.bf16.msra.mxu0 %v2635
        %2661 = vmatprep.subr.bf16.mxu0 0
        %2662 = vmatpush1.bf16.msra.mxu0 %v2634
        %2663 = vmatprep.subr.bf16.mxu0 0
        %2664 = vmatpush1.bf16.msra.mxu0 %v2633
        %2665 = vmatprep.subr.bf16.mxu0 0
        %2666 = vmatpush2.bf16.msra.mxu0 0
        %2667 = vmatprep.subr.bf16.mxu0 0
        %2668 = vmatpush2.bf16.msra.mxu0 0
        %2669 = vmatprep.subr.bf16.mxu0 0
        %2670 = vmatpush2.bf16.msra.mxu0 0
        %2671 = vmatprep.subr.bf16.mxu0 0
        %2672 = vmatpush2.bf16.msra.mxu0 0
        %2673 = vmatprep.subr.bf16.mxu0 0
        %2674 = vmatpush2.bf16.msra.mxu0 0
        %2675 = vmatprep.subr.bf16.mxu0 0
        %2676 = vmatpush2.bf16.msra.mxu0 0
        %2677 = vmatprep.subr.bf16.mxu0 0
        %2678 = vmatpush2.bf16.msra.mxu0 0
        %2679 = vmatprep.subr.bf16.mxu0 0
        %2680 = vmatpush2.bf16.msra.mxu0 0
        %2681 = vmatprep.mubr.bf16.mxu0 0
        %2682 = vmatmul.mubr.bf16.gmra.mxu0 %v2583
        %v2683 = vpop.f32.mrf.mxu0
        %v2684 = vadd.f32 0.0, %v2683
        %v2685 = vpop.f32.mrf.mxu0
        %v2686 = vpop.f32.mrf.mxu0
        %v2687 = vpop.f32.mrf.mxu0
        %2688 = vdwg.mxu0
        %v2705 = vunpack.c.l.b16 %v2467
        %v2706 = vunpack.c.l.b16 %v2468
        %v2707 = vunpack.c.l.b16 %v2469
        %v2708 = vunpack.c.l.b16 %v2470
        %v2709 = vunpack.c.l.b16 %v2471
        %v2710 = vunpack.c.l.b16 %v2472
        %v2711 = vunpack.c.l.b16 %v2473
        %v2712 = vunpack.c.l.b16 %v2474
        %v2713 = vunpack.c.l.b16 %v2475
        %v2714 = vunpack.c.l.b16 %v2476
        %v2715 = vunpack.c.l.b16 %v2477
        %v2716 = vunpack.c.l.b16 %v2478
        %v2717 = vunpack.c.l.b16 %v2479
        %v2718 = vunpack.c.l.b16 %v2480
        %v2719 = vunpack.c.l.b16 %v2481
        %v2720 = vunpack.c.l.b16 %v2482
        %v2721 = vpack.c.b16 %v2706, %v2705
        %v2722 = vpack.c.b16 %v2708, %v2707
        %v2723 = vpack.c.b16 %v2710, %v2709
        %v2724 = vpack.c.b16 %v2712, %v2711
        %v2725 = vpack.c.b16 %v2714, %v2713
        %v2726 = vpack.c.b16 %v2716, %v2715
        %v2727 = vpack.c.b16 %v2718, %v2717
        %v2728 = vpack.c.b16 %v2720, %v2719
        %2737 = vmatprep.subr.bf16.mxu0 0
        %2738 = vmatpush1.bf16.msra.mxu0 %v2728
        %2739 = vmatprep.subr.bf16.mxu0 0
        %2740 = vmatpush1.bf16.msra.mxu0 %v2727
        %2741 = vmatprep.subr.bf16.mxu0 0
        %2742 = vmatpush1.bf16.msra.mxu0 %v2726
        %2743 = vmatprep.subr.bf16.mxu0 0
        %2744 = vmatpush1.bf16.msra.mxu0 %v2725
        %2745 = vmatprep.subr.bf16.mxu0 0
        %2746 = vmatpush1.bf16.msra.mxu0 %v2724
        %2747 = vmatprep.subr.bf16.mxu0 0
        %2748 = vmatpush1.bf16.msra.mxu0 %v2723
        %2749 = vmatprep.subr.bf16.mxu0 0
        %2750 = vmatpush1.bf16.msra.mxu0 %v2722
        %2751 = vmatprep.subr.bf16.mxu0 0
        %2752 = vmatpush1.bf16.msra.mxu0 %v2721
        %2753 = vmatprep.subr.bf16.mxu0 0
        %2754 = vmatpush2.bf16.msra.mxu0 0
        %2755 = vmatprep.subr.bf16.mxu0 0
        %2756 = vmatpush2.bf16.msra.mxu0 0
        %2757 = vmatprep.subr.bf16.mxu0 0
        %2758 = vmatpush2.bf16.msra.mxu0 0
        %2759 = vmatprep.subr.bf16.mxu0 0
        %2760 = vmatpush2.bf16.msra.mxu0 0
        %2761 = vmatprep.subr.bf16.mxu0 0
        %2762 = vmatpush2.bf16.msra.mxu0 0
        %2763 = vmatprep.subr.bf16.mxu0 0
        %2764 = vmatpush2.bf16.msra.mxu0 0
        %2765 = vmatprep.subr.bf16.mxu0 0
        %2766 = vmatpush2.bf16.msra.mxu0 0
        %2767 = vmatprep.subr.bf16.mxu0 0
        %2768 = vmatpush2.bf16.msra.mxu0 0
        %2769 = vmatprep.mubr.bf16.mxu0 0
        %2770 = vmatmul.mubr.bf16.gmra.mxu0 %v2466
        %v2771 = vpop.f32.mrf.mxu0
        %v2772 = vadd.f32 %v2684, %v2771
        %v2773 = vpop.f32.mrf.mxu0
        %v2774 = vpop.f32.mrf.mxu0
        %v2775 = vpop.f32.mrf.mxu0
        %2776 = vdwg.mxu0
        %2777 = vmatprep.subr.bf16.mxu0 0
        %2778 = vmatpush1.bf16.xpose.msra.mxu0 0
        %2779 = vmatprep.subr.bf16.mxu0 0
        %2780 = vmatpush1.bf16.xpose.msra.mxu0 0
        %2781 = vmatprep.subr.bf16.mxu0 0
        %2782 = vmatpush1.bf16.xpose.msra.mxu0 0
        %2783 = vmatprep.subr.bf16.mxu0 0
        %2784 = vmatpush1.bf16.xpose.msra.mxu0 0
        %2785 = vmatprep.subr.bf16.mxu0 0
        %2786 = vmatpush1.bf16.xpose.msra.mxu0 0
        %2787 = vmatprep.subr.bf16.mxu0 0
        %2788 = vmatpush1.bf16.xpose.msra.mxu0 0
        %2789 = vmatprep.subr.bf16.mxu0 0
        %2790 = vmatpush1.bf16.xpose.msra.mxu0 0
        %2791 = vmatprep.subr.bf16.mxu0 0
        %2792 = vmatpush1.bf16.xpose.msra.mxu0 %v2358
        %2793 = vmatprep.subr.bf16.mxu0 0
        %2794 = vmatpush2.bf16.xpose.msra.mxu0 0
        %2795 = vmatprep.subr.bf16.mxu0 0
        %2796 = vmatpush2.bf16.xpose.msra.mxu0 0
        %2797 = vmatprep.subr.bf16.mxu0 0
        %2798 = vmatpush2.bf16.xpose.msra.mxu0 0
        %2799 = vmatprep.subr.bf16.mxu0 0
        %2800 = vmatpush2.bf16.xpose.msra.mxu0 0
        %2801 = vmatprep.subr.bf16.mxu0 0
        %2802 = vmatpush2.bf16.xpose.msra.mxu0 0
        %2803 = vmatprep.subr.bf16.mxu0 0
        %2804 = vmatpush2.bf16.xpose.msra.mxu0 0
        %2805 = vmatprep.subr.bf16.mxu0 0
        %2806 = vmatpush2.bf16.xpose.msra.mxu0 0
        %2807 = vmatprep.subr.bf16.mxu0 0
        %2808 = vmatpush2.bf16.xpose.msra.mxu0 0
        %2809 = vmatprep.mubr.bf16.mxu0 0
        %2810 = vmatmul.mubr.bf16.gmra.mxu0 %v2354
        %v2811 = vpop.f32.mrf.mxu0
        %v2812 = vadd.f32 0.0, %v2811
        %v2813 = vpop.f32.mrf.mxu0
        %v2814 = vpop.f32.mrf.mxu0
        %v2815 = vpop.f32.mrf.mxu0
        %2816 = vdwg.mxu0
        %v2817 = vmul.f32 %v2812, 0.35355338
        %v2818 = vadd.f32 %v2817, %v901
        %v2819 = vsel %vm2406, %v2818, -inf
        %2820 = vmax.xlane.f32.xlu0 %v2819
        %v2821 = vpop.xlane.xlu0 %2820
        %v2822 = vsub.f32 %v2818, %v2821
        %v2823 = vmul.f32 %v2822, 1.442695
        %v2824 = vpow.pop %v2823
        %v2825 = vsel %vm2406, %v2824, 0.0
        %2826 = vadd.xlane.f32.xlu0 %v2825
        %v2827 = vpop.xlane.xlu0 %2826
        %v2828 = vrcp.pop %v2827
        %v2829 = vmul.f32 %v2824, %v2828
        %v2830 = vpack.c.bf16 %v2829, %v2829
        %v2832 = vsel %vm2406, %v2830, 0
        %v2835 = vsel %vm2422, %v2362, 0
        %2837 = vmatprep.subr.bf16.mxu0 0
        %2838 = vmatpush1.bf16.msra.mxu0 0
        %2839 = vmatprep.subr.bf16.mxu0 0
        %2840 = vmatpush1.bf16.msra.mxu0 0
        %2841 = vmatprep.subr.bf16.mxu0 0
        %2842 = vmatpush1.bf16.msra.mxu0 0
        %2843 = vmatprep.subr.bf16.mxu0 0
        %2844 = vmatpush1.bf16.msra.mxu0 0
        %2845 = vmatprep.subr.bf16.mxu0 0
        %2846 = vmatpush1.bf16.msra.mxu0 0
        %2847 = vmatprep.subr.bf16.mxu0 0
        %2848 = vmatpush1.bf16.msra.mxu0 0
        %2849 = vmatprep.subr.bf16.mxu0 0
        %2850 = vmatpush1.bf16.msra.mxu0 0
        %2851 = vmatprep.subr.bf16.mxu0 0
        %2852 = vmatpush1.bf16.msra.mxu0 %v2835
        %2853 = vmatprep.subr.bf16.mxu0 0
        %2854 = vmatpush2.bf16.msra.mxu0 0
        %2855 = vmatprep.subr.bf16.mxu0 0
        %2856 = vmatpush2.bf16.msra.mxu0 0
        %2857 = vmatprep.subr.bf16.mxu0 0
        %2858 = vmatpush2.bf16.msra.mxu0 0
        %2859 = vmatprep.subr.bf16.mxu0 0
        %2860 = vmatpush2.bf16.msra.mxu0 0
        %2861 = vmatprep.subr.bf16.mxu0 0
        %2862 = vmatpush2.bf16.msra.mxu0 0
        %2863 = vmatprep.subr.bf16.mxu0 0
        %2864 = vmatpush2.bf16.msra.mxu0 0
        %2865 = vmatprep.subr.bf16.mxu0 0
        %2866 = vmatpush2.bf16.msra.mxu0 0
        %2867 = vmatprep.subr.bf16.mxu0 0
        %2868 = vmatpush2.bf16.msra.mxu0 0
        %2869 = vmatprep.mubr.bf16.mxu0 0
        %2870 = vmatmul.mubr.bf16.gmra.mxu0 %v2832
        %v2871 = vpop.f32.mrf.mxu0
        %v2872 = vadd.f32 0.0, %v2871
        %v2873 = vpop.f32.mrf.mxu0
        %v2874 = vpop.f32.mrf.mxu0
        %v2875 = vpop.f32.mrf.mxu0
        %2876 = vdwg.mxu0
        %v2877 = vpack.c.bf16 %v2872, %v2872
        %s2878 = scalar_lea.vmem %s758, 128 [#allocation11]
        %v2879 = vld [vmem:[%s2878] sm:$0xf]
        %v2880 = vld [vmem:[%s2878 + $0x4] sm:$0xf]
        %v2881 = vld [vmem:[%s2878 + $0x8] sm:$0xf]
        %v2882 = vld [vmem:[%s2878 + $0xc] sm:$0xf]
        %v2883 = vld [vmem:[%s2878 + $0x10] sm:$0xf]
        %v2884 = vld [vmem:[%s2878 + $0x14] sm:$0xf]
        %v2885 = vld [vmem:[%s2878 + $0x18] sm:$0xf]
        %v2886 = vld [vmem:[%s2878 + $0x1c] sm:$0xf]
        %v2887 = vld [vmem:[%s2878 + $0x20] sm:$0xf]
        %v2888 = vld [vmem:[%s2878 + $0x24] sm:$0xf]
        %v2889 = vld [vmem:[%s2878 + $0x28] sm:$0xf]
        %v2890 = vld [vmem:[%s2878 + $0x2c] sm:$0xf]
        %v2891 = vld [vmem:[%s2878 + $0x30] sm:$0xf]
        %v2892 = vld [vmem:[%s2878 + $0x34] sm:$0xf]
        %v2893 = vld [vmem:[%s2878 + $0x38] sm:$0xf]
        %v2894 = vld [vmem:[%s2878 + $0x3c] sm:$0xf]
        %v2911 = vunpack.c.l.b16 %v2879
        %v2912 = vunpack.c.l.b16 %v2880
        %v2913 = vunpack.c.l.b16 %v2881
        %v2914 = vunpack.c.l.b16 %v2882
        %v2915 = vunpack.c.l.b16 %v2883
        %v2916 = vunpack.c.l.b16 %v2884
        %v2917 = vunpack.c.l.b16 %v2885
        %v2918 = vunpack.c.l.b16 %v2886
        %v2919 = vunpack.c.l.b16 %v2887
        %v2920 = vunpack.c.l.b16 %v2888
        %v2921 = vunpack.c.l.b16 %v2889
        %v2922 = vunpack.c.l.b16 %v2890
        %v2923 = vunpack.c.l.b16 %v2891
        %v2924 = vunpack.c.l.b16 %v2892
        %v2925 = vunpack.c.l.b16 %v2893
        %v2926 = vunpack.c.l.b16 %v2894
        %v2927 = vpack.c.b16 %v2912, %v2911
        %v2928 = vpack.c.b16 %v2914, %v2913
        %v2929 = vpack.c.b16 %v2916, %v2915
        %v2930 = vpack.c.b16 %v2918, %v2917
        %v2931 = vpack.c.b16 %v2920, %v2919
        %v2932 = vpack.c.b16 %v2922, %v2921
        %v2933 = vpack.c.b16 %v2924, %v2923
        %v2934 = vpack.c.b16 %v2926, %v2925
        %2943 = vmatprep.subr.bf16.mxu0 0
        %2944 = vmatpush1.bf16.msra.mxu0 %v2934
        %2945 = vmatprep.subr.bf16.mxu0 0
        %2946 = vmatpush1.bf16.msra.mxu0 %v2933
        %2947 = vmatprep.subr.bf16.mxu0 0
        %2948 = vmatpush1.bf16.msra.mxu0 %v2932
        %2949 = vmatprep.subr.bf16.mxu0 0
        %2950 = vmatpush1.bf16.msra.mxu0 %v2931
        %2951 = vmatprep.subr.bf16.mxu0 0
        %2952 = vmatpush1.bf16.msra.mxu0 %v2930
        %2953 = vmatprep.subr.bf16.mxu0 0
        %2954 = vmatpush1.bf16.msra.mxu0 %v2929
        %2955 = vmatprep.subr.bf16.mxu0 0
        %2956 = vmatpush1.bf16.msra.mxu0 %v2928
        %2957 = vmatprep.subr.bf16.mxu0 0
        %2958 = vmatpush1.bf16.msra.mxu0 %v2927
        %2959 = vmatprep.subr.bf16.mxu0 0
        %2960 = vmatpush2.bf16.msra.mxu0 0
        %2961 = vmatprep.subr.bf16.mxu0 0
        %2962 = vmatpush2.bf16.msra.mxu0 0
        %2963 = vmatprep.subr.bf16.mxu0 0
        %2964 = vmatpush2.bf16.msra.mxu0 0
        %2965 = vmatprep.subr.bf16.mxu0 0
        %2966 = vmatpush2.bf16.msra.mxu0 0
        %2967 = vmatprep.subr.bf16.mxu0 0
        %2968 = vmatpush2.bf16.msra.mxu0 0
        %2969 = vmatprep.subr.bf16.mxu0 0
        %2970 = vmatpush2.bf16.msra.mxu0 0
        %2971 = vmatprep.subr.bf16.mxu0 0
        %2972 = vmatpush2.bf16.msra.mxu0 0
        %2973 = vmatprep.subr.bf16.mxu0 0
        %2974 = vmatpush2.bf16.msra.mxu0 0
        %2975 = vmatprep.mubr.bf16.mxu0 0
        %2976 = vmatmul.mubr.bf16.gmra.mxu0 %v2877
        %v2977 = vpop.f32.mrf.mxu0
        %v2978 = vadd.f32 0.0, %v2977
        %v2979 = vpop.f32.mrf.mxu0
        %v2980 = vpop.f32.mrf.mxu0
        %v2981 = vpop.f32.mrf.mxu0
        %2982 = vdwg.mxu0
        %v2983 = vadd.f32 %v2772, %v2978
        %2984 = vmatprep.subr.bf16.mxu0 0
        %2985 = vmatpush1.bf16.xpose.msra.mxu0 0
        %2986 = vmatprep.subr.bf16.mxu0 0
        %2987 = vmatpush1.bf16.xpose.msra.mxu0 0
        %2988 = vmatprep.subr.bf16.mxu0 0
        %2989 = vmatpush1.bf16.xpose.msra.mxu0 0
        %2990 = vmatprep.subr.bf16.mxu0 0
        %2991 = vmatpush1.bf16.xpose.msra.mxu0 0
        %2992 = vmatprep.subr.bf16.mxu0 0
        %2993 = vmatpush1.bf16.xpose.msra.mxu0 0
        %2994 = vmatprep.subr.bf16.mxu0 0
        %2995 = vmatpush1.bf16.xpose.msra.mxu0 0
        %2996 = vmatprep.subr.bf16.mxu0 0
        %2997 = vmatpush1.bf16.xpose.msra.mxu0 0
        %2998 = vmatprep.subr.bf16.mxu0 0
        %2999 = vmatpush1.bf16.xpose.msra.mxu0 %v2359
        %3000 = vmatprep.subr.bf16.mxu0 0
        %3001 = vmatpush2.bf16.xpose.msra.mxu0 0
        %3002 = vmatprep.subr.bf16.mxu0 0
        %3003 = vmatpush2.bf16.xpose.msra.mxu0 0
        %3004 = vmatprep.subr.bf16.mxu0 0
        %3005 = vmatpush2.bf16.xpose.msra.mxu0 0
        %3006 = vmatprep.subr.bf16.mxu0 0
        %3007 = vmatpush2.bf16.xpose.msra.mxu0 0
        %3008 = vmatprep.subr.bf16.mxu0 0
        %3009 = vmatpush2.bf16.xpose.msra.mxu0 0
        %3010 = vmatprep.subr.bf16.mxu0 0
        %3011 = vmatpush2.bf16.xpose.msra.mxu0 0
        %3012 = vmatprep.subr.bf16.mxu0 0
        %3013 = vmatpush2.bf16.xpose.msra.mxu0 0
        %3014 = vmatprep.subr.bf16.mxu0 0
        %3015 = vmatpush2.bf16.xpose.msra.mxu0 0
        %3016 = vmatprep.mubr.bf16.mxu0 0
        %3017 = vmatmul.mubr.bf16.gmra.mxu0 %v2355
        %v3018 = vpop.f32.mrf.mxu0
        %v3019 = vadd.f32 0.0, %v3018
        %v3020 = vpop.f32.mrf.mxu0
        %v3021 = vpop.f32.mrf.mxu0
        %v3022 = vpop.f32.mrf.mxu0
        %3023 = vdwg.mxu0
        %v3024 = vmul.f32 %v3019, 0.35355338
        %v3025 = vadd.f32 %v3024, %v901
        %v3026 = vsel %vm2406, %v3025, -inf
        %3027 = vmax.xlane.f32.xlu0 %v3026
        %v3028 = vpop.xlane.xlu0 %3027
        %v3029 = vsub.f32 %v3025, %v3028
        %v3030 = vmul.f32 %v3029, 1.442695
        %v3031 = vpow.pop %v3030
        %v3032 = vsel %vm2406, %v3031, 0.0
        %3033 = vadd.xlane.f32.xlu0 %v3032
        %v3034 = vpop.xlane.xlu0 %3033
        %v3035 = vrcp.pop %v3034
        %v3036 = vmul.f32 %v3031, %v3035
        %v3037 = vpack.c.bf16 %v3036, %v3036
        %v3039 = vsel %vm2406, %v3037, 0
        %v3042 = vsel %vm2422, %v2363, 0
        %3044 = vmatprep.subr.bf16.mxu0 0
        %3045 = vmatpush1.bf16.msra.mxu0 0
        %3046 = vmatprep.subr.bf16.mxu0 0
        %3047 = vmatpush1.bf16.msra.mxu0 0
        %3048 = vmatprep.subr.bf16.mxu0 0
        %3049 = vmatpush1.bf16.msra.mxu0 0
        %3050 = vmatprep.subr.bf16.mxu0 0
        %3051 = vmatpush1.bf16.msra.mxu0 0
        %3052 = vmatprep.subr.bf16.mxu0 0
        %3053 = vmatpush1.bf16.msra.mxu0 0
        %3054 = vmatprep.subr.bf16.mxu0 0
        %3055 = vmatpush1.bf16.msra.mxu0 0
        %3056 = vmatprep.subr.bf16.mxu0 0
        %3057 = vmatpush1.bf16.msra.mxu0 0
        %3058 = vmatprep.subr.bf16.mxu0 0
        %3059 = vmatpush1.bf16.msra.mxu0 %v3042
        %3060 = vmatprep.subr.bf16.mxu0 0
        %3061 = vmatpush2.bf16.msra.mxu0 0
        %3062 = vmatprep.subr.bf16.mxu0 0
        %3063 = vmatpush2.bf16.msra.mxu0 0
        %3064 = vmatprep.subr.bf16.mxu0 0
        %3065 = vmatpush2.bf16.msra.mxu0 0
        %3066 = vmatprep.subr.bf16.mxu0 0
        %3067 = vmatpush2.bf16.msra.mxu0 0
        %3068 = vmatprep.subr.bf16.mxu0 0
        %3069 = vmatpush2.bf16.msra.mxu0 0
        %3070 = vmatprep.subr.bf16.mxu0 0
        %3071 = vmatpush2.bf16.msra.mxu0 0
        %3072 = vmatprep.subr.bf16.mxu0 0
        %3073 = vmatpush2.bf16.msra.mxu0 0
        %3074 = vmatprep.subr.bf16.mxu0 0
        %3075 = vmatpush2.bf16.msra.mxu0 0
        %3076 = vmatprep.mubr.bf16.mxu0 0
        %3077 = vmatmul.mubr.bf16.gmra.mxu0 %v3039
        %v3078 = vpop.f32.mrf.mxu0
        %v3079 = vadd.f32 0.0, %v3078
        %v3080 = vpop.f32.mrf.mxu0
        %v3081 = vpop.f32.mrf.mxu0
        %v3082 = vpop.f32.mrf.mxu0
        %3083 = vdwg.mxu0
        %v3084 = vpack.c.bf16 %v3079, %v3079
        %s3085 = scalar_lea.vmem %s758, 192 [#allocation11]
        %v3086 = vld [vmem:[%s3085] sm:$0xf]
        %v3087 = vld [vmem:[%s3085 + $0x4] sm:$0xf]
        %v3088 = vld [vmem:[%s3085 + $0x8] sm:$0xf]
        %v3089 = vld [vmem:[%s3085 + $0xc] sm:$0xf]
        %v3090 = vld [vmem:[%s3085 + $0x10] sm:$0xf]
        %v3091 = vld [vmem:[%s3085 + $0x14] sm:$0xf]
        %v3092 = vld [vmem:[%s3085 + $0x18] sm:$0xf]
        %v3093 = vld [vmem:[%s3085 + $0x1c] sm:$0xf]
        %v3094 = vld [vmem:[%s3085 + $0x20] sm:$0xf]
        %v3095 = vld [vmem:[%s3085 + $0x24] sm:$0xf]
        %v3096 = vld [vmem:[%s3085 + $0x28] sm:$0xf]
        %v3097 = vld [vmem:[%s3085 + $0x2c] sm:$0xf]
        %v3098 = vld [vmem:[%s3085 + $0x30] sm:$0xf]
        %v3099 = vld [vmem:[%s3085 + $0x34] sm:$0xf]
        %v3100 = vld [vmem:[%s3085 + $0x38] sm:$0xf]
        %v3101 = vld [vmem:[%s3085 + $0x3c] sm:$0xf]
        %v3118 = vunpack.c.l.b16 %v3086
        %v3119 = vunpack.c.l.b16 %v3087
        %v3120 = vunpack.c.l.b16 %v3088
        %v3121 = vunpack.c.l.b16 %v3089
        %v3122 = vunpack.c.l.b16 %v3090
        %v3123 = vunpack.c.l.b16 %v3091
        %v3124 = vunpack.c.l.b16 %v3092
        %v3125 = vunpack.c.l.b16 %v3093
        %v3126 = vunpack.c.l.b16 %v3094
        %v3127 = vunpack.c.l.b16 %v3095
        %v3128 = vunpack.c.l.b16 %v3096
        %v3129 = vunpack.c.l.b16 %v3097
        %v3130 = vunpack.c.l.b16 %v3098
        %v3131 = vunpack.c.l.b16 %v3099
        %v3132 = vunpack.c.l.b16 %v3100
        %v3133 = vunpack.c.l.b16 %v3101
        %v3134 = vpack.c.b16 %v3119, %v3118
        %v3135 = vpack.c.b16 %v3121, %v3120
        %v3136 = vpack.c.b16 %v3123, %v3122
        %v3137 = vpack.c.b16 %v3125, %v3124
        %v3138 = vpack.c.b16 %v3127, %v3126
        %v3139 = vpack.c.b16 %v3129, %v3128
        %v3140 = vpack.c.b16 %v3131, %v3130
        %v3141 = vpack.c.b16 %v3133, %v3132
        %3150 = vmatprep.subr.bf16.mxu0 0
        %3151 = vmatpush1.bf16.msra.mxu0 %v3141
        %3152 = vmatprep.subr.bf16.mxu0 0
        %3153 = vmatpush1.bf16.msra.mxu0 %v3140
        %3154 = vmatprep.subr.bf16.mxu0 0
        %3155 = vmatpush1.bf16.msra.mxu0 %v3139
        %3156 = vmatprep.subr.bf16.mxu0 0
        %3157 = vmatpush1.bf16.msra.mxu0 %v3138
        %3158 = vmatprep.subr.bf16.mxu0 0
        %3159 = vmatpush1.bf16.msra.mxu0 %v3137
        %3160 = vmatprep.subr.bf16.mxu0 0
        %3161 = vmatpush1.bf16.msra.mxu0 %v3136
        %3162 = vmatprep.subr.bf16.mxu0 0
        %3163 = vmatpush1.bf16.msra.mxu0 %v3135
        %3164 = vmatprep.subr.bf16.mxu0 0
        %3165 = vmatpush1.bf16.msra.mxu0 %v3134
        %3166 = vmatprep.subr.bf16.mxu0 0
        %3167 = vmatpush2.bf16.msra.mxu0 0
        %3168 = vmatprep.subr.bf16.mxu0 0
        %3169 = vmatpush2.bf16.msra.mxu0 0
        %3170 = vmatprep.subr.bf16.mxu0 0
        %3171 = vmatpush2.bf16.msra.mxu0 0
        %3172 = vmatprep.subr.bf16.mxu0 0
        %3173 = vmatpush2.bf16.msra.mxu0 0
        %3174 = vmatprep.subr.bf16.mxu0 0
        %3175 = vmatpush2.bf16.msra.mxu0 0
        %3176 = vmatprep.subr.bf16.mxu0 0
        %3177 = vmatpush2.bf16.msra.mxu0 0
        %3178 = vmatprep.subr.bf16.mxu0 0
        %3179 = vmatpush2.bf16.msra.mxu0 0
        %3180 = vmatprep.subr.bf16.mxu0 0
        %3181 = vmatpush2.bf16.msra.mxu0 0
        %3182 = vmatprep.mubr.bf16.mxu0 0
        %3183 = vmatmul.mubr.bf16.gmra.mxu0 %v3084
        %v3184 = vpop.f32.mrf.mxu0
        %v3185 = vadd.f32 0.0, %v3184
        %v3186 = vpop.f32.mrf.mxu0
        %v3187 = vpop.f32.mrf.mxu0
        %v3188 = vpop.f32.mrf.mxu0
        %3189 = vdwg.mxu0
        %v3190 = vadd.f32 %v2983, %v3185
        %v3191 = vadd.f32 %v1436, %v3190
        %v3192 = vld [vmem:[%s881] sm:$0x1]
        %v3194 = vlaneseq
        %v3195 = vshrl.u32 %v3194, 7
        %v3196 = vsub.s32 0, %v3195
        %v3197 = vrot.slane %v3192, %v3196
        %v3199 = vadd.f32 %v3191, %v3197
        %v3200 = vld [vmem:[%s884] sm:$0x1]
        %v3201 = vld [vmem:[%s887] sm:$0x1]
        %3202 = vadd.xlane.f32.xlu0 %v3199
        %v3203 = vpop.xlane.xlu0 %3202
        %v3204 = vmul.f32 %v3203, 0.03125
        %v3205 = vsub.f32 %v3199, %v3204
        %v3206 = vmul.f32 %v3205, %v899
        %v3207 = vmul.f32 %v3206, %v3206
        %3208 = vadd.xlane.f32.xlu0 %v3207
        %v3209 = vpop.xlane.xlu0 %3208
        %v3210 = vmul.f32 %v3209, 0.03125
        %v3211 = vadd.f32 %v3210, 1e-06
        %v3212 = vrsqrt.pop %v3211
        %v3213 = vmul.f32 %v3206, %v3212
        %v3215 = vlaneseq
        %v3216 = vshrl.u32 %v3215, 7
        %v3217 = vsub.s32 0, %v3216
        %v3218 = vrot.slane %v3200, %v3217
        %v3220 = vmul.f32 %v3213, %v3218
        %v3222 = vlaneseq
        %v3223 = vshrl.u32 %v3222, 7
        %v3224 = vsub.s32 0, %v3223
        %v3225 = vrot.slane %v3201, %v3224
        %v3227 = vadd.f32 %v3220, %v3225
        %v3228 = vpack.c.bf16 %v3227, %v3227
        %v3229 = vld [vmem:[%s767] sm:$0xf]
        %v3230 = vld [vmem:[%s767 + $0x4] sm:$0xf]
        %v3231 = vld [vmem:[%s767 + $0x8] sm:$0xf]
        %v3232 = vld [vmem:[%s767 + $0xc] sm:$0xf]
        %v3233 = vld [vmem:[%s767 + $0x10] sm:$0xf]
        %v3234 = vld [vmem:[%s767 + $0x14] sm:$0xf]
        %v3235 = vld [vmem:[%s767 + $0x18] sm:$0xf]
        %v3236 = vld [vmem:[%s767 + $0x1c] sm:$0xf]
        %v3237 = vld [vmem:[%s767 + $0x20] sm:$0xf]
        %v3238 = vld [vmem:[%s767 + $0x24] sm:$0xf]
        %v3239 = vld [vmem:[%s767 + $0x28] sm:$0xf]
        %v3240 = vld [vmem:[%s767 + $0x2c] sm:$0xf]
        %v3241 = vld [vmem:[%s767 + $0x30] sm:$0xf]
        %v3242 = vld [vmem:[%s767 + $0x34] sm:$0xf]
        %v3243 = vld [vmem:[%s767 + $0x38] sm:$0xf]
        %v3244 = vld [vmem:[%s767 + $0x3c] sm:$0xf]
        %v3245 = vld [vmem:[%s890] sm:$0x1]
        %v3247 = vlaneseq
        %v3248 = vshrl.u32 %v3247, 7
        %v3249 = vsub.s32 0, %v3248
        %v3250 = vrot.slane %v3245, %v3249
        %v3268 = vunpack.c.l.b16 %v3229
        %v3269 = vunpack.c.l.b16 %v3230
        %v3270 = vunpack.c.l.b16 %v3231
        %v3271 = vunpack.c.l.b16 %v3232
        %v3272 = vunpack.c.l.b16 %v3233
        %v3273 = vunpack.c.l.b16 %v3234
        %v3274 = vunpack.c.l.b16 %v3235
        %v3275 = vunpack.c.l.b16 %v3236
        %v3276 = vunpack.c.l.b16 %v3237
        %v3277 = vunpack.c.l.b16 %v3238
        %v3278 = vunpack.c.l.b16 %v3239
        %v3279 = vunpack.c.l.b16 %v3240
        %v3280 = vunpack.c.l.b16 %v3241
        %v3281 = vunpack.c.l.b16 %v3242
        %v3282 = vunpack.c.l.b16 %v3243
        %v3283 = vunpack.c.l.b16 %v3244
        %v3284 = vpack.c.b16 %v3269, %v3268
        %v3285 = vpack.c.b16 %v3271, %v3270
        %v3286 = vpack.c.b16 %v3273, %v3272
        %v3287 = vpack.c.b16 %v3275, %v3274
        %v3288 = vpack.c.b16 %v3277, %v3276
        %v3289 = vpack.c.b16 %v3279, %v3278
        %v3290 = vpack.c.b16 %v3281, %v3280
        %v3291 = vpack.c.b16 %v3283, %v3282
        %3300 = vmatprep.subr.bf16.mxu0 0
        %3301 = vmatpush1.bf16.msra.mxu0 %v3291
        %3302 = vmatprep.subr.bf16.mxu0 0
        %3303 = vmatpush1.bf16.msra.mxu0 %v3290
        %3304 = vmatprep.subr.bf16.mxu0 0
        %3305 = vmatpush1.bf16.msra.mxu0 %v3289
        %3306 = vmatprep.subr.bf16.mxu0 0
        %3307 = vmatpush1.bf16.msra.mxu0 %v3288
        %3308 = vmatprep.subr.bf16.mxu0 0
        %3309 = vmatpush1.bf16.msra.mxu0 %v3287
        %3310 = vmatprep.subr.bf16.mxu0 0
        %3311 = vmatpush1.bf16.msra.mxu0 %v3286
        %3312 = vmatprep.subr.bf16.mxu0 0
        %3313 = vmatpush1.bf16.msra.mxu0 %v3285
        %3314 = vmatprep.subr.bf16.mxu0 0
        %3315 = vmatpush1.bf16.msra.mxu0 %v3284
        %3316 = vmatprep.subr.bf16.mxu0 0
        %3317 = vmatpush2.bf16.msra.mxu0 0
        %3318 = vmatprep.subr.bf16.mxu0 0
        %3319 = vmatpush2.bf16.msra.mxu0 0
        %3320 = vmatprep.subr.bf16.mxu0 0
        %3321 = vmatpush2.bf16.msra.mxu0 0
        %3322 = vmatprep.subr.bf16.mxu0 0
        %3323 = vmatpush2.bf16.msra.mxu0 0
        %3324 = vmatprep.subr.bf16.mxu0 0
        %3325 = vmatpush2.bf16.msra.mxu0 0
        %3326 = vmatprep.subr.bf16.mxu0 0
        %3327 = vmatpush2.bf16.msra.mxu0 0
        %3328 = vmatprep.subr.bf16.mxu0 0
        %3329 = vmatpush2.bf16.msra.mxu0 0
        %3330 = vmatprep.subr.bf16.mxu0 0
        %3331 = vmatpush2.bf16.msra.mxu0 0
        %3332 = vmatprep.mubr.bf16.mxu0 0
        %3333 = vmatmul.mubr.bf16.gmra.mxu0 %v3228
        %v3334 = vpop.f32.mrf.mxu0
        %v3335 = vadd.f32 %v3250, %v3334
        %v3336 = vpop.f32.mrf.mxu0
        %v3337 = vpop.f32.mrf.mxu0
        %v3338 = vpop.f32.mrf.mxu0
        %3339 = vdwg.mxu0
        %v3340 = vmul.f32 %v3335, 0.5
        %v3341 = vmul.f32 %v3335, 0.70710677
        %v3342 = vand.u32 2147483647, %v3341
        %v3343 = vmul.f32 %v3342, 0.3275911
        %v3344 = vadd.f32 %v3343, 1.0
        %v3345 = vrcp.pop %v3344
        %v3346 = vmul.f32 1.0, %v3345
        %v3347 = vmul.f32 %v3346, 1.0614054
        %v3348 = vadd.f32 %v3347, -1.4531521
        %v3349 = vmul.f32 %v3348, %v3346
        %v3350 = vadd.f32 %v3349, 1.4214138
        %v3351 = vmul.f32 %v3350, %v3346
        %v3352 = vadd.f32 %v3351, -0.28449672
        %v3353 = vmul.f32 %v3352, %v3346
        %v3354 = vadd.f32 %v3353, 0.2548296
        %v3355 = vmul.f32 %v3354, %v3346
        %v3356 = vsub.f32 0.0, %v3342
        %v3357 = vmul.f32 %v3356, %v3342
        %v3358 = vmul.f32 %v3357, 1.442695
        %v3359 = vpow.pop %v3358
        %v3360 = vmul.f32 %v3355, %v3359
        %v3361 = vsub.f32 1.0, %v3360
        %vm3362 = vcmp.ge.f32.partialorder %v3341, 0.0
        %v3363 = vsub.f32 0.0, %v3361
        %v3364 = vsel %vm3362, %v3361, %v3363
        %v3365 = vadd.f32 %v3364, 1.0
        %v3366 = vmul.f32 %v3340, %v3365
        %v3367 = vpack.c.bf16 %v3366, %v3366
        %v3368 = vld [vmem:[%s776] sm:$0xf]
        %v3369 = vld [vmem:[%s776 + $0x4] sm:$0xf]
        %v3370 = vld [vmem:[%s776 + $0x8] sm:$0xf]
        %v3371 = vld [vmem:[%s776 + $0xc] sm:$0xf]
        %v3372 = vld [vmem:[%s776 + $0x10] sm:$0xf]
        %v3373 = vld [vmem:[%s776 + $0x14] sm:$0xf]
        %v3374 = vld [vmem:[%s776 + $0x18] sm:$0xf]
        %v3375 = vld [vmem:[%s776 + $0x1c] sm:$0xf]
        %v3376 = vld [vmem:[%s776 + $0x20] sm:$0xf]
        %v3377 = vld [vmem:[%s776 + $0x24] sm:$0xf]
        %v3378 = vld [vmem:[%s776 + $0x28] sm:$0xf]
        %v3379 = vld [vmem:[%s776 + $0x2c] sm:$0xf]
        %v3380 = vld [vmem:[%s776 + $0x30] sm:$0xf]
        %v3381 = vld [vmem:[%s776 + $0x34] sm:$0xf]
        %v3382 = vld [vmem:[%s776 + $0x38] sm:$0xf]
        %v3383 = vld [vmem:[%s776 + $0x3c] sm:$0xf]
        %v3384 = vld [vmem:[%s893] sm:$0x1]
        %v3386 = vlaneseq
        %v3387 = vshrl.u32 %v3386, 7
        %v3388 = vsub.s32 0, %v3387
        %v3389 = vrot.slane %v3384, %v3388
        %v3407 = vunpack.c.l.b16 %v3368
        %v3408 = vunpack.c.l.b16 %v3369
        %v3409 = vunpack.c.l.b16 %v3370
        %v3410 = vunpack.c.l.b16 %v3371
        %v3411 = vunpack.c.l.b16 %v3372
        %v3412 = vunpack.c.l.b16 %v3373
        %v3413 = vunpack.c.l.b16 %v3374
        %v3414 = vunpack.c.l.b16 %v3375
        %v3415 = vunpack.c.l.b16 %v3376
        %v3416 = vunpack.c.l.b16 %v3377
        %v3417 = vunpack.c.l.b16 %v3378
        %v3418 = vunpack.c.l.b16 %v3379
        %v3419 = vunpack.c.l.b16 %v3380
        %v3420 = vunpack.c.l.b16 %v3381
        %v3421 = vunpack.c.l.b16 %v3382
        %v3422 = vunpack.c.l.b16 %v3383
        %v3423 = vpack.c.b16 %v3408, %v3407
        %v3424 = vpack.c.b16 %v3410, %v3409
        %v3425 = vpack.c.b16 %v3412, %v3411
        %v3426 = vpack.c.b16 %v3414, %v3413
        %v3427 = vpack.c.b16 %v3416, %v3415
        %v3428 = vpack.c.b16 %v3418, %v3417
        %v3429 = vpack.c.b16 %v3420, %v3419
        %v3430 = vpack.c.b16 %v3422, %v3421
        %3439 = vmatprep.subr.bf16.mxu0 0
        %3440 = vmatpush1.bf16.msra.mxu0 %v3430
        %3441 = vmatprep.subr.bf16.mxu0 0
        %3442 = vmatpush1.bf16.msra.mxu0 %v3429
        %3443 = vmatprep.subr.bf16.mxu0 0
        %3444 = vmatpush1.bf16.msra.mxu0 %v3428
        %3445 = vmatprep.subr.bf16.mxu0 0
        %3446 = vmatpush1.bf16.msra.mxu0 %v3427
        %3447 = vmatprep.subr.bf16.mxu0 0
        %3448 = vmatpush1.bf16.msra.mxu0 %v3426
        %3449 = vmatprep.subr.bf16.mxu0 0
        %3450 = vmatpush1.bf16.msra.mxu0 %v3425
        %3451 = vmatprep.subr.bf16.mxu0 0
        %3452 = vmatpush1.bf16.msra.mxu0 %v3424
        %3453 = vmatprep.subr.bf16.mxu0 0
        %3454 = vmatpush1.bf16.msra.mxu0 %v3423
        %3455 = vmatprep.subr.bf16.mxu0 0
        %3456 = vmatpush2.bf16.msra.mxu0 0
        %3457 = vmatprep.subr.bf16.mxu0 0
        %3458 = vmatpush2.bf16.msra.mxu0 0
        %3459 = vmatprep.subr.bf16.mxu0 0
        %3460 = vmatpush2.bf16.msra.mxu0 0
        %3461 = vmatprep.subr.bf16.mxu0 0
        %3462 = vmatpush2.bf16.msra.mxu0 0
        %3463 = vmatprep.subr.bf16.mxu0 0
        %3464 = vmatpush2.bf16.msra.mxu0 0
        %3465 = vmatprep.subr.bf16.mxu0 0
        %3466 = vmatpush2.bf16.msra.mxu0 0
        %3467 = vmatprep.subr.bf16.mxu0 0
        %3468 = vmatpush2.bf16.msra.mxu0 0
        %3469 = vmatprep.subr.bf16.mxu0 0
        %3470 = vmatpush2.bf16.msra.mxu0 0
        %3471 = vmatprep.mubr.bf16.mxu0 0
        %3472 = vmatmul.mubr.bf16.gmra.mxu0 %v3367
        %v3473 = vpop.f32.mrf.mxu0
        %v3474 = vadd.f32 %v3389, %v3473
        %v3475 = vpop.f32.mrf.mxu0
        %v3476 = vpop.f32.mrf.mxu0
        %v3477 = vpop.f32.mrf.mxu0
        %3478 = vdwg.mxu0
        %v3479 = vadd.f32 %v3199, %v3474
        %3480 = vst [vmem:[%s872] sm:$0xff] %v3479
        %p3481 = scmp.eq.s32.totalorder %s49, 1
        // Predicated region
        $region125: #{tpu_custom_call.1} parent=87 // pred_check
          %p3482 = pneg %p3481
        $region126: #{tpu_custom_call.1} parent=87 // pred_check_branch
          %3484 = sbr.rel (%p3482) target = $region128
        $region127: #{tpu_custom_call.1} parent=87 // pred_region
          %v3485 = vld [vmem:[%s15] sm:$0x1]
          %v3486 = vld [vmem:[%s16] sm:$0x1]
          %3487 = vadd.xlane.f32.xlu0 %v3479
          %v3488 = vpop.xlane.xlu0 %3487
          %v3489 = vmul.f32 %v3488, 0.03125
          %v3490 = vsub.f32 %v3479, %v3489
          %v3491 = vmul.f32 %v3490, %v899
          %v3492 = vmul.f32 %v3491, %v3491
          %3493 = vadd.xlane.f32.xlu0 %v3492
          %v3494 = vpop.xlane.xlu0 %3493
          %v3495 = vmul.f32 %v3494, 0.03125
          %v3496 = vadd.f32 %v3495, 1e-06
          %v3497 = vrsqrt.pop %v3496
          %v3498 = vmul.f32 %v3491, %v3497
          %v3500 = vlaneseq
          %v3501 = vshrl.u32 %v3500, 7
          %v3502 = vsub.s32 0, %v3501
          %v3503 = vrot.slane %v3485, %v3502
          %v3505 = vmul.f32 %v3498, %v3503
          %v3507 = vlaneseq
          %v3508 = vshrl.u32 %v3507, 7
          %v3509 = vsub.s32 0, %v3508
          %v3510 = vrot.slane %v3486, %v3509
          %v3512 = vadd.f32 %v3505, %v3510
          %3513 = vst [vmem:[%s872] sm:$0xff] %v3512
        $region128: #{tpu_custom_call.1} parent=87 // pred_fallthru
          _
        %s3514 = sand.u32 %s486, 1
        %s3515 = scalar_lea.sflag [#allocation4], %s3514
        %s3516 = sand.u32 %s486, 1
        %s3517 = smul.addr %s3516, 8
        %s3518 = scalar_lea.vmem [#allocation16], %s3517
        // Predicated region
        $region129: #{tpu_custom_call.1} parent=87 // pred_check
          %p3519 = pneg %p496
        $region130: #{tpu_custom_call.1} parent=87 // pred_check_branch
          %3521 = sbr.rel (%p3519) target = $region132
        $region131: #{tpu_custom_call.1} parent=87 // pred_region
          %s3523 = ssub.s32 128, 128
          %3524 = vsyncadd %s3515, %s3523
          %s3525 = smul.addr %s48, 128
          %s3526 = scalar_lea.hbm %s17, %s3525
          %s3528 = sshll.u32 %s3518, 4
          %s3529 = int_to_ptr.vmem [resolvable:$true] %s3528
          %3531 = dma.vmem_to_hbm [thread:$0]  %s3529, 128, %s3526, %s3515
        $region132: #{tpu_custom_call.1} parent=87 // pred_fallthru
          _
      $region88: #{tpu_custom_call.1} parent=5 // pred_fallthru
        _
      %p3532 = scmp.le.s32.totalorder 2, %s39
      // Predicated region
      $region133: #{tpu_custom_call.1} parent=5 // pred_check
        %p3533 = pneg %p3532
      $region134: #{tpu_custom_call.1} parent=5 // pred_check_branch
        %3535 = sbr.rel (%p3533) target = $region136
      $region135: #{tpu_custom_call.1} parent=5 // pred_region
        %s3536 = ssub.s32 %s39, 2
        // Predicated region
        $region137: #{tpu_custom_call.1} parent=135 // pred_check
          %p3537 = pneg %p502
        $region138: #{tpu_custom_call.1} parent=135 // pred_check_branch
          %3539 = sbr.rel (%p3537) target = $region140
        $region139: #{tpu_custom_call.1} parent=135 // pred_region
          %s3540 = sand.u32 %s487, 1
          %s3541 = scalar_lea.sflag [#allocation4], %s3540
          %s3542 = sand.u32 %s487, 1
          %s3543 = smul.addr %s3542, 8
          %s3544 = scalar_lea.vmem [#allocation16], %s3543
          %3545 = dma.done %s3541, 128
        $region140: #{tpu_custom_call.1} parent=135 // pred_fallthru
          _
      $region136: #{tpu_custom_call.1} parent=5 // pred_fallthru
        _
    $region6: #{tpu_custom_call.1} parent=1 // loop_footer
      %s43 = sadd.s32 1, %s39
    $region7: #{tpu_custom_call.1} parent=1 // loop_footer_branch
      %38 = sbr.rel target = $region3
    $region8: #{tpu_custom_call.1} parent=1 // loop_exit
      _
    %3546 = vsyncpa [#allocation3], 1
    %s3547 = scalar_lea.sflag [#allocation3], 1
    %3548 = vsyncpa %s3547, 1
    %3549 = vsyncpa [#allocation6], 1
    %3550 = vsyncpa [#allocation9], 1
    %s3551 = scalar_lea.sflag [#allocation9], 1
    %3552 = vsyncpa %s3551, 1
    %3553 = vsyncpa [#allocation12], 1
    %s3554 = scalar_lea.sflag [#allocation12], 1
    %3555 = vsyncpa %s3554, 1
    %3556 = vsyncpa [#allocation15], 1
    %s3557 = scalar_lea.sflag [#allocation15], 1
    %3558 = vsyncpa %s3557, 1
    %3559 = vsyncpa [#allocation4], 1
    %s3560 = scalar_lea.sflag [#allocation4], 1
    %3561 = vsyncpa %s3560, 1

</llo_original>
